<compile_context>
chip_gen: v5e
topology: v5e:2x2
jax: 0.10.0
libtpu: 0.0.40
codegen_flags: <defaults>
</compile_context>

<pallas_src>
import functools
import math

import jax
import jax.numpy as jnp
from jax.experimental import pallas as pl
from jax.experimental.pallas import tpu as pltpu


# ----------------------------- fused Pallas kernel ---------------------------

def _fused_forward_kernel(*refs, B, S, H, num_layers, eps):
    """Single program; whole batch fused.

    refs layout:
      [0]            x_ref            (B*S, input_dim)  f32
      [1:5]          inp_wt, inp_b, fc_wt, fc_b
      [5 : 5+12L]    per-layer params (12 each):
                     qkv_wt, qkv_b, out_wt, out_b, ff1_wt, ff1_b, ff2_wt, ff2_b,
                     ln1_g, ln1_b, ln2_g, ln2_b
      [5+12L]        o_ref            (B, 1) f32
    Weights (…_wt) are bf16 (K, N); biases / LN params are f32 (1, N).
    """
    x_ref = refs[0]
    inp_wt, inp_b, fc_wt, fc_b = refs[1:5]
    layer_refs = refs[5:5 + 12 * num_layers]
    o_ref = refs[5 + 12 * num_layers]

    D = inp_b.shape[1]
    Dh = D // H
    scale = 1.0 / math.sqrt(Dh)

    def mxu(a, b):
        # bf16 operands, f32 accumulation (native MXU rate on v5e/v6e/v7x).
        return jnp.dot(a.astype(jnp.bfloat16), b.astype(jnp.bfloat16),
                       preferred_element_type=jnp.float32)

    def add_layer_norm(y, g_ref, b_ref):
        # All pointwise math in f32 (important on v5e: no bf16 VPU/EUP).
        mu = jnp.mean(y, axis=-1, keepdims=True)
        var = jnp.mean((y - mu) ** 2, axis=-1, keepdims=True)
        return (y - mu) * jax.lax.rsqrt(var + eps) * g_ref[...] + b_ref[...]

    # input projection: (B*S, input_dim) @ (input_dim, D) + (1, D)   [f32 result]
    h = mxu(x_ref[...], inp_wt[...]) + inp_b[...]

    for l in range(num_layers):                           # static, unrolled
        (qkv_wt, qkv_b, out_wt, out_b,
         ff1_wt, ff1_b, ff2_wt, ff2_b,
         ln1_g, ln1_b, ln2_g, ln2_b) = layer_refs[12 * l: 12 * (l + 1)]

        # ---- self-attention sub-block (post-norm, PyTorch norm_first=False) ----
        qkv = mxu(h, qkv_wt[...]) + qkv_b[...]            # (B*S, 3D) f32

        attn_proj = None                                  # out-proj accumulated in vregs
        for hh in range(H):                               # static head loop
            c = hh * Dh
            qh = qkv[:, c:c + Dh]                         # (B*S, Dh)
            kh = qkv[:, D + c:D + c + Dh]
            vh = qkv[:, 2 * D + c:2 * D + c + Dh]

            rows = []
            for b in range(B):                            # attention mixes seq within b only
                r0 = b * S
                qb = qh[r0:r0 + S]                        # (S, Dh)
                kb = kh[r0:r0 + S]
                vb = vh[r0:r0 + S]
                # q @ k^T without materializing a transpose (contract last dims).
                s = jax.lax.dot_general(
                    qb.astype(jnp.bfloat16), kb.astype(jnp.bfloat16),
                    (((1,), (1,)), ((), ())),
                    preferred_element_type=jnp.float32) * scale        # (S, S) f32
                s = s - jnp.max(s, axis=-1, keepdims=True)
                p = jnp.exp(s)                                          # f32
                p = p * pl.reciprocal(jnp.sum(p, axis=-1, keepdims=True), approx=True)
                rows.append(mxu(p, vb))                                  # (S, Dh) f32
            head_out = jnp.concatenate(rows, axis=0)                     # (B*S, Dh)

            # accumulate this head's slice of the out projection: (B*S, Dh) @ (Dh, D)
            contrib = mxu(head_out, out_wt[c:c + Dh, :])
            attn_proj = contrib if attn_proj is None else attn_proj + contrib

        a = attn_proj + out_b[...]
        h = add_layer_norm(h + a, ln1_g, ln1_b)

        # ---- feed-forward sub-block ----
        f = jnp.maximum(mxu(h, ff1_wt[...]) + ff1_b[...], 0.0)
        f = mxu(f, ff2_wt[...]) + ff2_b[...]
        h = add_layer_norm(h + f, ln2_g, ln2_b)

    # per-batch mean over seq (PyTorch x.mean(dim=0) on seq-first layout), then fc head.
    pooled = jnp.concatenate(
        [jnp.mean(h[b * S:(b + 1) * S], axis=0, keepdims=True) for b in range(B)],
        axis=0)                                                          # (B, D) f32
    out = mxu(pooled, fc_wt[...]) + fc_b[...]                            # (B, 1) f32
    o_ref[...] = out.astype(o_ref.dtype)


# ------------------------------ wrapper / glue --------------------------------

def prepare_params(params):
    """One-time layout prep: matmul weights -> bf16 (K, N); biases/LN params -> f32 (1, N)."""
    def w(p):   # matmul weight, pre-transposed, bf16 MXU operand
        return jnp.asarray(p, jnp.bfloat16)

    def v(p):   # bias / LN param, kept f32 for the pointwise path
        return jnp.asarray(p, jnp.float32).reshape(1, -1)

    flat = [
        w(params["inp_w"].T), v(params["inp_b"]),
        w(params["fc_w"].T), v(params["fc_b"]),
    ]
    for layer in params["layers"]:
        flat += [
            w(layer["attn_in_w"].T), v(layer["attn_in_b"]),
            w(layer["attn_out_w"].T), v(layer["attn_out_b"]),
            w(layer["ff1_w"].T), v(layer["ff1_b"]),
            w(layer["ff2_w"].T), v(layer["ff2_b"]),
            v(layer["ln1_g"]), v(layer["ln1_b"]),
            v(layer["ln2_g"]), v(layer["ln2_b"]),
        ]
    return tuple(flat)


@functools.partial(jax.jit, static_argnames=("num_heads",))
def transformer_predictor_forward(x, flat_params, *, num_heads):
    """x: (B, S, input_dim) f32; flat_params: output of prepare_params."""
    B, S, input_dim = x.shape
    D = flat_params[1].shape[1]                    # inp_b: (1, D)
    FF = flat_params[8].shape[1]                   # ff1_wt: (D, FF)
    num_layers = (len(flat_params) - 4) // 12
    BS = B * S
    Dh = D // num_heads

    x2d = x.reshape(BS, input_dim)

    # Advisory cost estimate so XLA schedules surrounding HLO around the custom call.
    flops_per_layer = (2 * BS * D * 3 * D                      # qkv
                       + 2 * 2 * B * num_heads * S * S * Dh    # scores + p@v
                       + 2 * BS * D * D                        # out proj
                       + 2 * BS * D * FF + 2 * BS * FF * D)    # ff1 + ff2
    flops = 2 * BS * input_dim * D + num_layers * flops_per_layer + 2 * B * D
    transcendentals = num_layers * B * num_heads * S * S
    bytes_accessed = (int(x2d.size) * 4
                      + sum(int(p.size) * p.dtype.itemsize for p in flat_params)
                      + B * 4)

    kernel = functools.partial(
        _fused_forward_kernel, B=B, S=S, H=num_heads, num_layers=num_layers, eps=1e-5)

    # Single program, no grid: all inputs (x + ~0.6 MiB of bf16 weights) are DMA'd once
    # and stay VMEM-resident for the whole forward. VMEM budget is a non-issue here.
    out = pl.pallas_call(
        kernel,
        out_shape=jax.ShapeDtypeStruct((B, 1), jnp.float32),
        cost_estimate=pl.CostEstimate(
            flops=int(flops),
            transcendentals=int(transcendentals),
            bytes_accessed=int(bytes_accessed)),
    )(x2d, *flat_params)
    return out


# ------------------------------- init / reference -----------------------------

def init_params(key, input_dim, hidden_dim, num_heads, num_layers, ff_dim):
    def dense(k, out_d, in_d):
        kw, kb = jax.random.split(k)
        w = jax.random.normal(kw, (out_d, in_d), jnp.float32) / math.sqrt(in_d)
        b = jax.random.normal(kb, (out_d,), jnp.float32) * 0.01
        return w, b

    keys = jax.random.split(key, 2 + num_layers)
    params = {"hidden_dim": hidden_dim, "num_heads": num_heads}
    params["inp_w"], params["inp_b"] = dense(keys[0], hidden_dim, input_dim)
    params["fc_w"], params["fc_b"] = dense(keys[1], 1, hidden_dim)
    layers = []
    for l in range(num_layers):
        lk = jax.random.split(keys[2 + l], 4)
        layer = {}
        layer["attn_in_w"], layer["attn_in_b"] = dense(lk[0], 3 * hidden_dim, hidden_dim)
        layer["attn_out_w"], layer["attn_out_b"] = dense(lk[1], hidden_dim, hidden_dim)
        layer["ff1_w"], layer["ff1_b"] = dense(lk[2], ff_dim, hidden_dim)
        layer["ff2_w"], layer["ff2_b"] = dense(lk[3], hidden_dim, ff_dim)
        layer["ln1_g"] = jnp.ones((hidden_dim,), jnp.float32)
        layer["ln1_b"] = jnp.zeros((hidden_dim,), jnp.float32)
        layer["ln2_g"] = jnp.ones((hidden_dim,), jnp.float32)
        layer["ln2_b"] = jnp.zeros((hidden_dim,), jnp.float32)
        layers.append(layer)
    params["layers"] = layers
    return params


def _ln_ref(x, g, b, eps=1e-5):
    mu = x.mean(-1, keepdims=True)
    var = ((x - mu) ** 2).mean(-1, keepdims=True)
    return (x - mu) * jax.lax.rsqrt(var + eps) * g + b


def reference_forward(params, x):
    def lin(t, w, b):
        return t @ w.T + b
    B, S, _ = x.shape
    D = params["hidden_dim"]
    H = params["num_heads"]
    Dh = D // H
    h = lin(x, params["inp_w"], params["inp_b"])
    for layer in params["layers"]:
        qkv = lin(h, layer["attn_in_w"], layer["attn_in_b"])
        q, k, v = jnp.split(qkv, 3, axis=-1)
        q = q.reshape(B, S, H, Dh).transpose(0, 2, 1, 3)
        k = k.reshape(B, S, H, Dh).transpose(0, 2, 1, 3)
        v = v.reshape(B, S, H, Dh).transpose(0, 2, 1, 3)
        s = jnp.einsum("bhqd,bhkd->bhqk", q, k) / math.sqrt(Dh)
        p = jax.nn.softmax(s, axis=-1)
        a = jnp.einsum("bhqk,bhkd->bhqd", p, v).transpose(0, 2, 1, 3).reshape(B, S, D)
        a = lin(a, layer["attn_out_w"], layer["attn_out_b"])
        h = _ln_ref(h + a, layer["ln1_g"], layer["ln1_b"])
        f = jnp.maximum(lin(h, layer["ff1_w"], layer["ff1_b"]), 0.0)
        f = lin(f, layer["ff2_w"], layer["ff2_b"])
        h = _ln_ref(h + f, layer["ln2_g"], layer["ln2_b"])
    pooled = h.mean(axis=1)
    return lin(pooled, params["fc_w"], params["fc_b"])


# ------------------------------------ main -------------------------------------

if __name__ == "__main__":
    # Small shapes consistent with the module:
    #   TransformerPredictor(input_dim=16, hidden_dim=32, num_heads=4, num_layers=2)
    #   (dim_feedforward stays at the PyTorch default 2048)
    INPUT_DIM, HIDDEN, HEADS, LAYERS, FF = 16, 32, 4, 2, 2048
    B, S = 2, 8

    key = jax.random.PRNGKey(0)
    pkey, xkey = jax.random.split(key)
    params = init_params(pkey, INPUT_DIM, HIDDEN, HEADS, LAYERS, FF)
    x = jax.random.normal(xkey, (B, S, INPUT_DIM), jnp.float32)

    flat_params = prepare_params(params)               # one-time layout + bf16 prep

    out = transformer_predictor_forward(x, flat_params, num_heads=HEADS)
    out = jax.block_until_ready(out)
    assert out.shape == (B, 1), out.shape

    ref = reference_forward(params, x)
    # bf16 matmul operands (f32 accumulation) vs. a pure-f32 reference: 2e-2 tolerance
    # is comfortable headroom for the K=2048 FF2 contraction (measured error ~<1e-2).
    assert jnp.allclose(out, ref, atol=2e-2, rtol=2e-2), (out, ref)

    print("KERNEL_OK")
</pallas_src>

<mosaic_0001>
module attributes {stable_mosaic.version = 11 : i64} {
  func.func @_fused_forward_kernel(%arg0: memref<16x16xf32, #tpu.memory_space<vmem>>, %arg1: memref<16x32xbf16, #tpu.memory_space<vmem>>, %arg2: memref<1x32xf32, #tpu.memory_space<vmem>>, %arg3: memref<32x1xbf16, #tpu.memory_space<vmem>>, %arg4: memref<1x1xf32, #tpu.memory_space<vmem>>, %arg5: memref<32x96xbf16, #tpu.memory_space<vmem>>, %arg6: memref<1x96xf32, #tpu.memory_space<vmem>>, %arg7: memref<32x32xbf16, #tpu.memory_space<vmem>>, %arg8: memref<1x32xf32, #tpu.memory_space<vmem>>, %arg9: memref<32x2048xbf16, #tpu.memory_space<vmem>>, %arg10: memref<1x2048xf32, #tpu.memory_space<vmem>>, %arg11: memref<2048x32xbf16, #tpu.memory_space<vmem>>, %arg12: memref<1x32xf32, #tpu.memory_space<vmem>>, %arg13: memref<1x32xf32, #tpu.memory_space<vmem>>, %arg14: memref<1x32xf32, #tpu.memory_space<vmem>>, %arg15: memref<1x32xf32, #tpu.memory_space<vmem>>, %arg16: memref<1x32xf32, #tpu.memory_space<vmem>>, %arg17: memref<32x96xbf16, #tpu.memory_space<vmem>>, %arg18: memref<1x96xf32, #tpu.memory_space<vmem>>, %arg19: memref<32x32xbf16, #tpu.memory_space<vmem>>, %arg20: memref<1x32xf32, #tpu.memory_space<vmem>>, %arg21: memref<32x2048xbf16, #tpu.memory_space<vmem>>, %arg22: memref<1x2048xf32, #tpu.memory_space<vmem>>, %arg23: memref<2048x32xbf16, #tpu.memory_space<vmem>>, %arg24: memref<1x32xf32, #tpu.memory_space<vmem>>, %arg25: memref<1x32xf32, #tpu.memory_space<vmem>>, %arg26: memref<1x32xf32, #tpu.memory_space<vmem>>, %arg27: memref<1x32xf32, #tpu.memory_space<vmem>>, %arg28: memref<1x32xf32, #tpu.memory_space<vmem>>, %arg29: memref<2x1xf32, #tpu.memory_space<vmem>>) attributes {dimension_semantics = [], scalar_prefetch = 0 : i64, scratch_operands = 0 : i64, tpu.core_type = #tpu.core_type<tc>} {
    %c0 = arith.constant 0 : index
    %c0_0 = arith.constant 0 : index
    %0 = vector.load %arg0[%c0, %c0_0] : memref<16x16xf32, #tpu.memory_space<vmem>>, vector<16x16xf32>
    %c0_1 = arith.constant 0 : index
    %c0_2 = arith.constant 0 : index
    %1 = vector.load %arg1[%c0_1, %c0_2] : memref<16x32xbf16, #tpu.memory_space<vmem>>, vector<16x32xbf16>
    %2 = arith.truncf %0 : vector<16x16xf32> to vector<16x16xbf16>
    %cst = arith.constant dense<0.000000e+00> : vector<16x32xf32>
    %3 = tpu.matmul %2, %1, %cst {dimension_numbers = #tpu.dot_dimension_numbers<[1], [0], [0], [1], [0, 0, 1, 1], [], []>} : vector<16x16xbf16>, vector<16x32xbf16>, vector<16x32xf32> -> vector<16x32xf32>
    %c0_3 = arith.constant 0 : index
    %c0_4 = arith.constant 0 : index
    %4 = vector.load %arg2[%c0_3, %c0_4] : memref<1x32xf32, #tpu.memory_space<vmem>>, vector<1x32xf32>
    %5 = vector.broadcast %4 : vector<1x32xf32> to vector<16x32xf32>
    %6 = arith.addf %3, %5 : vector<16x32xf32>
    %c0_5 = arith.constant 0 : index
    %c0_6 = arith.constant 0 : index
    %7 = vector.load %arg5[%c0_5, %c0_6] : memref<32x96xbf16, #tpu.memory_space<vmem>>, vector<32x96xbf16>
    %8 = arith.truncf %6 : vector<16x32xf32> to vector<16x32xbf16>
    %cst_7 = arith.constant dense<0.000000e+00> : vector<16x96xf32>
    %9 = tpu.matmul %8, %7, %cst_7 {dimension_numbers = #tpu.dot_dimension_numbers<[1], [0], [0], [1], [0, 0, 1, 1], [], []>} : vector<16x32xbf16>, vector<32x96xbf16>, vector<16x96xf32> -> vector<16x96xf32>
    %c0_8 = arith.constant 0 : index
    %c0_9 = arith.constant 0 : index
    %10 = vector.load %arg6[%c0_8, %c0_9] : memref<1x96xf32, #tpu.memory_space<vmem>>, vector<1x96xf32>
    %11 = vector.broadcast %10 : vector<1x96xf32> to vector<16x96xf32>
    %12 = arith.addf %9, %11 : vector<16x96xf32>
    %13 = vector.extract_strided_slice %12 {offsets = [0, 0], sizes = [16, 8], strides = [1, 1]} : vector<16x96xf32> to vector<16x8xf32>
    %14 = vector.extract_strided_slice %12 {offsets = [0, 32], sizes = [16, 8], strides = [1, 1]} : vector<16x96xf32> to vector<16x8xf32>
    %15 = vector.extract_strided_slice %12 {offsets = [0, 64], sizes = [16, 8], strides = [1, 1]} : vector<16x96xf32> to vector<16x8xf32>
    %16 = vector.extract_strided_slice %13 {offsets = [0, 0], sizes = [8, 8], strides = [1, 1]} : vector<16x8xf32> to vector<8x8xf32>
    %17 = vector.extract_strided_slice %14 {offsets = [0, 0], sizes = [8, 8], strides = [1, 1]} : vector<16x8xf32> to vector<8x8xf32>
    %18 = vector.extract_strided_slice %15 {offsets = [0, 0], sizes = [8, 8], strides = [1, 1]} : vector<16x8xf32> to vector<8x8xf32>
    %19 = arith.truncf %16 : vector<8x8xf32> to vector<8x8xbf16>
    %20 = arith.truncf %17 : vector<8x8xf32> to vector<8x8xbf16>
    %cst_10 = arith.constant dense<0.000000e+00> : vector<8x8xf32>
    %21 = tpu.matmul %19, %20, %cst_10 {dimension_numbers = #tpu.dot_dimension_numbers<[1], [1], [0], [0], [0, 0, 1, 0], [], []>} : vector<8x8xbf16>, vector<8x8xbf16>, vector<8x8xf32> -> vector<8x8xf32>
    %cst_11 = arith.constant 0.353553385 : f32
    %22 = vector.broadcast %cst_11 : f32 to vector<8x8xf32>
    %23 = arith.mulf %21, %22 : vector<8x8xf32>
    %cst_12 = arith.constant dense<0xFF800000> : vector<8xf32>
    %24 = vector.multi_reduction <maximumf>, %23, %cst_12 [1] : vector<8x8xf32> to vector<8xf32>
    %25 = vector.shape_cast %24 : vector<8xf32> to vector<8x1xf32>
    %26 = vector.broadcast %25 : vector<8x1xf32> to vector<8x8xf32>
    %27 = arith.subf %23, %26 : vector<8x8xf32>
    %28 = math.exp %27 : vector<8x8xf32>
    %cst_13 = arith.constant dense<0.000000e+00> : vector<8xf32>
    %29 = vector.multi_reduction <add>, %28, %cst_13 [1] : vector<8x8xf32> to vector<8xf32>
    %30 = vector.shape_cast %29 : vector<8xf32> to vector<8x1xf32>
    %31 = tpu.reciprocal %30 {approx = true} : vector<8x1xf32> -> vector<8x1xf32>
    %32 = vector.broadcast %31 : vector<8x1xf32> to vector<8x8xf32>
    %33 = arith.mulf %28, %32 : vector<8x8xf32>
    %34 = arith.truncf %33 : vector<8x8xf32> to vector<8x8xbf16>
    %35 = arith.truncf %18 : vector<8x8xf32> to vector<8x8xbf16>
    %cst_14 = arith.constant dense<0.000000e+00> : vector<8x8xf32>
    %36 = tpu.matmul %34, %35, %cst_14 {dimension_numbers = #tpu.dot_dimension_numbers<[1], [0], [0], [1], [0, 0, 1, 1], [], []>} : vector<8x8xbf16>, vector<8x8xbf16>, vector<8x8xf32> -> vector<8x8xf32>
    %37 = vector.extract_strided_slice %13 {offsets = [8, 0], sizes = [8, 8], strides = [1, 1]} : vector<16x8xf32> to vector<8x8xf32>
    %38 = vector.extract_strided_slice %14 {offsets = [8, 0], sizes = [8, 8], strides = [1, 1]} : vector<16x8xf32> to vector<8x8xf32>
    %39 = vector.extract_strided_slice %15 {offsets = [8, 0], sizes = [8, 8], strides = [1, 1]} : vector<16x8xf32> to vector<8x8xf32>
    %40 = arith.truncf %37 : vector<8x8xf32> to vector<8x8xbf16>
    %41 = arith.truncf %38 : vector<8x8xf32> to vector<8x8xbf16>
    %cst_15 = arith.constant dense<0.000000e+00> : vector<8x8xf32>
    %42 = tpu.matmul %40, %41, %cst_15 {dimension_numbers = #tpu.dot_dimension_numbers<[1], [1], [0], [0], [0, 0, 1, 0], [], []>} : vector<8x8xbf16>, vector<8x8xbf16>, vector<8x8xf32> -> vector<8x8xf32>
    %cst_16 = arith.constant 0.353553385 : f32
    %43 = vector.broadcast %cst_16 : f32 to vector<8x8xf32>
    %44 = arith.mulf %42, %43 : vector<8x8xf32>
    %cst_17 = arith.constant dense<0xFF800000> : vector<8xf32>
    %45 = vector.multi_reduction <maximumf>, %44, %cst_17 [1] : vector<8x8xf32> to vector<8xf32>
    %46 = vector.shape_cast %45 : vector<8xf32> to vector<8x1xf32>
    %47 = vector.broadcast %46 : vector<8x1xf32> to vector<8x8xf32>
    %48 = arith.subf %44, %47 : vector<8x8xf32>
    %49 = math.exp %48 : vector<8x8xf32>
    %cst_18 = arith.constant dense<0.000000e+00> : vector<8xf32>
    %50 = vector.multi_reduction <add>, %49, %cst_18 [1] : vector<8x8xf32> to vector<8xf32>
    %51 = vector.shape_cast %50 : vector<8xf32> to vector<8x1xf32>
    %52 = tpu.reciprocal %51 {approx = true} : vector<8x1xf32> -> vector<8x1xf32>
    %53 = vector.broadcast %52 : vector<8x1xf32> to vector<8x8xf32>
    %54 = arith.mulf %49, %53 : vector<8x8xf32>
    %55 = arith.truncf %54 : vector<8x8xf32> to vector<8x8xbf16>
    %56 = arith.truncf %39 : vector<8x8xf32> to vector<8x8xbf16>
    %cst_19 = arith.constant dense<0.000000e+00> : vector<8x8xf32>
    %57 = tpu.matmul %55, %56, %cst_19 {dimension_numbers = #tpu.dot_dimension_numbers<[1], [0], [0], [1], [0, 0, 1, 1], [], []>} : vector<8x8xbf16>, vector<8x8xbf16>, vector<8x8xf32> -> vector<8x8xf32>
    %58 = tpu.concatenate %36, %57 in 0 : vector<8x8xf32>, vector<8x8xf32> -> vector<16x8xf32>
    %c0_20 = arith.constant 0 : index
    %c0_21 = arith.constant 0 : index
    %59 = vector.load %arg7[%c0_20, %c0_21] : memref<32x32xbf16, #tpu.memory_space<vmem>>, vector<8x32xbf16>
    %60 = arith.truncf %58 : vector<16x8xf32> to vector<16x8xbf16>
    %cst_22 = arith.constant dense<0.000000e+00> : vector<16x32xf32>
    %61 = tpu.matmul %60, %59, %cst_22 {dimension_numbers = #tpu.dot_dimension_numbers<[1], [0], [0], [1], [0, 0, 1, 1], [], []>} : vector<16x8xbf16>, vector<8x32xbf16>, vector<16x32xf32> -> vector<16x32xf32>
    %62 = vector.extract_strided_slice %12 {offsets = [0, 8], sizes = [16, 8], strides = [1, 1]} : vector<16x96xf32> to vector<16x8xf32>
    %63 = vector.extract_strided_slice %12 {offsets = [0, 40], sizes = [16, 8], strides = [1, 1]} : vector<16x96xf32> to vector<16x8xf32>
    %64 = vector.extract_strided_slice %12 {offsets = [0, 72], sizes = [16, 8], strides = [1, 1]} : vector<16x96xf32> to vector<16x8xf32>
    %65 = vector.extract_strided_slice %62 {offsets = [0, 0], sizes = [8, 8], strides = [1, 1]} : vector<16x8xf32> to vector<8x8xf32>
    %66 = vector.extract_strided_slice %63 {offsets = [0, 0], sizes = [8, 8], strides = [1, 1]} : vector<16x8xf32> to vector<8x8xf32>
    %67 = vector.extract_strided_slice %64 {offsets = [0, 0], sizes = [8, 8], strides = [1, 1]} : vector<16x8xf32> to vector<8x8xf32>
    %68 = arith.truncf %65 : vector<8x8xf32> to vector<8x8xbf16>
    %69 = arith.truncf %66 : vector<8x8xf32> to vector<8x8xbf16>
    %cst_23 = arith.constant dense<0.000000e+00> : vector<8x8xf32>
    %70 = tpu.matmul %68, %69, %cst_23 {dimension_numbers = #tpu.dot_dimension_numbers<[1], [1], [0], [0], [0, 0, 1, 0], [], []>} : vector<8x8xbf16>, vector<8x8xbf16>, vector<8x8xf32> -> vector<8x8xf32>
    %cst_24 = arith.constant 0.353553385 : f32
    %71 = vector.broadcast %cst_24 : f32 to vector<8x8xf32>
    %72 = arith.mulf %70, %71 : vector<8x8xf32>
    %cst_25 = arith.constant dense<0xFF800000> : vector<8xf32>
    %73 = vector.multi_reduction <maximumf>, %72, %cst_25 [1] : vector<8x8xf32> to vector<8xf32>
    %74 = vector.shape_cast %73 : vector<8xf32> to vector<8x1xf32>
    %75 = vector.broadcast %74 : vector<8x1xf32> to vector<8x8xf32>
    %76 = arith.subf %72, %75 : vector<8x8xf32>
    %77 = math.exp %76 : vector<8x8xf32>
    %cst_26 = arith.constant dense<0.000000e+00> : vector<8xf32>
    %78 = vector.multi_reduction <add>, %77, %cst_26 [1] : vector<8x8xf32> to vector<8xf32>
    %79 = vector.shape_cast %78 : vector<8xf32> to vector<8x1xf32>
    %80 = tpu.reciprocal %79 {approx = true} : vector<8x1xf32> -> vector<8x1xf32>
    %81 = vector.broadcast %80 : vector<8x1xf32> to vector<8x8xf32>
    %82 = arith.mulf %77, %81 : vector<8x8xf32>
    %83 = arith.truncf %82 : vector<8x8xf32> to vector<8x8xbf16>
    %84 = arith.truncf %67 : vector<8x8xf32> to vector<8x8xbf16>
    %cst_27 = arith.constant dense<0.000000e+00> : vector<8x8xf32>
    %85 = tpu.matmul %83, %84, %cst_27 {dimension_numbers = #tpu.dot_dimension_numbers<[1], [0], [0], [1], [0, 0, 1, 1], [], []>} : vector<8x8xbf16>, vector<8x8xbf16>, vector<8x8xf32> -> vector<8x8xf32>
    %86 = vector.extract_strided_slice %62 {offsets = [8, 0], sizes = [8, 8], strides = [1, 1]} : vector<16x8xf32> to vector<8x8xf32>
    %87 = vector.extract_strided_slice %63 {offsets = [8, 0], sizes = [8, 8], strides = [1, 1]} : vector<16x8xf32> to vector<8x8xf32>
    %88 = vector.extract_strided_slice %64 {offsets = [8, 0], sizes = [8, 8], strides = [1, 1]} : vector<16x8xf32> to vector<8x8xf32>
    %89 = arith.truncf %86 : vector<8x8xf32> to vector<8x8xbf16>
    %90 = arith.truncf %87 : vector<8x8xf32> to vector<8x8xbf16>
    %cst_28 = arith.constant dense<0.000000e+00> : vector<8x8xf32>
    %91 = tpu.matmul %89, %90, %cst_28 {dimension_numbers = #tpu.dot_dimension_numbers<[1], [1], [0], [0], [0, 0, 1, 0], [], []>} : vector<8x8xbf16>, vector<8x8xbf16>, vector<8x8xf32> -> vector<8x8xf32>
    %cst_29 = arith.constant 0.353553385 : f32
    %92 = vector.broadcast %cst_29 : f32 to vector<8x8xf32>
    %93 = arith.mulf %91, %92 : vector<8x8xf32>
    %cst_30 = arith.constant dense<0xFF800000> : vector<8xf32>
    %94 = vector.multi_reduction <maximumf>, %93, %cst_30 [1] : vector<8x8xf32> to vector<8xf32>
    %95 = vector.shape_cast %94 : vector<8xf32> to vector<8x1xf32>
    %96 = vector.broadcast %95 : vector<8x1xf32> to vector<8x8xf32>
    %97 = arith.subf %93, %96 : vector<8x8xf32>
    %98 = math.exp %97 : vector<8x8xf32>
    %cst_31 = arith.constant dense<0.000000e+00> : vector<8xf32>
    %99 = vector.multi_reduction <add>, %98, %cst_31 [1] : vector<8x8xf32> to vector<8xf32>
    %100 = vector.shape_cast %99 : vector<8xf32> to vector<8x1xf32>
    %101 = tpu.reciprocal %100 {approx = true} : vector<8x1xf32> -> vector<8x1xf32>
    %102 = vector.broadcast %101 : vector<8x1xf32> to vector<8x8xf32>
    %103 = arith.mulf %98, %102 : vector<8x8xf32>
    %104 = arith.truncf %103 : vector<8x8xf32> to vector<8x8xbf16>
    %105 = arith.truncf %88 : vector<8x8xf32> to vector<8x8xbf16>
    %cst_32 = arith.constant dense<0.000000e+00> : vector<8x8xf32>
    %106 = tpu.matmul %104, %105, %cst_32 {dimension_numbers = #tpu.dot_dimension_numbers<[1], [0], [0], [1], [0, 0, 1, 1], [], []>} : vector<8x8xbf16>, vector<8x8xbf16>, vector<8x8xf32> -> vector<8x8xf32>
    %107 = tpu.concatenate %85, %106 in 0 : vector<8x8xf32>, vector<8x8xf32> -> vector<16x8xf32>
    %c8 = arith.constant 8 : index
    %c0_33 = arith.constant 0 : index
    %108 = vector.load %arg7[%c8, %c0_33] : memref<32x32xbf16, #tpu.memory_space<vmem>>, vector<8x32xbf16>
    %109 = arith.truncf %107 : vector<16x8xf32> to vector<16x8xbf16>
    %cst_34 = arith.constant dense<0.000000e+00> : vector<16x32xf32>
    %110 = tpu.matmul %109, %108, %cst_34 {dimension_numbers = #tpu.dot_dimension_numbers<[1], [0], [0], [1], [0, 0, 1, 1], [], []>} : vector<16x8xbf16>, vector<8x32xbf16>, vector<16x32xf32> -> vector<16x32xf32>
    %111 = arith.addf %61, %110 : vector<16x32xf32>
    %112 = vector.extract_strided_slice %12 {offsets = [0, 16], sizes = [16, 8], strides = [1, 1]} : vector<16x96xf32> to vector<16x8xf32>
    %113 = vector.extract_strided_slice %12 {offsets = [0, 48], sizes = [16, 8], strides = [1, 1]} : vector<16x96xf32> to vector<16x8xf32>
    %114 = vector.extract_strided_slice %12 {offsets = [0, 80], sizes = [16, 8], strides = [1, 1]} : vector<16x96xf32> to vector<16x8xf32>
    %115 = vector.extract_strided_slice %112 {offsets = [0, 0], sizes = [8, 8], strides = [1, 1]} : vector<16x8xf32> to vector<8x8xf32>
    %116 = vector.extract_strided_slice %113 {offsets = [0, 0], sizes = [8, 8], strides = [1, 1]} : vector<16x8xf32> to vector<8x8xf32>
    %117 = vector.extract_strided_slice %114 {offsets = [0, 0], sizes = [8, 8], strides = [1, 1]} : vector<16x8xf32> to vector<8x8xf32>
    %118 = arith.truncf %115 : vector<8x8xf32> to vector<8x8xbf16>
    %119 = arith.truncf %116 : vector<8x8xf32> to vector<8x8xbf16>
    %cst_35 = arith.constant dense<0.000000e+00> : vector<8x8xf32>
    %120 = tpu.matmul %118, %119, %cst_35 {dimension_numbers = #tpu.dot_dimension_numbers<[1], [1], [0], [0], [0, 0, 1, 0], [], []>} : vector<8x8xbf16>, vector<8x8xbf16>, vector<8x8xf32> -> vector<8x8xf32>
    %cst_36 = arith.constant 0.353553385 : f32
    %121 = vector.broadcast %cst_36 : f32 to vector<8x8xf32>
    %122 = arith.mulf %120, %121 : vector<8x8xf32>
    %cst_37 = arith.constant dense<0xFF800000> : vector<8xf32>
    %123 = vector.multi_reduction <maximumf>, %122, %cst_37 [1] : vector<8x8xf32> to vector<8xf32>
    %124 = vector.shape_cast %123 : vector<8xf32> to vector<8x1xf32>
    %125 = vector.broadcast %124 : vector<8x1xf32> to vector<8x8xf32>
    %126 = arith.subf %122, %125 : vector<8x8xf32>
    %127 = math.exp %126 : vector<8x8xf32>
    %cst_38 = arith.constant dense<0.000000e+00> : vector<8xf32>
    %128 = vector.multi_reduction <add>, %127, %cst_38 [1] : vector<8x8xf32> to vector<8xf32>
    %129 = vector.shape_cast %128 : vector<8xf32> to vector<8x1xf32>
    %130 = tpu.reciprocal %129 {approx = true} : vector<8x1xf32> -> vector<8x1xf32>
    %131 = vector.broadcast %130 : vector<8x1xf32> to vector<8x8xf32>
    %132 = arith.mulf %127, %131 : vector<8x8xf32>
    %133 = arith.truncf %132 : vector<8x8xf32> to vector<8x8xbf16>
    %134 = arith.truncf %117 : vector<8x8xf32> to vector<8x8xbf16>
    %cst_39 = arith.constant dense<0.000000e+00> : vector<8x8xf32>
    %135 = tpu.matmul %133, %134, %cst_39 {dimension_numbers = #tpu.dot_dimension_numbers<[1], [0], [0], [1], [0, 0, 1, 1], [], []>} : vector<8x8xbf16>, vector<8x8xbf16>, vector<8x8xf32> -> vector<8x8xf32>
    %136 = vector.extract_strided_slice %112 {offsets = [8, 0], sizes = [8, 8], strides = [1, 1]} : vector<16x8xf32> to vector<8x8xf32>
    %137 = vector.extract_strided_slice %113 {offsets = [8, 0], sizes = [8, 8], strides = [1, 1]} : vector<16x8xf32> to vector<8x8xf32>
    %138 = vector.extract_strided_slice %114 {offsets = [8, 0], sizes = [8, 8], strides = [1, 1]} : vector<16x8xf32> to vector<8x8xf32>
    %139 = arith.truncf %136 : vector<8x8xf32> to vector<8x8xbf16>
    %140 = arith.truncf %137 : vector<8x8xf32> to vector<8x8xbf16>
    %cst_40 = arith.constant dense<0.000000e+00> : vector<8x8xf32>
    %141 = tpu.matmul %139, %140, %cst_40 {dimension_numbers = #tpu.dot_dimension_numbers<[1], [1], [0], [0], [0, 0, 1, 0], [], []>} : vector<8x8xbf16>, vector<8x8xbf16>, vector<8x8xf32> -> vector<8x8xf32>
    %cst_41 = arith.constant 0.353553385 : f32
    %142 = vector.broadcast %cst_41 : f32 to vector<8x8xf32>
    %143 = arith.mulf %141, %142 : vector<8x8xf32>
    %cst_42 = arith.constant dense<0xFF800000> : vector<8xf32>
    %144 = vector.multi_reduction <maximumf>, %143, %cst_42 [1] : vector<8x8xf32> to vector<8xf32>
    %145 = vector.shape_cast %144 : vector<8xf32> to vector<8x1xf32>
    %146 = vector.broadcast %145 : vector<8x1xf32> to vector<8x8xf32>
    %147 = arith.subf %143, %146 : vector<8x8xf32>
    %148 = math.exp %147 : vector<8x8xf32>
    %cst_43 = arith.constant dense<0.000000e+00> : vector<8xf32>
    %149 = vector.multi_reduction <add>, %148, %cst_43 [1] : vector<8x8xf32> to vector<8xf32>
    %150 = vector.shape_cast %149 : vector<8xf32> to vector<8x1xf32>
    %151 = tpu.reciprocal %150 {approx = true} : vector<8x1xf32> -> vector<8x1xf32>
    %152 = vector.broadcast %151 : vector<8x1xf32> to vector<8x8xf32>
    %153 = arith.mulf %148, %152 : vector<8x8xf32>
    %154 = arith.truncf %153 : vector<8x8xf32> to vector<8x8xbf16>
    %155 = arith.truncf %138 : vector<8x8xf32> to vector<8x8xbf16>
    %cst_44 = arith.constant dense<0.000000e+00> : vector<8x8xf32>
    %156 = tpu.matmul %154, %155, %cst_44 {dimension_numbers = #tpu.dot_dimension_numbers<[1], [0], [0], [1], [0, 0, 1, 1], [], []>} : vector<8x8xbf16>, vector<8x8xbf16>, vector<8x8xf32> -> vector<8x8xf32>
    %157 = tpu.concatenate %135, %156 in 0 : vector<8x8xf32>, vector<8x8xf32> -> vector<16x8xf32>
    %c16 = arith.constant 16 : index
    %c0_45 = arith.constant 0 : index
    %158 = vector.load %arg7[%c16, %c0_45] : memref<32x32xbf16, #tpu.memory_space<vmem>>, vector<8x32xbf16>
    %159 = arith.truncf %157 : vector<16x8xf32> to vector<16x8xbf16>
    %cst_46 = arith.constant dense<0.000000e+00> : vector<16x32xf32>
    %160 = tpu.matmul %159, %158, %cst_46 {dimension_numbers = #tpu.dot_dimension_numbers<[1], [0], [0], [1], [0, 0, 1, 1], [], []>} : vector<16x8xbf16>, vector<8x32xbf16>, vector<16x32xf32> -> vector<16x32xf32>
    %161 = arith.addf %111, %160 : vector<16x32xf32>
    %162 = vector.extract_strided_slice %12 {offsets = [0, 24], sizes = [16, 8], strides = [1, 1]} : vector<16x96xf32> to vector<16x8xf32>
    %163 = vector.extract_strided_slice %12 {offsets = [0, 56], sizes = [16, 8], strides = [1, 1]} : vector<16x96xf32> to vector<16x8xf32>
    %164 = vector.extract_strided_slice %12 {offsets = [0, 88], sizes = [16, 8], strides = [1, 1]} : vector<16x96xf32> to vector<16x8xf32>
    %165 = vector.extract_strided_slice %162 {offsets = [0, 0], sizes = [8, 8], strides = [1, 1]} : vector<16x8xf32> to vector<8x8xf32>
    %166 = vector.extract_strided_slice %163 {offsets = [0, 0], sizes = [8, 8], strides = [1, 1]} : vector<16x8xf32> to vector<8x8xf32>
    %167 = vector.extract_strided_slice %164 {offsets = [0, 0], sizes = [8, 8], strides = [1, 1]} : vector<16x8xf32> to vector<8x8xf32>
    %168 = arith.truncf %165 : vector<8x8xf32> to vector<8x8xbf16>
    %169 = arith.truncf %166 : vector<8x8xf32> to vector<8x8xbf16>
    %cst_47 = arith.constant dense<0.000000e+00> : vector<8x8xf32>
    %170 = tpu.matmul %168, %169, %cst_47 {dimension_numbers = #tpu.dot_dimension_numbers<[1], [1], [0], [0], [0, 0, 1, 0], [], []>} : vector<8x8xbf16>, vector<8x8xbf16>, vector<8x8xf32> -> vector<8x8xf32>
    %cst_48 = arith.constant 0.353553385 : f32
    %171 = vector.broadcast %cst_48 : f32 to vector<8x8xf32>
    %172 = arith.mulf %170, %171 : vector<8x8xf32>
    %cst_49 = arith.constant dense<0xFF800000> : vector<8xf32>
    %173 = vector.multi_reduction <maximumf>, %172, %cst_49 [1] : vector<8x8xf32> to vector<8xf32>
    %174 = vector.shape_cast %173 : vector<8xf32> to vector<8x1xf32>
    %175 = vector.broadcast %174 : vector<8x1xf32> to vector<8x8xf32>
    %176 = arith.subf %172, %175 : vector<8x8xf32>
    %177 = math.exp %176 : vector<8x8xf32>
    %cst_50 = arith.constant dense<0.000000e+00> : vector<8xf32>
    %178 = vector.multi_reduction <add>, %177, %cst_50 [1] : vector<8x8xf32> to vector<8xf32>
    %179 = vector.shape_cast %178 : vector<8xf32> to vector<8x1xf32>
    %180 = tpu.reciprocal %179 {approx = true} : vector<8x1xf32> -> vector<8x1xf32>
    %181 = vector.broadcast %180 : vector<8x1xf32> to vector<8x8xf32>
    %182 = arith.mulf %177, %181 : vector<8x8xf32>
    %183 = arith.truncf %182 : vector<8x8xf32> to vector<8x8xbf16>
    %184 = arith.truncf %167 : vector<8x8xf32> to vector<8x8xbf16>
    %cst_51 = arith.constant dense<0.000000e+00> : vector<8x8xf32>
    %185 = tpu.matmul %183, %184, %cst_51 {dimension_numbers = #tpu.dot_dimension_numbers<[1], [0], [0], [1], [0, 0, 1, 1], [], []>} : vector<8x8xbf16>, vector<8x8xbf16>, vector<8x8xf32> -> vector<8x8xf32>
    %186 = vector.extract_strided_slice %162 {offsets = [8, 0], sizes = [8, 8], strides = [1, 1]} : vector<16x8xf32> to vector<8x8xf32>
    %187 = vector.extract_strided_slice %163 {offsets = [8, 0], sizes = [8, 8], strides = [1, 1]} : vector<16x8xf32> to vector<8x8xf32>
    %188 = vector.extract_strided_slice %164 {offsets = [8, 0], sizes = [8, 8], strides = [1, 1]} : vector<16x8xf32> to vector<8x8xf32>
    %189 = arith.truncf %186 : vector<8x8xf32> to vector<8x8xbf16>
    %190 = arith.truncf %187 : vector<8x8xf32> to vector<8x8xbf16>
    %cst_52 = arith.constant dense<0.000000e+00> : vector<8x8xf32>
    %191 = tpu.matmul %189, %190, %cst_52 {dimension_numbers = #tpu.dot_dimension_numbers<[1], [1], [0], [0], [0, 0, 1, 0], [], []>} : vector<8x8xbf16>, vector<8x8xbf16>, vector<8x8xf32> -> vector<8x8xf32>
    %cst_53 = arith.constant 0.353553385 : f32
    %192 = vector.broadcast %cst_53 : f32 to vector<8x8xf32>
    %193 = arith.mulf %191, %192 : vector<8x8xf32>
    %cst_54 = arith.constant dense<0xFF800000> : vector<8xf32>
    %194 = vector.multi_reduction <maximumf>, %193, %cst_54 [1] : vector<8x8xf32> to vector<8xf32>
    %195 = vector.shape_cast %194 : vector<8xf32> to vector<8x1xf32>
    %196 = vector.broadcast %195 : vector<8x1xf32> to vector<8x8xf32>
    %197 = arith.subf %193, %196 : vector<8x8xf32>
    %198 = math.exp %197 : vector<8x8xf32>
    %cst_55 = arith.constant dense<0.000000e+00> : vector<8xf32>
    %199 = vector.multi_reduction <add>, %198, %cst_55 [1] : vector<8x8xf32> to vector<8xf32>
    %200 = vector.shape_cast %199 : vector<8xf32> to vector<8x1xf32>
    %201 = tpu.reciprocal %200 {approx = true} : vector<8x1xf32> -> vector<8x1xf32>
    %202 = vector.broadcast %201 : vector<8x1xf32> to vector<8x8xf32>
    %203 = arith.mulf %198, %202 : vector<8x8xf32>
    %204 = arith.truncf %203 : vector<8x8xf32> to vector<8x8xbf16>
    %205 = arith.truncf %188 : vector<8x8xf32> to vector<8x8xbf16>
    %cst_56 = arith.constant dense<0.000000e+00> : vector<8x8xf32>
    %206 = tpu.matmul %204, %205, %cst_56 {dimension_numbers = #tpu.dot_dimension_numbers<[1], [0], [0], [1], [0, 0, 1, 1], [], []>} : vector<8x8xbf16>, vector<8x8xbf16>, vector<8x8xf32> -> vector<8x8xf32>
    %207 = tpu.concatenate %185, %206 in 0 : vector<8x8xf32>, vector<8x8xf32> -> vector<16x8xf32>
    %c24 = arith.constant 24 : index
    %c0_57 = arith.constant 0 : index
    %208 = vector.load %arg7[%c24, %c0_57] : memref<32x32xbf16, #tpu.memory_space<vmem>>, vector<8x32xbf16>
    %209 = arith.truncf %207 : vector<16x8xf32> to vector<16x8xbf16>
    %cst_58 = arith.constant dense<0.000000e+00> : vector<16x32xf32>
    %210 = tpu.matmul %209, %208, %cst_58 {dimension_numbers = #tpu.dot_dimension_numbers<[1], [0], [0], [1], [0, 0, 1, 1], [], []>} : vector<16x8xbf16>, vector<8x32xbf16>, vector<16x32xf32> -> vector<16x32xf32>
    %211 = arith.addf %161, %210 : vector<16x32xf32>
    %c0_59 = arith.constant 0 : index
    %c0_60 = arith.constant 0 : index
    %212 = vector.load %arg8[%c0_59, %c0_60] : memref<1x32xf32, #tpu.memory_space<vmem>>, vector<1x32xf32>
    %213 = vector.broadcast %212 : vector<1x32xf32> to vector<16x32xf32>
    %214 = arith.addf %211, %213 : vector<16x32xf32>
    %215 = arith.addf %6, %214 : vector<16x32xf32>
    %cst_61 = arith.constant dense<0.000000e+00> : vector<16xf32>
    %216 = vector.multi_reduction <add>, %215, %cst_61 [1] : vector<16x32xf32> to vector<16xf32>
    %217 = vector.shape_cast %216 : vector<16xf32> to vector<16x1xf32>
    %cst_62 = arith.constant 3.200000e+01 : f32
    %218 = vector.broadcast %cst_62 : f32 to vector<16x1xf32>
    %219 = arith.divf %217, %218 : vector<16x1xf32>
    %220 = vector.broadcast %219 : vector<16x1xf32> to vector<16x32xf32>
    %221 = arith.subf %215, %220 : vector<16x32xf32>
    %222 = arith.mulf %221, %221 : vector<16x32xf32>
    %cst_63 = arith.constant dense<0.000000e+00> : vector<16xf32>
    %223 = vector.multi_reduction <add>, %222, %cst_63 [1] : vector<16x32xf32> to vector<16xf32>
    %224 = vector.shape_cast %223 : vector<16xf32> to vector<16x1xf32>
    %cst_64 = arith.constant 3.200000e+01 : f32
    %225 = vector.broadcast %cst_64 : f32 to vector<16x1xf32>
    %226 = arith.divf %224, %225 : vector<16x1xf32>
    %227 = vector.broadcast %219 : vector<16x1xf32> to vector<16x32xf32>
    %228 = arith.subf %215, %227 : vector<16x32xf32>
    %cst_65 = arith.constant 9.99999974E-6 : f32
    %229 = vector.broadcast %cst_65 : f32 to vector<16x1xf32>
    %230 = arith.addf %226, %229 : vector<16x1xf32>
    %231 = math.rsqrt %230 : vector<16x1xf32>
    %232 = vector.broadcast %231 : vector<16x1xf32> to vector<16x32xf32>
    %233 = arith.mulf %228, %232 : vector<16x32xf32>
    %c0_66 = arith.constant 0 : index
    %c0_67 = arith.constant 0 : index
    %234 = vector.load %arg13[%c0_66, %c0_67] : memref<1x32xf32, #tpu.memory_space<vmem>>, vector<1x32xf32>
    %235 = vector.broadcast %234 : vector<1x32xf32> to vector<16x32xf32>
    %236 = arith.mulf %233, %235 : vector<16x32xf32>
    %c0_68 = arith.constant 0 : index
    %c0_69 = arith.constant 0 : index
    %237 = vector.load %arg14[%c0_68, %c0_69] : memref<1x32xf32, #tpu.memory_space<vmem>>, vector<1x32xf32>
    %238 = vector.broadcast %237 : vector<1x32xf32> to vector<16x32xf32>
    %239 = arith.addf %236, %238 : vector<16x32xf32>
    %c0_70 = arith.constant 0 : index
    %c0_71 = arith.constant 0 : index
    %240 = vector.load %arg9[%c0_70, %c0_71] : memref<32x2048xbf16, #tpu.memory_space<vmem>>, vector<32x2048xbf16>
    %241 = arith.truncf %239 : vector<16x32xf32> to vector<16x32xbf16>
    %cst_72 = arith.constant dense<0.000000e+00> : vector<16x2048xf32>
    %242 = tpu.matmul %241, %240, %cst_72 {dimension_numbers = #tpu.dot_dimension_numbers<[1], [0], [0], [1], [0, 0, 1, 1], [], []>} : vector<16x32xbf16>, vector<32x2048xbf16>, vector<16x2048xf32> -> vector<16x2048xf32>
    %c0_73 = arith.constant 0 : index
    %c0_74 = arith.constant 0 : index
    %243 = vector.load %arg10[%c0_73, %c0_74] : memref<1x2048xf32, #tpu.memory_space<vmem>>, vector<1x2048xf32>
    %244 = vector.broadcast %243 : vector<1x2048xf32> to vector<16x2048xf32>
    %245 = arith.addf %242, %244 : vector<16x2048xf32>
    %cst_75 = arith.constant 0.000000e+00 : f32
    %246 = vector.broadcast %cst_75 : f32 to vector<16x2048xf32>
    %247 = arith.maximumf %245, %246 : vector<16x2048xf32>
    %c0_76 = arith.constant 0 : index
    %c0_77 = arith.constant 0 : index
    %248 = vector.load %arg11[%c0_76, %c0_77] : memref<2048x32xbf16, #tpu.memory_space<vmem>>, vector<2048x32xbf16>
    %249 = arith.truncf %247 : vector<16x2048xf32> to vector<16x2048xbf16>
    %cst_78 = arith.constant dense<0.000000e+00> : vector<16x32xf32>
    %250 = tpu.matmul %249, %248, %cst_78 {dimension_numbers = #tpu.dot_dimension_numbers<[1], [0], [0], [1], [0, 0, 1, 1], [], []>} : vector<16x2048xbf16>, vector<2048x32xbf16>, vector<16x32xf32> -> vector<16x32xf32>
    %c0_79 = arith.constant 0 : index
    %c0_80 = arith.constant 0 : index
    %251 = vector.load %arg12[%c0_79, %c0_80] : memref<1x32xf32, #tpu.memory_space<vmem>>, vector<1x32xf32>
    %252 = vector.broadcast %251 : vector<1x32xf32> to vector<16x32xf32>
    %253 = arith.addf %250, %252 : vector<16x32xf32>
    %254 = arith.addf %239, %253 : vector<16x32xf32>
    %cst_81 = arith.constant dense<0.000000e+00> : vector<16xf32>
    %255 = vector.multi_reduction <add>, %254, %cst_81 [1] : vector<16x32xf32> to vector<16xf32>
    %256 = vector.shape_cast %255 : vector<16xf32> to vector<16x1xf32>
    %cst_82 = arith.constant 3.200000e+01 : f32
    %257 = vector.broadcast %cst_82 : f32 to vector<16x1xf32>
    %258 = arith.divf %256, %257 : vector<16x1xf32>
    %259 = vector.broadcast %258 : vector<16x1xf32> to vector<16x32xf32>
    %260 = arith.subf %254, %259 : vector<16x32xf32>
    %261 = arith.mulf %260, %260 : vector<16x32xf32>
    %cst_83 = arith.constant dense<0.000000e+00> : vector<16xf32>
    %262 = vector.multi_reduction <add>, %261, %cst_83 [1] : vector<16x32xf32> to vector<16xf32>
    %263 = vector.shape_cast %262 : vector<16xf32> to vector<16x1xf32>
    %cst_84 = arith.constant 3.200000e+01 : f32
    %264 = vector.broadcast %cst_84 : f32 to vector<16x1xf32>
    %265 = arith.divf %263, %264 : vector<16x1xf32>
    %266 = vector.broadcast %258 : vector<16x1xf32> to vector<16x32xf32>
    %267 = arith.subf %254, %266 : vector<16x32xf32>
    %cst_85 = arith.constant 9.99999974E-6 : f32
    %268 = vector.broadcast %cst_85 : f32 to vector<16x1xf32>
    %269 = arith.addf %265, %268 : vector<16x1xf32>
    %270 = math.rsqrt %269 : vector<16x1xf32>
    %271 = vector.broadcast %270 : vector<16x1xf32> to vector<16x32xf32>
    %272 = arith.mulf %267, %271 : vector<16x32xf32>
    %c0_86 = arith.constant 0 : index
    %c0_87 = arith.constant 0 : index
    %273 = vector.load %arg15[%c0_86, %c0_87] : memref<1x32xf32, #tpu.memory_space<vmem>>, vector<1x32xf32>
    %274 = vector.broadcast %273 : vector<1x32xf32> to vector<16x32xf32>
    %275 = arith.mulf %272, %274 : vector<16x32xf32>
    %c0_88 = arith.constant 0 : index
    %c0_89 = arith.constant 0 : index
    %276 = vector.load %arg16[%c0_88, %c0_89] : memref<1x32xf32, #tpu.memory_space<vmem>>, vector<1x32xf32>
    %277 = vector.broadcast %276 : vector<1x32xf32> to vector<16x32xf32>
    %278 = arith.addf %275, %277 : vector<16x32xf32>
    %c0_90 = arith.constant 0 : index
    %c0_91 = arith.constant 0 : index
    %279 = vector.load %arg17[%c0_90, %c0_91] : memref<32x96xbf16, #tpu.memory_space<vmem>>, vector<32x96xbf16>
    %280 = arith.truncf %278 : vector<16x32xf32> to vector<16x32xbf16>
    %cst_92 = arith.constant dense<0.000000e+00> : vector<16x96xf32>
    %281 = tpu.matmul %280, %279, %cst_92 {dimension_numbers = #tpu.dot_dimension_numbers<[1], [0], [0], [1], [0, 0, 1, 1], [], []>} : vector<16x32xbf16>, vector<32x96xbf16>, vector<16x96xf32> -> vector<16x96xf32>
    %c0_93 = arith.constant 0 : index
    %c0_94 = arith.constant 0 : index
    %282 = vector.load %arg18[%c0_93, %c0_94] : memref<1x96xf32, #tpu.memory_space<vmem>>, vector<1x96xf32>
    %283 = vector.broadcast %282 : vector<1x96xf32> to vector<16x96xf32>
    %284 = arith.addf %281, %283 : vector<16x96xf32>
    %285 = vector.extract_strided_slice %284 {offsets = [0, 0], sizes = [16, 8], strides = [1, 1]} : vector<16x96xf32> to vector<16x8xf32>
    %286 = vector.extract_strided_slice %284 {offsets = [0, 32], sizes = [16, 8], strides = [1, 1]} : vector<16x96xf32> to vector<16x8xf32>
    %287 = vector.extract_strided_slice %284 {offsets = [0, 64], sizes = [16, 8], strides = [1, 1]} : vector<16x96xf32> to vector<16x8xf32>
    %288 = vector.extract_strided_slice %285 {offsets = [0, 0], sizes = [8, 8], strides = [1, 1]} : vector<16x8xf32> to vector<8x8xf32>
    %289 = vector.extract_strided_slice %286 {offsets = [0, 0], sizes = [8, 8], strides = [1, 1]} : vector<16x8xf32> to vector<8x8xf32>
    %290 = vector.extract_strided_slice %287 {offsets = [0, 0], sizes = [8, 8], strides = [1, 1]} : vector<16x8xf32> to vector<8x8xf32>
    %291 = arith.truncf %288 : vector<8x8xf32> to vector<8x8xbf16>
    %292 = arith.truncf %289 : vector<8x8xf32> to vector<8x8xbf16>
    %cst_95 = arith.constant dense<0.000000e+00> : vector<8x8xf32>
    %293 = tpu.matmul %291, %292, %cst_95 {dimension_numbers = #tpu.dot_dimension_numbers<[1], [1], [0], [0], [0, 0, 1, 0], [], []>} : vector<8x8xbf16>, vector<8x8xbf16>, vector<8x8xf32> -> vector<8x8xf32>
    %cst_96 = arith.constant 0.353553385 : f32
    %294 = vector.broadcast %cst_96 : f32 to vector<8x8xf32>
    %295 = arith.mulf %293, %294 : vector<8x8xf32>
    %cst_97 = arith.constant dense<0xFF800000> : vector<8xf32>
    %296 = vector.multi_reduction <maximumf>, %295, %cst_97 [1] : vector<8x8xf32> to vector<8xf32>
    %297 = vector.shape_cast %296 : vector<8xf32> to vector<8x1xf32>
    %298 = vector.broadcast %297 : vector<8x1xf32> to vector<8x8xf32>
    %299 = arith.subf %295, %298 : vector<8x8xf32>
    %300 = math.exp %299 : vector<8x8xf32>
    %cst_98 = arith.constant dense<0.000000e+00> : vector<8xf32>
    %301 = vector.multi_reduction <add>, %300, %cst_98 [1] : vector<8x8xf32> to vector<8xf32>
    %302 = vector.shape_cast %301 : vector<8xf32> to vector<8x1xf32>
    %303 = tpu.reciprocal %302 {approx = true} : vector<8x1xf32> -> vector<8x1xf32>
    %304 = vector.broadcast %303 : vector<8x1xf32> to vector<8x8xf32>
    %305 = arith.mulf %300, %304 : vector<8x8xf32>
    %306 = arith.truncf %305 : vector<8x8xf32> to vector<8x8xbf16>
    %307 = arith.truncf %290 : vector<8x8xf32> to vector<8x8xbf16>
    %cst_99 = arith.constant dense<0.000000e+00> : vector<8x8xf32>
    %308 = tpu.matmul %306, %307, %cst_99 {dimension_numbers = #tpu.dot_dimension_numbers<[1], [0], [0], [1], [0, 0, 1, 1], [], []>} : vector<8x8xbf16>, vector<8x8xbf16>, vector<8x8xf32> -> vector<8x8xf32>
    %309 = vector.extract_strided_slice %285 {offsets = [8, 0], sizes = [8, 8], strides = [1, 1]} : vector<16x8xf32> to vector<8x8xf32>
    %310 = vector.extract_strided_slice %286 {offsets = [8, 0], sizes = [8, 8], strides = [1, 1]} : vector<16x8xf32> to vector<8x8xf32>
    %311 = vector.extract_strided_slice %287 {offsets = [8, 0], sizes = [8, 8], strides = [1, 1]} : vector<16x8xf32> to vector<8x8xf32>
    %312 = arith.truncf %309 : vector<8x8xf32> to vector<8x8xbf16>
    %313 = arith.truncf %310 : vector<8x8xf32> to vector<8x8xbf16>
    %cst_100 = arith.constant dense<0.000000e+00> : vector<8x8xf32>
    %314 = tpu.matmul %312, %313, %cst_100 {dimension_numbers = #tpu.dot_dimension_numbers<[1], [1], [0], [0], [0, 0, 1, 0], [], []>} : vector<8x8xbf16>, vector<8x8xbf16>, vector<8x8xf32> -> vector<8x8xf32>
    %cst_101 = arith.constant 0.353553385 : f32
    %315 = vector.broadcast %cst_101 : f32 to vector<8x8xf32>
    %316 = arith.mulf %314, %315 : vector<8x8xf32>
    %cst_102 = arith.constant dense<0xFF800000> : vector<8xf32>
    %317 = vector.multi_reduction <maximumf>, %316, %cst_102 [1] : vector<8x8xf32> to vector<8xf32>
    %318 = vector.shape_cast %317 : vector<8xf32> to vector<8x1xf32>
    %319 = vector.broadcast %318 : vector<8x1xf32> to vector<8x8xf32>
    %320 = arith.subf %316, %319 : vector<8x8xf32>
    %321 = math.exp %320 : vector<8x8xf32>
    %cst_103 = arith.constant dense<0.000000e+00> : vector<8xf32>
    %322 = vector.multi_reduction <add>, %321, %cst_103 [1] : vector<8x8xf32> to vector<8xf32>
    %323 = vector.shape_cast %322 : vector<8xf32> to vector<8x1xf32>
    %324 = tpu.reciprocal %323 {approx = true} : vector<8x1xf32> -> vector<8x1xf32>
    %325 = vector.broadcast %324 : vector<8x1xf32> to vector<8x8xf32>
    %326 = arith.mulf %321, %325 : vector<8x8xf32>
    %327 = arith.truncf %326 : vector<8x8xf32> to vector<8x8xbf16>
    %328 = arith.truncf %311 : vector<8x8xf32> to vector<8x8xbf16>
    %cst_104 = arith.constant dense<0.000000e+00> : vector<8x8xf32>
    %329 = tpu.matmul %327, %328, %cst_104 {dimension_numbers = #tpu.dot_dimension_numbers<[1], [0], [0], [1], [0, 0, 1, 1], [], []>} : vector<8x8xbf16>, vector<8x8xbf16>, vector<8x8xf32> -> vector<8x8xf32>
    %330 = tpu.concatenate %308, %329 in 0 : vector<8x8xf32>, vector<8x8xf32> -> vector<16x8xf32>
    %c0_105 = arith.constant 0 : index
    %c0_106 = arith.constant 0 : index
    %331 = vector.load %arg19[%c0_105, %c0_106] : memref<32x32xbf16, #tpu.memory_space<vmem>>, vector<8x32xbf16>
    %332 = arith.truncf %330 : vector<16x8xf32> to vector<16x8xbf16>
    %cst_107 = arith.constant dense<0.000000e+00> : vector<16x32xf32>
    %333 = tpu.matmul %332, %331, %cst_107 {dimension_numbers = #tpu.dot_dimension_numbers<[1], [0], [0], [1], [0, 0, 1, 1], [], []>} : vector<16x8xbf16>, vector<8x32xbf16>, vector<16x32xf32> -> vector<16x32xf32>
    %334 = vector.extract_strided_slice %284 {offsets = [0, 8], sizes = [16, 8], strides = [1, 1]} : vector<16x96xf32> to vector<16x8xf32>
    %335 = vector.extract_strided_slice %284 {offsets = [0, 40], sizes = [16, 8], strides = [1, 1]} : vector<16x96xf32> to vector<16x8xf32>
    %336 = vector.extract_strided_slice %284 {offsets = [0, 72], sizes = [16, 8], strides = [1, 1]} : vector<16x96xf32> to vector<16x8xf32>
    %337 = vector.extract_strided_slice %334 {offsets = [0, 0], sizes = [8, 8], strides = [1, 1]} : vector<16x8xf32> to vector<8x8xf32>
    %338 = vector.extract_strided_slice %335 {offsets = [0, 0], sizes = [8, 8], strides = [1, 1]} : vector<16x8xf32> to vector<8x8xf32>
    %339 = vector.extract_strided_slice %336 {offsets = [0, 0], sizes = [8, 8], strides = [1, 1]} : vector<16x8xf32> to vector<8x8xf32>
    %340 = arith.truncf %337 : vector<8x8xf32> to vector<8x8xbf16>
    %341 = arith.truncf %338 : vector<8x8xf32> to vector<8x8xbf16>
    %cst_108 = arith.constant dense<0.000000e+00> : vector<8x8xf32>
    %342 = tpu.matmul %340, %341, %cst_108 {dimension_numbers = #tpu.dot_dimension_numbers<[1], [1], [0], [0], [0, 0, 1, 0], [], []>} : vector<8x8xbf16>, vector<8x8xbf16>, vector<8x8xf32> -> vector<8x8xf32>
    %cst_109 = arith.constant 0.353553385 : f32
    %343 = vector.broadcast %cst_109 : f32 to vector<8x8xf32>
    %344 = arith.mulf %342, %343 : vector<8x8xf32>
    %cst_110 = arith.constant dense<0xFF800000> : vector<8xf32>
    %345 = vector.multi_reduction <maximumf>, %344, %cst_110 [1] : vector<8x8xf32> to vector<8xf32>
    %346 = vector.shape_cast %345 : vector<8xf32> to vector<8x1xf32>
    %347 = vector.broadcast %346 : vector<8x1xf32> to vector<8x8xf32>
    %348 = arith.subf %344, %347 : vector<8x8xf32>
    %349 = math.exp %348 : vector<8x8xf32>
    %cst_111 = arith.constant dense<0.000000e+00> : vector<8xf32>
    %350 = vector.multi_reduction <add>, %349, %cst_111 [1] : vector<8x8xf32> to vector<8xf32>
    %351 = vector.shape_cast %350 : vector<8xf32> to vector<8x1xf32>
    %352 = tpu.reciprocal %351 {approx = true} : vector<8x1xf32> -> vector<8x1xf32>
    %353 = vector.broadcast %352 : vector<8x1xf32> to vector<8x8xf32>
    %354 = arith.mulf %349, %353 : vector<8x8xf32>
    %355 = arith.truncf %354 : vector<8x8xf32> to vector<8x8xbf16>
    %356 = arith.truncf %339 : vector<8x8xf32> to vector<8x8xbf16>
    %cst_112 = arith.constant dense<0.000000e+00> : vector<8x8xf32>
    %357 = tpu.matmul %355, %356, %cst_112 {dimension_numbers = #tpu.dot_dimension_numbers<[1], [0], [0], [1], [0, 0, 1, 1], [], []>} : vector<8x8xbf16>, vector<8x8xbf16>, vector<8x8xf32> -> vector<8x8xf32>
    %358 = vector.extract_strided_slice %334 {offsets = [8, 0], sizes = [8, 8], strides = [1, 1]} : vector<16x8xf32> to vector<8x8xf32>
    %359 = vector.extract_strided_slice %335 {offsets = [8, 0], sizes = [8, 8], strides = [1, 1]} : vector<16x8xf32> to vector<8x8xf32>
    %360 = vector.extract_strided_slice %336 {offsets = [8, 0], sizes = [8, 8], strides = [1, 1]} : vector<16x8xf32> to vector<8x8xf32>
    %361 = arith.truncf %358 : vector<8x8xf32> to vector<8x8xbf16>
    %362 = arith.truncf %359 : vector<8x8xf32> to vector<8x8xbf16>
    %cst_113 = arith.constant dense<0.000000e+00> : vector<8x8xf32>
    %363 = tpu.matmul %361, %362, %cst_113 {dimension_numbers = #tpu.dot_dimension_numbers<[1], [1], [0], [0], [0, 0, 1, 0], [], []>} : vector<8x8xbf16>, vector<8x8xbf16>, vector<8x8xf32> -> vector<8x8xf32>
    %cst_114 = arith.constant 0.353553385 : f32
    %364 = vector.broadcast %cst_114 : f32 to vector<8x8xf32>
    %365 = arith.mulf %363, %364 : vector<8x8xf32>
    %cst_115 = arith.constant dense<0xFF800000> : vector<8xf32>
    %366 = vector.multi_reduction <maximumf>, %365, %cst_115 [1] : vector<8x8xf32> to vector<8xf32>
    %367 = vector.shape_cast %366 : vector<8xf32> to vector<8x1xf32>
    %368 = vector.broadcast %367 : vector<8x1xf32> to vector<8x8xf32>
    %369 = arith.subf %365, %368 : vector<8x8xf32>
    %370 = math.exp %369 : vector<8x8xf32>
    %cst_116 = arith.constant dense<0.000000e+00> : vector<8xf32>
    %371 = vector.multi_reduction <add>, %370, %cst_116 [1] : vector<8x8xf32> to vector<8xf32>
    %372 = vector.shape_cast %371 : vector<8xf32> to vector<8x1xf32>
    %373 = tpu.reciprocal %372 {approx = true} : vector<8x1xf32> -> vector<8x1xf32>
    %374 = vector.broadcast %373 : vector<8x1xf32> to vector<8x8xf32>
    %375 = arith.mulf %370, %374 : vector<8x8xf32>
    %376 = arith.truncf %375 : vector<8x8xf32> to vector<8x8xbf16>
    %377 = arith.truncf %360 : vector<8x8xf32> to vector<8x8xbf16>
    %cst_117 = arith.constant dense<0.000000e+00> : vector<8x8xf32>
    %378 = tpu.matmul %376, %377, %cst_117 {dimension_numbers = #tpu.dot_dimension_numbers<[1], [0], [0], [1], [0, 0, 1, 1], [], []>} : vector<8x8xbf16>, vector<8x8xbf16>, vector<8x8xf32> -> vector<8x8xf32>
    %379 = tpu.concatenate %357, %378 in 0 : vector<8x8xf32>, vector<8x8xf32> -> vector<16x8xf32>
    %c8_118 = arith.constant 8 : index
    %c0_119 = arith.constant 0 : index
    %380 = vector.load %arg19[%c8_118, %c0_119] : memref<32x32xbf16, #tpu.memory_space<vmem>>, vector<8x32xbf16>
    %381 = arith.truncf %379 : vector<16x8xf32> to vector<16x8xbf16>
    %cst_120 = arith.constant dense<0.000000e+00> : vector<16x32xf32>
    %382 = tpu.matmul %381, %380, %cst_120 {dimension_numbers = #tpu.dot_dimension_numbers<[1], [0], [0], [1], [0, 0, 1, 1], [], []>} : vector<16x8xbf16>, vector<8x32xbf16>, vector<16x32xf32> -> vector<16x32xf32>
    %383 = arith.addf %333, %382 : vector<16x32xf32>
    %384 = vector.extract_strided_slice %284 {offsets = [0, 16], sizes = [16, 8], strides = [1, 1]} : vector<16x96xf32> to vector<16x8xf32>
    %385 = vector.extract_strided_slice %284 {offsets = [0, 48], sizes = [16, 8], strides = [1, 1]} : vector<16x96xf32> to vector<16x8xf32>
    %386 = vector.extract_strided_slice %284 {offsets = [0, 80], sizes = [16, 8], strides = [1, 1]} : vector<16x96xf32> to vector<16x8xf32>
    %387 = vector.extract_strided_slice %384 {offsets = [0, 0], sizes = [8, 8], strides = [1, 1]} : vector<16x8xf32> to vector<8x8xf32>
    %388 = vector.extract_strided_slice %385 {offsets = [0, 0], sizes = [8, 8], strides = [1, 1]} : vector<16x8xf32> to vector<8x8xf32>
    %389 = vector.extract_strided_slice %386 {offsets = [0, 0], sizes = [8, 8], strides = [1, 1]} : vector<16x8xf32> to vector<8x8xf32>
    %390 = arith.truncf %387 : vector<8x8xf32> to vector<8x8xbf16>
    %391 = arith.truncf %388 : vector<8x8xf32> to vector<8x8xbf16>
    %cst_121 = arith.constant dense<0.000000e+00> : vector<8x8xf32>
    %392 = tpu.matmul %390, %391, %cst_121 {dimension_numbers = #tpu.dot_dimension_numbers<[1], [1], [0], [0], [0, 0, 1, 0], [], []>} : vector<8x8xbf16>, vector<8x8xbf16>, vector<8x8xf32> -> vector<8x8xf32>
    %cst_122 = arith.constant 0.353553385 : f32
    %393 = vector.broadcast %cst_122 : f32 to vector<8x8xf32>
    %394 = arith.mulf %392, %393 : vector<8x8xf32>
    %cst_123 = arith.constant dense<0xFF800000> : vector<8xf32>
    %395 = vector.multi_reduction <maximumf>, %394, %cst_123 [1] : vector<8x8xf32> to vector<8xf32>
    %396 = vector.shape_cast %395 : vector<8xf32> to vector<8x1xf32>
    %397 = vector.broadcast %396 : vector<8x1xf32> to vector<8x8xf32>
    %398 = arith.subf %394, %397 : vector<8x8xf32>
    %399 = math.exp %398 : vector<8x8xf32>
    %cst_124 = arith.constant dense<0.000000e+00> : vector<8xf32>
    %400 = vector.multi_reduction <add>, %399, %cst_124 [1] : vector<8x8xf32> to vector<8xf32>
    %401 = vector.shape_cast %400 : vector<8xf32> to vector<8x1xf32>
    %402 = tpu.reciprocal %401 {approx = true} : vector<8x1xf32> -> vector<8x1xf32>
    %403 = vector.broadcast %402 : vector<8x1xf32> to vector<8x8xf32>
    %404 = arith.mulf %399, %403 : vector<8x8xf32>
    %405 = arith.truncf %404 : vector<8x8xf32> to vector<8x8xbf16>
    %406 = arith.truncf %389 : vector<8x8xf32> to vector<8x8xbf16>
    %cst_125 = arith.constant dense<0.000000e+00> : vector<8x8xf32>
    %407 = tpu.matmul %405, %406, %cst_125 {dimension_numbers = #tpu.dot_dimension_numbers<[1], [0], [0], [1], [0, 0, 1, 1], [], []>} : vector<8x8xbf16>, vector<8x8xbf16>, vector<8x8xf32> -> vector<8x8xf32>
    %408 = vector.extract_strided_slice %384 {offsets = [8, 0], sizes = [8, 8], strides = [1, 1]} : vector<16x8xf32> to vector<8x8xf32>
    %409 = vector.extract_strided_slice %385 {offsets = [8, 0], sizes = [8, 8], strides = [1, 1]} : vector<16x8xf32> to vector<8x8xf32>
    %410 = vector.extract_strided_slice %386 {offsets = [8, 0], sizes = [8, 8], strides = [1, 1]} : vector<16x8xf32> to vector<8x8xf32>
    %411 = arith.truncf %408 : vector<8x8xf32> to vector<8x8xbf16>
    %412 = arith.truncf %409 : vector<8x8xf32> to vector<8x8xbf16>
    %cst_126 = arith.constant dense<0.000000e+00> : vector<8x8xf32>
    %413 = tpu.matmul %411, %412, %cst_126 {dimension_numbers = #tpu.dot_dimension_numbers<[1], [1], [0], [0], [0, 0, 1, 0], [], []>} : vector<8x8xbf16>, vector<8x8xbf16>, vector<8x8xf32> -> vector<8x8xf32>
    %cst_127 = arith.constant 0.353553385 : f32
    %414 = vector.broadcast %cst_127 : f32 to vector<8x8xf32>
    %415 = arith.mulf %413, %414 : vector<8x8xf32>
    %cst_128 = arith.constant dense<0xFF800000> : vector<8xf32>
    %416 = vector.multi_reduction <maximumf>, %415, %cst_128 [1] : vector<8x8xf32> to vector<8xf32>
    %417 = vector.shape_cast %416 : vector<8xf32> to vector<8x1xf32>
    %418 = vector.broadcast %417 : vector<8x1xf32> to vector<8x8xf32>
    %419 = arith.subf %415, %418 : vector<8x8xf32>
    %420 = math.exp %419 : vector<8x8xf32>
    %cst_129 = arith.constant dense<0.000000e+00> : vector<8xf32>
    %421 = vector.multi_reduction <add>, %420, %cst_129 [1] : vector<8x8xf32> to vector<8xf32>
    %422 = vector.shape_cast %421 : vector<8xf32> to vector<8x1xf32>
    %423 = tpu.reciprocal %422 {approx = true} : vector<8x1xf32> -> vector<8x1xf32>
    %424 = vector.broadcast %423 : vector<8x1xf32> to vector<8x8xf32>
    %425 = arith.mulf %420, %424 : vector<8x8xf32>
    %426 = arith.truncf %425 : vector<8x8xf32> to vector<8x8xbf16>
    %427 = arith.truncf %410 : vector<8x8xf32> to vector<8x8xbf16>
    %cst_130 = arith.constant dense<0.000000e+00> : vector<8x8xf32>
    %428 = tpu.matmul %426, %427, %cst_130 {dimension_numbers = #tpu.dot_dimension_numbers<[1], [0], [0], [1], [0, 0, 1, 1], [], []>} : vector<8x8xbf16>, vector<8x8xbf16>, vector<8x8xf32> -> vector<8x8xf32>
    %429 = tpu.concatenate %407, %428 in 0 : vector<8x8xf32>, vector<8x8xf32> -> vector<16x8xf32>
    %c16_131 = arith.constant 16 : index
    %c0_132 = arith.constant 0 : index
    %430 = vector.load %arg19[%c16_131, %c0_132] : memref<32x32xbf16, #tpu.memory_space<vmem>>, vector<8x32xbf16>
    %431 = arith.truncf %429 : vector<16x8xf32> to vector<16x8xbf16>
    %cst_133 = arith.constant dense<0.000000e+00> : vector<16x32xf32>
    %432 = tpu.matmul %431, %430, %cst_133 {dimension_numbers = #tpu.dot_dimension_numbers<[1], [0], [0], [1], [0, 0, 1, 1], [], []>} : vector<16x8xbf16>, vector<8x32xbf16>, vector<16x32xf32> -> vector<16x32xf32>
    %433 = arith.addf %383, %432 : vector<16x32xf32>
    %434 = vector.extract_strided_slice %284 {offsets = [0, 24], sizes = [16, 8], strides = [1, 1]} : vector<16x96xf32> to vector<16x8xf32>
    %435 = vector.extract_strided_slice %284 {offsets = [0, 56], sizes = [16, 8], strides = [1, 1]} : vector<16x96xf32> to vector<16x8xf32>
    %436 = vector.extract_strided_slice %284 {offsets = [0, 88], sizes = [16, 8], strides = [1, 1]} : vector<16x96xf32> to vector<16x8xf32>
    %437 = vector.extract_strided_slice %434 {offsets = [0, 0], sizes = [8, 8], strides = [1, 1]} : vector<16x8xf32> to vector<8x8xf32>
    %438 = vector.extract_strided_slice %435 {offsets = [0, 0], sizes = [8, 8], strides = [1, 1]} : vector<16x8xf32> to vector<8x8xf32>
    %439 = vector.extract_strided_slice %436 {offsets = [0, 0], sizes = [8, 8], strides = [1, 1]} : vector<16x8xf32> to vector<8x8xf32>
    %440 = arith.truncf %437 : vector<8x8xf32> to vector<8x8xbf16>
    %441 = arith.truncf %438 : vector<8x8xf32> to vector<8x8xbf16>
    %cst_134 = arith.constant dense<0.000000e+00> : vector<8x8xf32>
    %442 = tpu.matmul %440, %441, %cst_134 {dimension_numbers = #tpu.dot_dimension_numbers<[1], [1], [0], [0], [0, 0, 1, 0], [], []>} : vector<8x8xbf16>, vector<8x8xbf16>, vector<8x8xf32> -> vector<8x8xf32>
    %cst_135 = arith.constant 0.353553385 : f32
    %443 = vector.broadcast %cst_135 : f32 to vector<8x8xf32>
    %444 = arith.mulf %442, %443 : vector<8x8xf32>
    %cst_136 = arith.constant dense<0xFF800000> : vector<8xf32>
    %445 = vector.multi_reduction <maximumf>, %444, %cst_136 [1] : vector<8x8xf32> to vector<8xf32>
    %446 = vector.shape_cast %445 : vector<8xf32> to vector<8x1xf32>
    %447 = vector.broadcast %446 : vector<8x1xf32> to vector<8x8xf32>
    %448 = arith.subf %444, %447 : vector<8x8xf32>
    %449 = math.exp %448 : vector<8x8xf32>
    %cst_137 = arith.constant dense<0.000000e+00> : vector<8xf32>
    %450 = vector.multi_reduction <add>, %449, %cst_137 [1] : vector<8x8xf32> to vector<8xf32>
    %451 = vector.shape_cast %450 : vector<8xf32> to vector<8x1xf32>
    %452 = tpu.reciprocal %451 {approx = true} : vector<8x1xf32> -> vector<8x1xf32>
    %453 = vector.broadcast %452 : vector<8x1xf32> to vector<8x8xf32>
    %454 = arith.mulf %449, %453 : vector<8x8xf32>
    %455 = arith.truncf %454 : vector<8x8xf32> to vector<8x8xbf16>
    %456 = arith.truncf %439 : vector<8x8xf32> to vector<8x8xbf16>
    %cst_138 = arith.constant dense<0.000000e+00> : vector<8x8xf32>
    %457 = tpu.matmul %455, %456, %cst_138 {dimension_numbers = #tpu.dot_dimension_numbers<[1], [0], [0], [1], [0, 0, 1, 1], [], []>} : vector<8x8xbf16>, vector<8x8xbf16>, vector<8x8xf32> -> vector<8x8xf32>
    %458 = vector.extract_strided_slice %434 {offsets = [8, 0], sizes = [8, 8], strides = [1, 1]} : vector<16x8xf32> to vector<8x8xf32>
    %459 = vector.extract_strided_slice %435 {offsets = [8, 0], sizes = [8, 8], strides = [1, 1]} : vector<16x8xf32> to vector<8x8xf32>
    %460 = vector.extract_strided_slice %436 {offsets = [8, 0], sizes = [8, 8], strides = [1, 1]} : vector<16x8xf32> to vector<8x8xf32>
    %461 = arith.truncf %458 : vector<8x8xf32> to vector<8x8xbf16>
    %462 = arith.truncf %459 : vector<8x8xf32> to vector<8x8xbf16>
    %cst_139 = arith.constant dense<0.000000e+00> : vector<8x8xf32>
    %463 = tpu.matmul %461, %462, %cst_139 {dimension_numbers = #tpu.dot_dimension_numbers<[1], [1], [0], [0], [0, 0, 1, 0], [], []>} : vector<8x8xbf16>, vector<8x8xbf16>, vector<8x8xf32> -> vector<8x8xf32>
    %cst_140 = arith.constant 0.353553385 : f32
    %464 = vector.broadcast %cst_140 : f32 to vector<8x8xf32>
    %465 = arith.mulf %463, %464 : vector<8x8xf32>
    %cst_141 = arith.constant dense<0xFF800000> : vector<8xf32>
    %466 = vector.multi_reduction <maximumf>, %465, %cst_141 [1] : vector<8x8xf32> to vector<8xf32>
    %467 = vector.shape_cast %466 : vector<8xf32> to vector<8x1xf32>
    %468 = vector.broadcast %467 : vector<8x1xf32> to vector<8x8xf32>
    %469 = arith.subf %465, %468 : vector<8x8xf32>
    %470 = math.exp %469 : vector<8x8xf32>
    %cst_142 = arith.constant dense<0.000000e+00> : vector<8xf32>
    %471 = vector.multi_reduction <add>, %470, %cst_142 [1] : vector<8x8xf32> to vector<8xf32>
    %472 = vector.shape_cast %471 : vector<8xf32> to vector<8x1xf32>
    %473 = tpu.reciprocal %472 {approx = true} : vector<8x1xf32> -> vector<8x1xf32>
    %474 = vector.broadcast %473 : vector<8x1xf32> to vector<8x8xf32>
    %475 = arith.mulf %470, %474 : vector<8x8xf32>
    %476 = arith.truncf %475 : vector<8x8xf32> to vector<8x8xbf16>
    %477 = arith.truncf %460 : vector<8x8xf32> to vector<8x8xbf16>
    %cst_143 = arith.constant dense<0.000000e+00> : vector<8x8xf32>
    %478 = tpu.matmul %476, %477, %cst_143 {dimension_numbers = #tpu.dot_dimension_numbers<[1], [0], [0], [1], [0, 0, 1, 1], [], []>} : vector<8x8xbf16>, vector<8x8xbf16>, vector<8x8xf32> -> vector<8x8xf32>
    %479 = tpu.concatenate %457, %478 in 0 : vector<8x8xf32>, vector<8x8xf32> -> vector<16x8xf32>
    %c24_144 = arith.constant 24 : index
    %c0_145 = arith.constant 0 : index
    %480 = vector.load %arg19[%c24_144, %c0_145] : memref<32x32xbf16, #tpu.memory_space<vmem>>, vector<8x32xbf16>
    %481 = arith.truncf %479 : vector<16x8xf32> to vector<16x8xbf16>
    %cst_146 = arith.constant dense<0.000000e+00> : vector<16x32xf32>
    %482 = tpu.matmul %481, %480, %cst_146 {dimension_numbers = #tpu.dot_dimension_numbers<[1], [0], [0], [1], [0, 0, 1, 1], [], []>} : vector<16x8xbf16>, vector<8x32xbf16>, vector<16x32xf32> -> vector<16x32xf32>
    %483 = arith.addf %433, %482 : vector<16x32xf32>
    %c0_147 = arith.constant 0 : index
    %c0_148 = arith.constant 0 : index
    %484 = vector.load %arg20[%c0_147, %c0_148] : memref<1x32xf32, #tpu.memory_space<vmem>>, vector<1x32xf32>
    %485 = vector.broadcast %484 : vector<1x32xf32> to vector<16x32xf32>
    %486 = arith.addf %483, %485 : vector<16x32xf32>
    %487 = arith.addf %278, %486 : vector<16x32xf32>
    %cst_149 = arith.constant dense<0.000000e+00> : vector<16xf32>
    %488 = vector.multi_reduction <add>, %487, %cst_149 [1] : vector<16x32xf32> to vector<16xf32>
    %489 = vector.shape_cast %488 : vector<16xf32> to vector<16x1xf32>
    %cst_150 = arith.constant 3.200000e+01 : f32
    %490 = vector.broadcast %cst_150 : f32 to vector<16x1xf32>
    %491 = arith.divf %489, %490 : vector<16x1xf32>
    %492 = vector.broadcast %491 : vector<16x1xf32> to vector<16x32xf32>
    %493 = arith.subf %487, %492 : vector<16x32xf32>
    %494 = arith.mulf %493, %493 : vector<16x32xf32>
    %cst_151 = arith.constant dense<0.000000e+00> : vector<16xf32>
    %495 = vector.multi_reduction <add>, %494, %cst_151 [1] : vector<16x32xf32> to vector<16xf32>
    %496 = vector.shape_cast %495 : vector<16xf32> to vector<16x1xf32>
    %cst_152 = arith.constant 3.200000e+01 : f32
    %497 = vector.broadcast %cst_152 : f32 to vector<16x1xf32>
    %498 = arith.divf %496, %497 : vector<16x1xf32>
    %499 = vector.broadcast %491 : vector<16x1xf32> to vector<16x32xf32>
    %500 = arith.subf %487, %499 : vector<16x32xf32>
    %cst_153 = arith.constant 9.99999974E-6 : f32
    %501 = vector.broadcast %cst_153 : f32 to vector<16x1xf32>
    %502 = arith.addf %498, %501 : vector<16x1xf32>
    %503 = math.rsqrt %502 : vector<16x1xf32>
    %504 = vector.broadcast %503 : vector<16x1xf32> to vector<16x32xf32>
    %505 = arith.mulf %500, %504 : vector<16x32xf32>
    %c0_154 = arith.constant 0 : index
    %c0_155 = arith.constant 0 : index
    %506 = vector.load %arg25[%c0_154, %c0_155] : memref<1x32xf32, #tpu.memory_space<vmem>>, vector<1x32xf32>
    %507 = vector.broadcast %506 : vector<1x32xf32> to vector<16x32xf32>
    %508 = arith.mulf %505, %507 : vector<16x32xf32>
    %c0_156 = arith.constant 0 : index
    %c0_157 = arith.constant 0 : index
    %509 = vector.load %arg26[%c0_156, %c0_157] : memref<1x32xf32, #tpu.memory_space<vmem>>, vector<1x32xf32>
    %510 = vector.broadcast %509 : vector<1x32xf32> to vector<16x32xf32>
    %511 = arith.addf %508, %510 : vector<16x32xf32>
    %c0_158 = arith.constant 0 : index
    %c0_159 = arith.constant 0 : index
    %512 = vector.load %arg21[%c0_158, %c0_159] : memref<32x2048xbf16, #tpu.memory_space<vmem>>, vector<32x2048xbf16>
    %513 = arith.truncf %511 : vector<16x32xf32> to vector<16x32xbf16>
    %cst_160 = arith.constant dense<0.000000e+00> : vector<16x2048xf32>
    %514 = tpu.matmul %513, %512, %cst_160 {dimension_numbers = #tpu.dot_dimension_numbers<[1], [0], [0], [1], [0, 0, 1, 1], [], []>} : vector<16x32xbf16>, vector<32x2048xbf16>, vector<16x2048xf32> -> vector<16x2048xf32>
    %c0_161 = arith.constant 0 : index
    %c0_162 = arith.constant 0 : index
    %515 = vector.load %arg22[%c0_161, %c0_162] : memref<1x2048xf32, #tpu.memory_space<vmem>>, vector<1x2048xf32>
    %516 = vector.broadcast %515 : vector<1x2048xf32> to vector<16x2048xf32>
    %517 = arith.addf %514, %516 : vector<16x2048xf32>
    %cst_163 = arith.constant 0.000000e+00 : f32
    %518 = vector.broadcast %cst_163 : f32 to vector<16x2048xf32>
    %519 = arith.maximumf %517, %518 : vector<16x2048xf32>
    %c0_164 = arith.constant 0 : index
    %c0_165 = arith.constant 0 : index
    %520 = vector.load %arg23[%c0_164, %c0_165] : memref<2048x32xbf16, #tpu.memory_space<vmem>>, vector<2048x32xbf16>
    %521 = arith.truncf %519 : vector<16x2048xf32> to vector<16x2048xbf16>
    %cst_166 = arith.constant dense<0.000000e+00> : vector<16x32xf32>
    %522 = tpu.matmul %521, %520, %cst_166 {dimension_numbers = #tpu.dot_dimension_numbers<[1], [0], [0], [1], [0, 0, 1, 1], [], []>} : vector<16x2048xbf16>, vector<2048x32xbf16>, vector<16x32xf32> -> vector<16x32xf32>
    %c0_167 = arith.constant 0 : index
    %c0_168 = arith.constant 0 : index
    %523 = vector.load %arg24[%c0_167, %c0_168] : memref<1x32xf32, #tpu.memory_space<vmem>>, vector<1x32xf32>
    %524 = vector.broadcast %523 : vector<1x32xf32> to vector<16x32xf32>
    %525 = arith.addf %522, %524 : vector<16x32xf32>
    %526 = arith.addf %511, %525 : vector<16x32xf32>
    %cst_169 = arith.constant dense<0.000000e+00> : vector<16xf32>
    %527 = vector.multi_reduction <add>, %526, %cst_169 [1] : vector<16x32xf32> to vector<16xf32>
    %528 = vector.shape_cast %527 : vector<16xf32> to vector<16x1xf32>
    %cst_170 = arith.constant 3.200000e+01 : f32
    %529 = vector.broadcast %cst_170 : f32 to vector<16x1xf32>
    %530 = arith.divf %528, %529 : vector<16x1xf32>
    %531 = vector.broadcast %530 : vector<16x1xf32> to vector<16x32xf32>
    %532 = arith.subf %526, %531 : vector<16x32xf32>
    %533 = arith.mulf %532, %532 : vector<16x32xf32>
    %cst_171 = arith.constant dense<0.000000e+00> : vector<16xf32>
    %534 = vector.multi_reduction <add>, %533, %cst_171 [1] : vector<16x32xf32> to vector<16xf32>
    %535 = vector.shape_cast %534 : vector<16xf32> to vector<16x1xf32>
    %cst_172 = arith.constant 3.200000e+01 : f32
    %536 = vector.broadcast %cst_172 : f32 to vector<16x1xf32>
    %537 = arith.divf %535, %536 : vector<16x1xf32>
    %538 = vector.broadcast %530 : vector<16x1xf32> to vector<16x32xf32>
    %539 = arith.subf %526, %538 : vector<16x32xf32>
    %cst_173 = arith.constant 9.99999974E-6 : f32
    %540 = vector.broadcast %cst_173 : f32 to vector<16x1xf32>
    %541 = arith.addf %537, %540 : vector<16x1xf32>
    %542 = math.rsqrt %541 : vector<16x1xf32>
    %543 = vector.broadcast %542 : vector<16x1xf32> to vector<16x32xf32>
    %544 = arith.mulf %539, %543 : vector<16x32xf32>
    %c0_174 = arith.constant 0 : index
    %c0_175 = arith.constant 0 : index
    %545 = vector.load %arg27[%c0_174, %c0_175] : memref<1x32xf32, #tpu.memory_space<vmem>>, vector<1x32xf32>
    %546 = vector.broadcast %545 : vector<1x32xf32> to vector<16x32xf32>
    %547 = arith.mulf %544, %546 : vector<16x32xf32>
    %c0_176 = arith.constant 0 : index
    %c0_177 = arith.constant 0 : index
    %548 = vector.load %arg28[%c0_176, %c0_177] : memref<1x32xf32, #tpu.memory_space<vmem>>, vector<1x32xf32>
    %549 = vector.broadcast %548 : vector<1x32xf32> to vector<16x32xf32>
    %550 = arith.addf %547, %549 : vector<16x32xf32>
    %551 = vector.extract_strided_slice %550 {offsets = [0, 0], sizes = [8, 32], strides = [1, 1]} : vector<16x32xf32> to vector<8x32xf32>
    %cst_178 = arith.constant dense<0.000000e+00> : vector<32xf32>
    %552 = vector.multi_reduction <add>, %551, %cst_178 [0] : vector<8x32xf32> to vector<32xf32>
    %553 = vector.shape_cast %552 : vector<32xf32> to vector<1x32xf32>
    %cst_179 = arith.constant 8.000000e+00 : f32
    %554 = vector.broadcast %cst_179 : f32 to vector<1x32xf32>
    %555 = arith.divf %553, %554 : vector<1x32xf32>
    %556 = vector.extract_strided_slice %550 {offsets = [8, 0], sizes = [8, 32], strides = [1, 1]} : vector<16x32xf32> to vector<8x32xf32>
    %cst_180 = arith.constant dense<0.000000e+00> : vector<32xf32>
    %557 = vector.multi_reduction <add>, %556, %cst_180 [0] : vector<8x32xf32> to vector<32xf32>
    %558 = vector.shape_cast %557 : vector<32xf32> to vector<1x32xf32>
    %cst_181 = arith.constant 8.000000e+00 : f32
    %559 = vector.broadcast %cst_181 : f32 to vector<1x32xf32>
    %560 = arith.divf %558, %559 : vector<1x32xf32>
    %561 = tpu.concatenate %555, %560 in 0 : vector<1x32xf32>, vector<1x32xf32> -> vector<2x32xf32>
    %c0_182 = arith.constant 0 : index
    %c0_183 = arith.constant 0 : index
    %562 = vector.load %arg3[%c0_182, %c0_183] : memref<32x1xbf16, #tpu.memory_space<vmem>>, vector<32x1xbf16>
    %563 = arith.truncf %561 : vector<2x32xf32> to vector<2x32xbf16>
    %cst_184 = arith.constant dense<0.000000e+00> : vector<2x1xf32>
    %564 = tpu.matmul %563, %562, %cst_184 {dimension_numbers = #tpu.dot_dimension_numbers<[1], [0], [0], [1], [0, 0, 1, 1], [], []>} : vector<2x32xbf16>, vector<32x1xbf16>, vector<2x1xf32> -> vector<2x1xf32>
    %c0_185 = arith.constant 0 : index
    %c0_186 = arith.constant 0 : index
    %565 = vector.load %arg4[%c0_185, %c0_186] : memref<1x1xf32, #tpu.memory_space<vmem>>, vector<1x1xf32>
    %566 = vector.broadcast %565 : vector<1x1xf32> to vector<2x1xf32>
    %567 = arith.addf %564, %566 : vector<2x1xf32>
    %c0_187 = arith.constant 0 : index
    %c0_188 = arith.constant 0 : index
    %568 = vector.load %arg29[%c0_187, %c0_188] : memref<2x1xf32, #tpu.memory_space<vmem>>, vector<2x1xf32>
    tpu.vector_store %arg29[%c0_187, %c0_188], %567 {strides = array<i32>} : memref<2x1xf32, #tpu.memory_space<vmem>>, vector<2x1xf32>,
    return
  }
}

</mosaic_0001>

<llo_original>
// kernel: transformer_predictor_forward.1
$region0: #{transformer_predictor_forward.1}
  #allocation0 [shape = 'u32[]', space=smem, size = 0x4, offset = 0x4, fixed_abs, tag = 'smem constant byte address 0x4 - core index']
  #allocation1 [shape = 'u32[72,128]{1,0:T(1,128)}', space=vmem, size = 0x9000, scoped, tag = 'internal scratch']
  #allocation2 [shape = 'f32[1,1]{1,0:T(1,128)S(1)}', space=vmem, size = 0x200, scoped, tag = 'scoped memory for transformer_predictor_forward.1']
  %s0 = inlined_call_operand.smem [shape: u32[30], index: -1, kind: input, shape index: {}]
  %s1 = sld [smem:[%s0]]
  %s2 = scalar_lea.smem %s0, 1
  %s3 = sld [smem:[%s2]]
  %s4 = scalar_lea.smem %s0, 2
  %s5 = sld [smem:[%s4]]
  %s6 = scalar_lea.smem %s0, 3
  %s7 = sld [smem:[%s6]]
  %s8 = scalar_lea.smem %s0, 4
  %s9 = sld [smem:[%s8]]
  %s10 = scalar_lea.smem %s0, 5
  %s11 = sld [smem:[%s10]]
  %s12 = scalar_lea.smem %s0, 6
  %s13 = sld [smem:[%s12]]
  %s14 = scalar_lea.smem %s0, 7
  %s15 = sld [smem:[%s14]]
  %s16 = scalar_lea.smem %s0, 8
  %s17 = sld [smem:[%s16]]
  %s18 = scalar_lea.smem %s0, 9
  %s19 = sld [smem:[%s18]]
  %s20 = scalar_lea.smem %s0, 10
  %s21 = sld [smem:[%s20]]
  %s22 = scalar_lea.smem %s0, 11
  %s23 = sld [smem:[%s22]]
  %s24 = scalar_lea.smem %s0, 12
  %s25 = sld [smem:[%s24]]
  %s26 = scalar_lea.smem %s0, 13
  %s27 = sld [smem:[%s26]]
  %s28 = scalar_lea.smem %s0, 14
  %s29 = sld [smem:[%s28]]
  %s30 = scalar_lea.smem %s0, 15
  %s31 = sld [smem:[%s30]]
  %s32 = scalar_lea.smem %s0, 16
  %s33 = sld [smem:[%s32]]
  %s34 = scalar_lea.smem %s0, 17
  %s35 = sld [smem:[%s34]]
  %s36 = scalar_lea.smem %s0, 18
  %s37 = sld [smem:[%s36]]
  %s38 = scalar_lea.smem %s0, 19
  %s39 = sld [smem:[%s38]]
  %s40 = scalar_lea.smem %s0, 20
  %s41 = sld [smem:[%s40]]
  %s42 = scalar_lea.smem %s0, 21
  %s43 = sld [smem:[%s42]]
  %s44 = scalar_lea.smem %s0, 22
  %s45 = sld [smem:[%s44]]
  %s46 = scalar_lea.smem %s0, 23
  %s47 = sld [smem:[%s46]]
  %s48 = scalar_lea.smem %s0, 24
  %s49 = sld [smem:[%s48]]
  %s50 = scalar_lea.smem %s0, 25
  %s51 = sld [smem:[%s50]]
  %s52 = scalar_lea.smem %s0, 26
  %s53 = sld [smem:[%s52]]
  %s54 = scalar_lea.smem %s0, 27
  %s55 = sld [smem:[%s54]]
  %s56 = scalar_lea.smem %s0, 28
  %s57 = sld [smem:[%s56]]
  %s58 = scalar_lea.smem %s0, 29
  %s59 = sld [smem:[%s58]]
  %s60 = sld [smem:[#allocation0]]
  $region126: #{transformer_predictor_forward.1} parent=0
    _
  %s62 = ssub.s32 1, %s60
  %s63 = scalar_select 0, %s62, %s60
  %v64 = vstv %s9
  %65 = vst [vmem:[#allocation2] sm:$0x1] %v64
  // Predicated region
  $region2: #{transformer_predictor_forward.1} parent=0 // pred_check
    _
  $region3: #{transformer_predictor_forward.1} parent=0 // pred_check_branch
    %67 = sbr.rel (0) target = $region5
  $region4: #{transformer_predictor_forward.1} parent=0 // pred_region
    _
  $region5: #{transformer_predictor_forward.1} parent=0 // pred_fallthru
    _
  // Predicated region
  $region6: #{transformer_predictor_forward.1} parent=0 // pred_check
    _
  $region7: #{transformer_predictor_forward.1} parent=0 // pred_check_branch
    %69 = sbr.rel (0) target = $region9
  $region8: #{transformer_predictor_forward.1} parent=0 // pred_region
    _
  $region9: #{transformer_predictor_forward.1} parent=0 // pred_fallthru
    _
  // Predicated region
  $region10: #{transformer_predictor_forward.1} parent=0 // pred_check
    _
  $region11: #{transformer_predictor_forward.1} parent=0 // pred_check_branch
    %71 = sbr.rel (0) target = $region13
  $region12: #{transformer_predictor_forward.1} parent=0 // pred_region
    _
  $region13: #{transformer_predictor_forward.1} parent=0 // pred_fallthru
    _
  // Predicated region
  $region14: #{transformer_predictor_forward.1} parent=0 // pred_check
    _
  $region15: #{transformer_predictor_forward.1} parent=0 // pred_check_branch
    %73 = sbr.rel (0) target = $region17
  $region16: #{transformer_predictor_forward.1} parent=0 // pred_region
    _
  $region17: #{transformer_predictor_forward.1} parent=0 // pred_fallthru
    _
  // Predicated region
  $region18: #{transformer_predictor_forward.1} parent=0 // pred_check
    _
  $region19: #{transformer_predictor_forward.1} parent=0 // pred_check_branch
    %75 = sbr.rel (0) target = $region21
  $region20: #{transformer_predictor_forward.1} parent=0 // pred_region
    _
  $region21: #{transformer_predictor_forward.1} parent=0 // pred_fallthru
    _
  // Predicated region
  $region22: #{transformer_predictor_forward.1} parent=0 // pred_check
    _
  $region23: #{transformer_predictor_forward.1} parent=0 // pred_check_branch
    %77 = sbr.rel (0) target = $region25
  $region24: #{transformer_predictor_forward.1} parent=0 // pred_region
    _
  $region25: #{transformer_predictor_forward.1} parent=0 // pred_fallthru
    _
  // Predicated region
  $region26: #{transformer_predictor_forward.1} parent=0 // pred_check
    _
  $region27: #{transformer_predictor_forward.1} parent=0 // pred_check_branch
    %79 = sbr.rel (0) target = $region29
  $region28: #{transformer_predictor_forward.1} parent=0 // pred_region
    _
  $region29: #{transformer_predictor_forward.1} parent=0 // pred_fallthru
    _
  // Predicated region
  $region30: #{transformer_predictor_forward.1} parent=0 // pred_check
    _
  $region31: #{transformer_predictor_forward.1} parent=0 // pred_check_branch
    %81 = sbr.rel (0) target = $region33
  $region32: #{transformer_predictor_forward.1} parent=0 // pred_region
    _
  $region33: #{transformer_predictor_forward.1} parent=0 // pred_fallthru
    _
  // Predicated region
  $region34: #{transformer_predictor_forward.1} parent=0 // pred_check
    _
  $region35: #{transformer_predictor_forward.1} parent=0 // pred_check_branch
    %83 = sbr.rel (0) target = $region37
  $region36: #{transformer_predictor_forward.1} parent=0 // pred_region
    _
  $region37: #{transformer_predictor_forward.1} parent=0 // pred_fallthru
    _
  // Predicated region
  $region38: #{transformer_predictor_forward.1} parent=0 // pred_check
    _
  $region39: #{transformer_predictor_forward.1} parent=0 // pred_check_branch
    %85 = sbr.rel (0) target = $region41
  $region40: #{transformer_predictor_forward.1} parent=0 // pred_region
    _
  $region41: #{transformer_predictor_forward.1} parent=0 // pred_fallthru
    _
  // Predicated region
  $region42: #{transformer_predictor_forward.1} parent=0 // pred_check
    _
  $region43: #{transformer_predictor_forward.1} parent=0 // pred_check_branch
    %87 = sbr.rel (0) target = $region45
  $region44: #{transformer_predictor_forward.1} parent=0 // pred_region
    _
  $region45: #{transformer_predictor_forward.1} parent=0 // pred_fallthru
    _
  // Predicated region
  $region46: #{transformer_predictor_forward.1} parent=0 // pred_check
    _
  $region47: #{transformer_predictor_forward.1} parent=0 // pred_check_branch
    %89 = sbr.rel (0) target = $region49
  $region48: #{transformer_predictor_forward.1} parent=0 // pred_region
    _
  $region49: #{transformer_predictor_forward.1} parent=0 // pred_fallthru
    _
  // Predicated region
  $region50: #{transformer_predictor_forward.1} parent=0 // pred_check
    _
  $region51: #{transformer_predictor_forward.1} parent=0 // pred_check_branch
    %91 = sbr.rel (0) target = $region53
  $region52: #{transformer_predictor_forward.1} parent=0 // pred_region
    _
  $region53: #{transformer_predictor_forward.1} parent=0 // pred_fallthru
    _
  // Predicated region
  $region54: #{transformer_predictor_forward.1} parent=0 // pred_check
    _
  $region55: #{transformer_predictor_forward.1} parent=0 // pred_check_branch
    %93 = sbr.rel (0) target = $region57
  $region56: #{transformer_predictor_forward.1} parent=0 // pred_region
    _
  $region57: #{transformer_predictor_forward.1} parent=0 // pred_fallthru
    _
  // Predicated region
  $region58: #{transformer_predictor_forward.1} parent=0 // pred_check
    _
  $region59: #{transformer_predictor_forward.1} parent=0 // pred_check_branch
    %95 = sbr.rel (0) target = $region61
  $region60: #{transformer_predictor_forward.1} parent=0 // pred_region
    _
  $region61: #{transformer_predictor_forward.1} parent=0 // pred_fallthru
    _
  // Predicated region
  $region62: #{transformer_predictor_forward.1} parent=0 // pred_check
    _
  $region63: #{transformer_predictor_forward.1} parent=0 // pred_check_branch
    %97 = sbr.rel (0) target = $region65
  $region64: #{transformer_predictor_forward.1} parent=0 // pred_region
    _
  $region65: #{transformer_predictor_forward.1} parent=0 // pred_fallthru
    _
  // Predicated region
  $region66: #{transformer_predictor_forward.1} parent=0 // pred_check
    _
  $region67: #{transformer_predictor_forward.1} parent=0 // pred_check_branch
    %99 = sbr.rel (0) target = $region69
  $region68: #{transformer_predictor_forward.1} parent=0 // pred_region
    _
  $region69: #{transformer_predictor_forward.1} parent=0 // pred_fallthru
    _
  // Predicated region
  $region70: #{transformer_predictor_forward.1} parent=0 // pred_check
    _
  $region71: #{transformer_predictor_forward.1} parent=0 // pred_check_branch
    %101 = sbr.rel (0) target = $region73
  $region72: #{transformer_predictor_forward.1} parent=0 // pred_region
    _
  $region73: #{transformer_predictor_forward.1} parent=0 // pred_fallthru
    _
  // Predicated region
  $region74: #{transformer_predictor_forward.1} parent=0 // pred_check
    _
  $region75: #{transformer_predictor_forward.1} parent=0 // pred_check_branch
    %103 = sbr.rel (0) target = $region77
  $region76: #{transformer_predictor_forward.1} parent=0 // pred_region
    _
  $region77: #{transformer_predictor_forward.1} parent=0 // pred_fallthru
    _
  // Predicated region
  $region78: #{transformer_predictor_forward.1} parent=0 // pred_check
    _
  $region79: #{transformer_predictor_forward.1} parent=0 // pred_check_branch
    %105 = sbr.rel (0) target = $region81
  $region80: #{transformer_predictor_forward.1} parent=0 // pred_region
    _
  $region81: #{transformer_predictor_forward.1} parent=0 // pred_fallthru
    _
  // Predicated region
  $region82: #{transformer_predictor_forward.1} parent=0 // pred_check
    _
  $region83: #{transformer_predictor_forward.1} parent=0 // pred_check_branch
    %107 = sbr.rel (0) target = $region85
  $region84: #{transformer_predictor_forward.1} parent=0 // pred_region
    _
  $region85: #{transformer_predictor_forward.1} parent=0 // pred_fallthru
    _
  // Predicated region
  $region86: #{transformer_predictor_forward.1} parent=0 // pred_check
    _
  $region87: #{transformer_predictor_forward.1} parent=0 // pred_check_branch
    %109 = sbr.rel (0) target = $region89
  $region88: #{transformer_predictor_forward.1} parent=0 // pred_region
    _
  $region89: #{transformer_predictor_forward.1} parent=0 // pred_fallthru
    _
  // Predicated region
  $region90: #{transformer_predictor_forward.1} parent=0 // pred_check
    _
  $region91: #{transformer_predictor_forward.1} parent=0 // pred_check_branch
    %111 = sbr.rel (0) target = $region93
  $region92: #{transformer_predictor_forward.1} parent=0 // pred_region
    _
  $region93: #{transformer_predictor_forward.1} parent=0 // pred_fallthru
    _
  // Predicated region
  $region94: #{transformer_predictor_forward.1} parent=0 // pred_check
    _
  $region95: #{transformer_predictor_forward.1} parent=0 // pred_check_branch
    %113 = sbr.rel (0) target = $region97
  $region96: #{transformer_predictor_forward.1} parent=0 // pred_region
    _
  $region97: #{transformer_predictor_forward.1} parent=0 // pred_fallthru
    _
  // Predicated region
  $region98: #{transformer_predictor_forward.1} parent=0 // pred_check
    _
  $region99: #{transformer_predictor_forward.1} parent=0 // pred_check_branch
    %115 = sbr.rel (0) target = $region101
  $region100: #{transformer_predictor_forward.1} parent=0 // pred_region
    _
  $region101: #{transformer_predictor_forward.1} parent=0 // pred_fallthru
    _
  // Predicated region
  $region102: #{transformer_predictor_forward.1} parent=0 // pred_check
    _
  $region103: #{transformer_predictor_forward.1} parent=0 // pred_check_branch
    %117 = sbr.rel (0) target = $region105
  $region104: #{transformer_predictor_forward.1} parent=0 // pred_region
    _
  $region105: #{transformer_predictor_forward.1} parent=0 // pred_fallthru
    _
  // Predicated region
  $region106: #{transformer_predictor_forward.1} parent=0 // pred_check
    _
  $region107: #{transformer_predictor_forward.1} parent=0 // pred_check_branch
    %119 = sbr.rel (0) target = $region109
  $region108: #{transformer_predictor_forward.1} parent=0 // pred_region
    _
  $region109: #{transformer_predictor_forward.1} parent=0 // pred_fallthru
    _
  // Predicated region
  $region110: #{transformer_predictor_forward.1} parent=0 // pred_check
    _
  $region111: #{transformer_predictor_forward.1} parent=0 // pred_check_branch
    %121 = sbr.rel (0) target = $region113
  $region112: #{transformer_predictor_forward.1} parent=0 // pred_region
    _
  $region113: #{transformer_predictor_forward.1} parent=0 // pred_fallthru
    _
  // Predicated region
  $region114: #{transformer_predictor_forward.1} parent=0 // pred_check
    _
  $region115: #{transformer_predictor_forward.1} parent=0 // pred_check_branch
    %123 = sbr.rel (0) target = $region117
  $region116: #{transformer_predictor_forward.1} parent=0 // pred_region
    _
  $region117: #{transformer_predictor_forward.1} parent=0 // pred_fallthru
    _
  %v125 = vld [vmem:[%s1] sm:$0xff]
  %v126 = vld [vmem:[%s1 + $0x8] sm:$0xff]
  %v127 = vld [vmem:[%s3] sm:$0xf]
  %v128 = vld [vmem:[%s3 + $0x4] sm:$0xf]
  %v129 = vpack.c.bf16 %v126, %v125
  %v130 = vld [vmem:[%s5] sm:$0x1]
  %v132 = vperm.slane %v130, 0
  %v136 = vunpack.c.l.b16 %v127
  %v137 = vunpack.c.l.b16 %v128
  %v138 = vpack.c.b16 %v137, %v136
  %vm140 = vcmask 130048
  %v142 = vsel %vm140, %v129, 0
  %144 = vmatpush.bf16.msra.mxu0 0
  %145 = vmatpush.bf16.msra.mxu0 0
  %146 = vmatpush.bf16.msra.mxu0 0
  %147 = vmatpush.bf16.msra.mxu0 0
  %148 = vmatpush.bf16.msra.mxu0 0
  %149 = vmatpush.bf16.msra.mxu0 0
  %150 = vmatpush.bf16.msra.mxu0 0
  %151 = vmatpush.bf16.msra.mxu0 %v138
  %152 = vmatmul.bf16.gmra.mxu0 %v142
  %v153 = vpop.f32.mrf.mxu0
  %v154 = vadd.f32 %v132, %v153
  %v155 = vpop.f32.mrf.mxu0
  %v156 = vadd.f32 %v132, %v155
  %157 = vdwg.mxu0
  %v158 = vld [vmem:[%s11] sm:$0xf]
  %v159 = vld [vmem:[%s11 + $0x4] sm:$0xf]
  %v160 = vld [vmem:[%s11 + $0x8] sm:$0xf]
  %v161 = vld [vmem:[%s11 + $0xc] sm:$0xf]
  %v162 = vpack.c.bf16 %v156, %v154
  %v163 = vld [vmem:[%s13] sm:$0x1]
  %v165 = vperm.slane %v163, 0
  %v171 = vunpack.c.l.b16 %v158
  %v172 = vunpack.c.l.b16 %v159
  %v173 = vunpack.c.l.b16 %v160
  %v174 = vunpack.c.l.b16 %v161
  %v175 = vpack.c.b16 %v172, %v171
  %v176 = vpack.c.b16 %v174, %v173
  %vm179 = vcmask 261120
  %v181 = vsel %vm179, %v162, 0
  %183 = vmatpush.bf16.msra.mxu0 0
  %184 = vmatpush.bf16.msra.mxu0 0
  %185 = vmatpush.bf16.msra.mxu0 0
  %186 = vmatpush.bf16.msra.mxu0 0
  %187 = vmatpush.bf16.msra.mxu0 0
  %188 = vmatpush.bf16.msra.mxu0 0
  %189 = vmatpush.bf16.msra.mxu0 %v176
  %190 = vmatpush.bf16.msra.mxu0 %v175
  %191 = vmatmul.bf16.gmra.mxu0 %v181
  %v192 = vpop.f32.mrf.mxu0
  %v193 = vadd.f32 %v165, %v192
  %v194 = vpop.f32.mrf.mxu0
  %v195 = vadd.f32 %v165, %v194
  %196 = vdwg.mxu0
  %v197 = vpack.c.bf16 %v193, %v193
  %199 = vrot.lane.b32.xlu0 %v197, 96
  %v200 = vpop.permute.xlu0 %199
  %vm201 = vcmask 64512
  %v203 = vsel %vm201, %v197, 0
  %v206 = vsel %vm201, %v200, 0
  %208 = vmatpush.bf16.xpose.msra.mxu0 0
  %209 = vmatpush.bf16.xpose.msra.mxu0 0
  %210 = vmatpush.bf16.xpose.msra.mxu0 0
  %211 = vmatpush.bf16.xpose.msra.mxu0 0
  %212 = vmatpush.bf16.xpose.msra.mxu0 0
  %213 = vmatpush.bf16.xpose.msra.mxu0 0
  %214 = vmatpush.bf16.xpose.msra.mxu0 0
  %215 = vmatpush.bf16.xpose.msra.mxu0 %v206
  %216 = vmatmul.bf16.gmra.mxu0 %v203
  %v217 = vpop.f32.mrf.mxu0
  %v218 = vadd.f32 0.0, %v217
  %v219 = vpop.f32.mrf.mxu0
  %220 = vdwg.mxu0
  %v221 = vmul.f32 %v218, 0.35355338
  %v222 = vsel %vm201, %v221, -inf
  %223 = vmax.xlane.f32.xlu0 %v222
  %v224 = vpop.xlane.xlu0 %223
  %v225 = vsub.f32 %v221, %v224
  %v226 = vmul.f32 %v225, 1.442695
  %v227 = vpow.pop %v226
  %v228 = vsel %vm201, %v227, 0.0
  %229 = vadd.xlane.f32.xlu0 %v228
  %v230 = vpop.xlane.xlu0 %229
  %v231 = vrcp.pop %v230
  %v232 = vmul.f32 %v227, %v231
  %v233 = vpack.c.bf16 %v232, %v232
  %234 = vrot.lane.b32.xlu0 %v197, 64
  %v235 = vpop.permute.xlu0 %234
  %v237 = vsel %vm201, %v233, 0
  %vm239 = vcmask 1043456
  %v241 = vsel %vm239, %v235, 0
  %243 = vmatpush.bf16.msra.mxu0 0
  %244 = vmatpush.bf16.msra.mxu0 0
  %245 = vmatpush.bf16.msra.mxu0 0
  %246 = vmatpush.bf16.msra.mxu0 0
  %247 = vmatpush.bf16.msra.mxu0 0
  %248 = vmatpush.bf16.msra.mxu0 0
  %249 = vmatpush.bf16.msra.mxu0 0
  %250 = vmatpush.bf16.msra.mxu0 %v241
  %251 = vmatmul.bf16.gmra.mxu0 %v237
  %v252 = vpop.f32.mrf.mxu0
  %v253 = vadd.f32 0.0, %v252
  %v254 = vpop.f32.mrf.mxu0
  %255 = vdwg.mxu0
  %v256 = vpack.c.bf16 %v195, %v195
  %258 = vrot.lane.b32.xlu0 %v256, 96
  %v259 = vpop.permute.xlu0 %258
  %v261 = vsel %vm201, %v256, 0
  %v264 = vsel %vm201, %v259, 0
  %266 = vmatpush.bf16.xpose.msra.mxu0 0
  %267 = vmatpush.bf16.xpose.msra.mxu0 0
  %268 = vmatpush.bf16.xpose.msra.mxu0 0
  %269 = vmatpush.bf16.xpose.msra.mxu0 0
  %270 = vmatpush.bf16.xpose.msra.mxu0 0
  %271 = vmatpush.bf16.xpose.msra.mxu0 0
  %272 = vmatpush.bf16.xpose.msra.mxu0 0
  %273 = vmatpush.bf16.xpose.msra.mxu0 %v264
  %274 = vmatmul.bf16.gmra.mxu0 %v261
  %v275 = vpop.f32.mrf.mxu0
  %v276 = vadd.f32 0.0, %v275
  %v277 = vpop.f32.mrf.mxu0
  %278 = vdwg.mxu0
  %v279 = vmul.f32 %v276, 0.35355338
  %v280 = vsel %vm201, %v279, -inf
  %281 = vmax.xlane.f32.xlu0 %v280
  %v282 = vpop.xlane.xlu0 %281
  %v283 = vsub.f32 %v279, %v282
  %v284 = vmul.f32 %v283, 1.442695
  %v285 = vpow.pop %v284
  %v286 = vsel %vm201, %v285, 0.0
  %287 = vadd.xlane.f32.xlu0 %v286
  %v288 = vpop.xlane.xlu0 %287
  %v289 = vrcp.pop %v288
  %v290 = vmul.f32 %v285, %v289
  %v291 = vpack.c.bf16 %v290, %v290
  %292 = vrot.lane.b32.xlu0 %v256, 64
  %v293 = vpop.permute.xlu0 %292
  %v295 = vsel %vm201, %v291, 0
  %v298 = vsel %vm239, %v293, 0
  %300 = vmatpush.bf16.msra.mxu0 0
  %301 = vmatpush.bf16.msra.mxu0 0
  %302 = vmatpush.bf16.msra.mxu0 0
  %303 = vmatpush.bf16.msra.mxu0 0
  %304 = vmatpush.bf16.msra.mxu0 0
  %305 = vmatpush.bf16.msra.mxu0 0
  %306 = vmatpush.bf16.msra.mxu0 0
  %307 = vmatpush.bf16.msra.mxu0 %v298
  %308 = vmatmul.bf16.gmra.mxu0 %v295
  %v309 = vpop.f32.mrf.mxu0
  %v310 = vadd.f32 0.0, %v309
  %v311 = vpop.f32.mrf.mxu0
  %312 = vdwg.mxu0
  %v313 = vld [vmem:[%s15] sm:$0xf]
  %v314 = vpack.c.bf16 %v310, %v253
  %315 = vrot.lane.b32.xlu0 %v197, 120
  %v316 = vpop.permute.xlu0 %315
  %317 = vrot.lane.b32.xlu0 %v197, 88
  %v318 = vpop.permute.xlu0 %317
  %v320 = vsel %vm201, %v316, 0
  %v323 = vsel %vm201, %v318, 0
  %325 = vmatpush.bf16.xpose.msra.mxu0 0
  %326 = vmatpush.bf16.xpose.msra.mxu0 0
  %327 = vmatpush.bf16.xpose.msra.mxu0 0
  %328 = vmatpush.bf16.xpose.msra.mxu0 0
  %329 = vmatpush.bf16.xpose.msra.mxu0 0
  %330 = vmatpush.bf16.xpose.msra.mxu0 0
  %331 = vmatpush.bf16.xpose.msra.mxu0 0
  %332 = vmatpush.bf16.xpose.msra.mxu0 %v323
  %333 = vmatmul.bf16.gmra.mxu0 %v320
  %v334 = vpop.f32.mrf.mxu0
  %v335 = vadd.f32 0.0, %v334
  %v336 = vpop.f32.mrf.mxu0
  %337 = vdwg.mxu0
  %v338 = vmul.f32 %v335, 0.35355338
  %v339 = vsel %vm201, %v338, -inf
  %340 = vmax.xlane.f32.xlu0 %v339
  %v341 = vpop.xlane.xlu0 %340
  %v342 = vsub.f32 %v338, %v341
  %v343 = vmul.f32 %v342, 1.442695
  %v344 = vpow.pop %v343
  %v345 = vsel %vm201, %v344, 0.0
  %346 = vadd.xlane.f32.xlu0 %v345
  %v347 = vpop.xlane.xlu0 %346
  %v348 = vrcp.pop %v347
  %v349 = vmul.f32 %v344, %v348
  %v350 = vpack.c.bf16 %v349, %v349
  %351 = vrot.lane.b32.xlu0 %v197, 56
  %v352 = vpop.permute.xlu0 %351
  %v354 = vsel %vm201, %v350, 0
  %v357 = vsel %vm239, %v352, 0
  %359 = vmatpush.bf16.msra.mxu0 0
  %360 = vmatpush.bf16.msra.mxu0 0
  %361 = vmatpush.bf16.msra.mxu0 0
  %362 = vmatpush.bf16.msra.mxu0 0
  %363 = vmatpush.bf16.msra.mxu0 0
  %364 = vmatpush.bf16.msra.mxu0 0
  %365 = vmatpush.bf16.msra.mxu0 0
  %366 = vmatpush.bf16.msra.mxu0 %v357
  %367 = vmatmul.bf16.gmra.mxu0 %v354
  %v368 = vpop.f32.mrf.mxu0
  %v369 = vadd.f32 0.0, %v368
  %v370 = vpop.f32.mrf.mxu0
  %371 = vdwg.mxu0
  %372 = vrot.lane.b32.xlu0 %v256, 120
  %v373 = vpop.permute.xlu0 %372
  %374 = vrot.lane.b32.xlu0 %v256, 88
  %v375 = vpop.permute.xlu0 %374
  %v377 = vsel %vm201, %v373, 0
  %v380 = vsel %vm201, %v375, 0
  %382 = vmatpush.bf16.xpose.msra.mxu0 0
  %383 = vmatpush.bf16.xpose.msra.mxu0 0
  %384 = vmatpush.bf16.xpose.msra.mxu0 0
  %385 = vmatpush.bf16.xpose.msra.mxu0 0
  %386 = vmatpush.bf16.xpose.msra.mxu0 0
  %387 = vmatpush.bf16.xpose.msra.mxu0 0
  %388 = vmatpush.bf16.xpose.msra.mxu0 0
  %389 = vmatpush.bf16.xpose.msra.mxu0 %v380
  %390 = vmatmul.bf16.gmra.mxu0 %v377
  %v391 = vpop.f32.mrf.mxu0
  %v392 = vadd.f32 0.0, %v391
  %v393 = vpop.f32.mrf.mxu0
  %394 = vdwg.mxu0
  %v395 = vmul.f32 %v392, 0.35355338
  %v396 = vsel %vm201, %v395, -inf
  %397 = vmax.xlane.f32.xlu0 %v396
  %v398 = vpop.xlane.xlu0 %397
  %v399 = vsub.f32 %v395, %v398
  %v400 = vmul.f32 %v399, 1.442695
  %v401 = vpow.pop %v400
  %v402 = vsel %vm201, %v401, 0.0
  %403 = vadd.xlane.f32.xlu0 %v402
  %v404 = vpop.xlane.xlu0 %403
  %v405 = vrcp.pop %v404
  %v406 = vmul.f32 %v401, %v405
  %v407 = vpack.c.bf16 %v406, %v406
  %408 = vrot.lane.b32.xlu0 %v256, 56
  %v409 = vpop.permute.xlu0 %408
  %v411 = vsel %vm201, %v407, 0
  %v414 = vsel %vm239, %v409, 0
  %416 = vmatpush.bf16.msra.mxu0 0
  %417 = vmatpush.bf16.msra.mxu0 0
  %418 = vmatpush.bf16.msra.mxu0 0
  %419 = vmatpush.bf16.msra.mxu0 0
  %420 = vmatpush.bf16.msra.mxu0 0
  %421 = vmatpush.bf16.msra.mxu0 0
  %422 = vmatpush.bf16.msra.mxu0 0
  %423 = vmatpush.bf16.msra.mxu0 %v414
  %424 = vmatmul.bf16.gmra.mxu0 %v411
  %v425 = vpop.f32.mrf.mxu0
  %v426 = vadd.f32 0.0, %v425
  %v427 = vpop.f32.mrf.mxu0
  %428 = vdwg.mxu0
  %v429 = vld [vmem:[%s15 + $0x4] sm:$0xf]
  %v430 = vpack.c.bf16 %v426, %v369
  %v432 = vsel %vm201, %v430, 0
  %v435 = vsel %vm239, %v429, 0
  %437 = vmatpush.bf16.msra.mxu0 0
  %438 = vmatpush.bf16.msra.mxu0 0
  %439 = vmatpush.bf16.msra.mxu0 0
  %440 = vmatpush.bf16.msra.mxu0 0
  %441 = vmatpush.bf16.msra.mxu0 0
  %442 = vmatpush.bf16.msra.mxu0 0
  %443 = vmatpush.bf16.msra.mxu0 0
  %444 = vmatpush.bf16.msra.mxu0 %v435
  %445 = vmatmul.bf16.gmra.mxu0 %v432
  %v446 = vpop.f32.mrf.mxu0
  %v447 = vadd.f32 0.0, %v446
  %v448 = vpop.f32.mrf.mxu0
  %v449 = vadd.f32 0.0, %v448
  %450 = vdwg.mxu0
  %v452 = vsel %vm201, %v314, 0
  %v455 = vsel %vm239, %v313, 0
  %457 = vmatpush.bf16.msra.mxu0 0
  %458 = vmatpush.bf16.msra.mxu0 0
  %459 = vmatpush.bf16.msra.mxu0 0
  %460 = vmatpush.bf16.msra.mxu0 0
  %461 = vmatpush.bf16.msra.mxu0 0
  %462 = vmatpush.bf16.msra.mxu0 0
  %463 = vmatpush.bf16.msra.mxu0 0
  %464 = vmatpush.bf16.msra.mxu0 %v455
  %465 = vmatmul.bf16.gmra.mxu0 %v452
  %v466 = vpop.f32.mrf.mxu0
  %v467 = vadd.f32 %v447, %v466
  %v468 = vpop.f32.mrf.mxu0
  %v469 = vadd.f32 %v449, %v468
  %470 = vdwg.mxu0
  %471 = vrot.lane.b32.xlu0 %v197, 112
  %v472 = vpop.permute.xlu0 %471
  %473 = vrot.lane.b32.xlu0 %v197, 80
  %v474 = vpop.permute.xlu0 %473
  %v476 = vsel %vm201, %v472, 0
  %v479 = vsel %vm201, %v474, 0
  %481 = vmatpush.bf16.xpose.msra.mxu0 0
  %482 = vmatpush.bf16.xpose.msra.mxu0 0
  %483 = vmatpush.bf16.xpose.msra.mxu0 0
  %484 = vmatpush.bf16.xpose.msra.mxu0 0
  %485 = vmatpush.bf16.xpose.msra.mxu0 0
  %486 = vmatpush.bf16.xpose.msra.mxu0 0
  %487 = vmatpush.bf16.xpose.msra.mxu0 0
  %488 = vmatpush.bf16.xpose.msra.mxu0 %v479
  %489 = vmatmul.bf16.gmra.mxu0 %v476
  %v490 = vpop.f32.mrf.mxu0
  %v491 = vadd.f32 0.0, %v490
  %v492 = vpop.f32.mrf.mxu0
  %493 = vdwg.mxu0
  %v494 = vmul.f32 %v491, 0.35355338
  %v495 = vsel %vm201, %v494, -inf
  %496 = vmax.xlane.f32.xlu0 %v495
  %v497 = vpop.xlane.xlu0 %496
  %v498 = vsub.f32 %v494, %v497
  %v499 = vmul.f32 %v498, 1.442695
  %v500 = vpow.pop %v499
  %v501 = vsel %vm201, %v500, 0.0
  %502 = vadd.xlane.f32.xlu0 %v501
  %v503 = vpop.xlane.xlu0 %502
  %v504 = vrcp.pop %v503
  %v505 = vmul.f32 %v500, %v504
  %v506 = vpack.c.bf16 %v505, %v505
  %507 = vrot.lane.b32.xlu0 %v197, 48
  %v508 = vpop.permute.xlu0 %507
  %v510 = vsel %vm201, %v506, 0
  %v513 = vsel %vm239, %v508, 0
  %515 = vmatpush.bf16.msra.mxu0 0
  %516 = vmatpush.bf16.msra.mxu0 0
  %517 = vmatpush.bf16.msra.mxu0 0
  %518 = vmatpush.bf16.msra.mxu0 0
  %519 = vmatpush.bf16.msra.mxu0 0
  %520 = vmatpush.bf16.msra.mxu0 0
  %521 = vmatpush.bf16.msra.mxu0 0
  %522 = vmatpush.bf16.msra.mxu0 %v513
  %523 = vmatmul.bf16.gmra.mxu0 %v510
  %v524 = vpop.f32.mrf.mxu0
  %v525 = vadd.f32 0.0, %v524
  %v526 = vpop.f32.mrf.mxu0
  %527 = vdwg.mxu0
  %528 = vrot.lane.b32.xlu0 %v256, 112
  %v529 = vpop.permute.xlu0 %528
  %530 = vrot.lane.b32.xlu0 %v256, 80
  %v531 = vpop.permute.xlu0 %530
  %v533 = vsel %vm201, %v529, 0
  %v536 = vsel %vm201, %v531, 0
  %538 = vmatpush.bf16.xpose.msra.mxu0 0
  %539 = vmatpush.bf16.xpose.msra.mxu0 0
  %540 = vmatpush.bf16.xpose.msra.mxu0 0
  %541 = vmatpush.bf16.xpose.msra.mxu0 0
  %542 = vmatpush.bf16.xpose.msra.mxu0 0
  %543 = vmatpush.bf16.xpose.msra.mxu0 0
  %544 = vmatpush.bf16.xpose.msra.mxu0 0
  %545 = vmatpush.bf16.xpose.msra.mxu0 %v536
  %546 = vmatmul.bf16.gmra.mxu0 %v533
  %v547 = vpop.f32.mrf.mxu0
  %v548 = vadd.f32 0.0, %v547
  %v549 = vpop.f32.mrf.mxu0
  %550 = vdwg.mxu0
  %v551 = vmul.f32 %v548, 0.35355338
  %v552 = vsel %vm201, %v551, -inf
  %553 = vmax.xlane.f32.xlu0 %v552
  %v554 = vpop.xlane.xlu0 %553
  %v555 = vsub.f32 %v551, %v554
  %v556 = vmul.f32 %v555, 1.442695
  %v557 = vpow.pop %v556
  %v558 = vsel %vm201, %v557, 0.0
  %559 = vadd.xlane.f32.xlu0 %v558
  %v560 = vpop.xlane.xlu0 %559
  %v561 = vrcp.pop %v560
  %v562 = vmul.f32 %v557, %v561
  %v563 = vpack.c.bf16 %v562, %v562
  %564 = vrot.lane.b32.xlu0 %v256, 48
  %v565 = vpop.permute.xlu0 %564
  %v567 = vsel %vm201, %v563, 0
  %v570 = vsel %vm239, %v565, 0
  %572 = vmatpush.bf16.msra.mxu0 0
  %573 = vmatpush.bf16.msra.mxu0 0
  %574 = vmatpush.bf16.msra.mxu0 0
  %575 = vmatpush.bf16.msra.mxu0 0
  %576 = vmatpush.bf16.msra.mxu0 0
  %577 = vmatpush.bf16.msra.mxu0 0
  %578 = vmatpush.bf16.msra.mxu0 0
  %579 = vmatpush.bf16.msra.mxu0 %v570
  %580 = vmatmul.bf16.gmra.mxu0 %v567
  %v581 = vpop.f32.mrf.mxu0
  %v582 = vadd.f32 0.0, %v581
  %v583 = vpop.f32.mrf.mxu0
  %584 = vdwg.mxu0
  %v585 = vld [vmem:[%s15 + $0x8] sm:$0xf]
  %v586 = vpack.c.bf16 %v582, %v525
  %v588 = vsel %vm201, %v586, 0
  %v591 = vsel %vm239, %v585, 0
  %593 = vmatpush.bf16.msra.mxu0 0
  %594 = vmatpush.bf16.msra.mxu0 0
  %595 = vmatpush.bf16.msra.mxu0 0
  %596 = vmatpush.bf16.msra.mxu0 0
  %597 = vmatpush.bf16.msra.mxu0 0
  %598 = vmatpush.bf16.msra.mxu0 0
  %599 = vmatpush.bf16.msra.mxu0 0
  %600 = vmatpush.bf16.msra.mxu0 %v591
  %601 = vmatmul.bf16.gmra.mxu0 %v588
  %v602 = vpop.f32.mrf.mxu0
  %v603 = vadd.f32 0.0, %v602
  %v604 = vpop.f32.mrf.mxu0
  %v605 = vadd.f32 0.0, %v604
  %606 = vdwg.mxu0
  %v607 = vadd.f32 %v467, %v603
  %v608 = vadd.f32 %v469, %v605
  %609 = vrot.lane.b32.xlu0 %v197, 104
  %v610 = vpop.permute.xlu0 %609
  %611 = vrot.lane.b32.xlu0 %v197, 72
  %v612 = vpop.permute.xlu0 %611
  %v614 = vsel %vm201, %v610, 0
  %v617 = vsel %vm201, %v612, 0
  %619 = vmatpush.bf16.xpose.msra.mxu0 0
  %620 = vmatpush.bf16.xpose.msra.mxu0 0
  %621 = vmatpush.bf16.xpose.msra.mxu0 0
  %622 = vmatpush.bf16.xpose.msra.mxu0 0
  %623 = vmatpush.bf16.xpose.msra.mxu0 0
  %624 = vmatpush.bf16.xpose.msra.mxu0 0
  %625 = vmatpush.bf16.xpose.msra.mxu0 0
  %626 = vmatpush.bf16.xpose.msra.mxu0 %v617
  %627 = vmatmul.bf16.gmra.mxu0 %v614
  %v628 = vpop.f32.mrf.mxu0
  %v629 = vadd.f32 0.0, %v628
  %v630 = vpop.f32.mrf.mxu0
  %631 = vdwg.mxu0
  %v632 = vmul.f32 %v629, 0.35355338
  %v633 = vsel %vm201, %v632, -inf
  %634 = vmax.xlane.f32.xlu0 %v633
  %v635 = vpop.xlane.xlu0 %634
  %v636 = vsub.f32 %v632, %v635
  %v637 = vmul.f32 %v636, 1.442695
  %v638 = vpow.pop %v637
  %v639 = vsel %vm201, %v638, 0.0
  %640 = vadd.xlane.f32.xlu0 %v639
  %v641 = vpop.xlane.xlu0 %640
  %v642 = vrcp.pop %v641
  %v643 = vmul.f32 %v638, %v642
  %v644 = vpack.c.bf16 %v643, %v643
  %645 = vrot.lane.b32.xlu0 %v197, 40
  %v646 = vpop.permute.xlu0 %645
  %v648 = vsel %vm201, %v644, 0
  %v651 = vsel %vm239, %v646, 0
  %653 = vmatpush.bf16.msra.mxu0 0
  %654 = vmatpush.bf16.msra.mxu0 0
  %655 = vmatpush.bf16.msra.mxu0 0
  %656 = vmatpush.bf16.msra.mxu0 0
  %657 = vmatpush.bf16.msra.mxu0 0
  %658 = vmatpush.bf16.msra.mxu0 0
  %659 = vmatpush.bf16.msra.mxu0 0
  %660 = vmatpush.bf16.msra.mxu0 %v651
  %661 = vmatmul.bf16.gmra.mxu0 %v648
  %v662 = vpop.f32.mrf.mxu0
  %v663 = vadd.f32 0.0, %v662
  %v664 = vpop.f32.mrf.mxu0
  %665 = vdwg.mxu0
  %666 = vrot.lane.b32.xlu0 %v256, 104
  %v667 = vpop.permute.xlu0 %666
  %668 = vrot.lane.b32.xlu0 %v256, 72
  %v669 = vpop.permute.xlu0 %668
  %v671 = vsel %vm201, %v667, 0
  %v674 = vsel %vm201, %v669, 0
  %676 = vmatpush.bf16.xpose.msra.mxu0 0
  %677 = vmatpush.bf16.xpose.msra.mxu0 0
  %678 = vmatpush.bf16.xpose.msra.mxu0 0
  %679 = vmatpush.bf16.xpose.msra.mxu0 0
  %680 = vmatpush.bf16.xpose.msra.mxu0 0
  %681 = vmatpush.bf16.xpose.msra.mxu0 0
  %682 = vmatpush.bf16.xpose.msra.mxu0 0
  %683 = vmatpush.bf16.xpose.msra.mxu0 %v674
  %684 = vmatmul.bf16.gmra.mxu0 %v671
  %v685 = vpop.f32.mrf.mxu0
  %v686 = vadd.f32 0.0, %v685
  %v687 = vpop.f32.mrf.mxu0
  %688 = vdwg.mxu0
  %v689 = vmul.f32 %v686, 0.35355338
  %v690 = vsel %vm201, %v689, -inf
  %691 = vmax.xlane.f32.xlu0 %v690
  %v692 = vpop.xlane.xlu0 %691
  %v693 = vsub.f32 %v689, %v692
  %v694 = vmul.f32 %v693, 1.442695
  %v695 = vpow.pop %v694
  %v696 = vsel %vm201, %v695, 0.0
  %697 = vadd.xlane.f32.xlu0 %v696
  %v698 = vpop.xlane.xlu0 %697
  %v699 = vrcp.pop %v698
  %v700 = vmul.f32 %v695, %v699
  %v701 = vpack.c.bf16 %v700, %v700
  %702 = vrot.lane.b32.xlu0 %v256, 40
  %v703 = vpop.permute.xlu0 %702
  %v705 = vsel %vm201, %v701, 0
  %v708 = vsel %vm239, %v703, 0
  %710 = vmatpush.bf16.msra.mxu0 0
  %711 = vmatpush.bf16.msra.mxu0 0
  %712 = vmatpush.bf16.msra.mxu0 0
  %713 = vmatpush.bf16.msra.mxu0 0
  %714 = vmatpush.bf16.msra.mxu0 0
  %715 = vmatpush.bf16.msra.mxu0 0
  %716 = vmatpush.bf16.msra.mxu0 0
  %717 = vmatpush.bf16.msra.mxu0 %v708
  %718 = vmatmul.bf16.gmra.mxu0 %v705
  %v719 = vpop.f32.mrf.mxu0
  %v720 = vadd.f32 0.0, %v719
  %v721 = vpop.f32.mrf.mxu0
  %722 = vdwg.mxu0
  %v723 = vld [vmem:[%s15 + $0xc] sm:$0xf]
  %v724 = vpack.c.bf16 %v720, %v663
  %v726 = vsel %vm201, %v724, 0
  %v729 = vsel %vm239, %v723, 0
  %731 = vmatpush.bf16.msra.mxu0 0
  %732 = vmatpush.bf16.msra.mxu0 0
  %733 = vmatpush.bf16.msra.mxu0 0
  %734 = vmatpush.bf16.msra.mxu0 0
  %735 = vmatpush.bf16.msra.mxu0 0
  %736 = vmatpush.bf16.msra.mxu0 0
  %737 = vmatpush.bf16.msra.mxu0 0
  %738 = vmatpush.bf16.msra.mxu0 %v729
  %739 = vmatmul.bf16.gmra.mxu0 %v726
  %v740 = vpop.f32.mrf.mxu0
  %v741 = vadd.f32 0.0, %v740
  %v742 = vpop.f32.mrf.mxu0
  %v743 = vadd.f32 0.0, %v742
  %744 = vdwg.mxu0
  %v745 = vadd.f32 %v607, %v741
  %v746 = vadd.f32 %v608, %v743
  %v747 = vld [vmem:[%s17] sm:$0x1]
  %v749 = vperm.slane %v747, 0
  %v751 = vadd.f32 %v745, %v749
  %v752 = vadd.f32 %v746, %v749
  %v753 = vadd.f32 %v154, %v751
  %v754 = vadd.f32 %v156, %v752
  %v755 = vsel %vm179, %v753, 0.0
  %756 = vadd.xlane.f32.xlu0 %v755
  %v757 = vpop.xlane.xlu0 %756
  %v758 = vsel %vm179, %v754, 0.0
  %759 = vadd.xlane.f32.xlu0 %v758
  %v760 = vpop.xlane.xlu0 %759
  %v761 = vrcp.pop 32.0
  %v762 = vmul.f32 32.0, %v761
  %v763 = vsub.f32 1.0, %v762
  %v764 = vmul.f32 %v761, %v763
  %v765 = vadd.f32 %v761, %v764
  %vm766 = vweird.f32 %v761
  %v767 = vsel %vm766, %v761, %v765
  %v768 = vmul.f32 %v757, %v767
  %v769 = vmul.f32 %v760, %v767
  %v770 = vsub.f32 %v753, %v768
  %v771 = vsub.f32 %v754, %v769
  %v772 = vmul.f32 %v770, %v770
  %v773 = vmul.f32 %v771, %v771
  %v774 = vsel %vm179, %v772, 0.0
  %775 = vadd.xlane.f32.xlu0 %v774
  %v776 = vpop.xlane.xlu0 %775
  %v777 = vsel %vm179, %v773, 0.0
  %778 = vadd.xlane.f32.xlu0 %v777
  %v779 = vpop.xlane.xlu0 %778
  %v780 = vmul.f32 %v776, %v767
  %v781 = vmul.f32 %v779, %v767
  %v782 = vadd.f32 %v780, 1e-05
  %v783 = vadd.f32 %v781, 1e-05
  %v784 = vrsqrt.pop %v782
  %v785 = vmul.f32 %v784, %v782
  %v786 = vmul.f32 %v785, %v784
  %v787 = vmul.f32 0.5, %v786
  %v788 = vsub.f32 1.5, %v787
  %v789 = vmul.f32 %v784, %v788
  %vm790 = vweird.f32 %v782
  %vm791 = vweird.f32 %v784
  %vm792 = vmor %vm790, %vm791
  %v793 = vsel %vm792, %v784, %v789
  %v794 = vrsqrt.pop %v783
  %v795 = vmul.f32 %v794, %v783
  %v796 = vmul.f32 %v795, %v794
  %v797 = vmul.f32 0.5, %v796
  %v798 = vsub.f32 1.5, %v797
  %v799 = vmul.f32 %v794, %v798
  %vm800 = vweird.f32 %v783
  %vm801 = vweird.f32 %v794
  %vm802 = vmor %vm800, %vm801
  %v803 = vsel %vm802, %v794, %v799
  %v804 = vmul.f32 %v770, %v793
  %v805 = vmul.f32 %v771, %v803
  %v806 = vld [vmem:[%s27] sm:$0x1]
  %v808 = vperm.slane %v806, 0
  %v810 = vmul.f32 %v804, %v808
  %v811 = vmul.f32 %v805, %v808
  %v812 = vld [vmem:[%s29] sm:$0x1]
  %v814 = vperm.slane %v812, 0
  %v816 = vadd.f32 %v810, %v814
  %v817 = vadd.f32 %v811, %v814
  %v818 = vld [vmem:[%s19] sm:$0xff]
  %v819 = vld [vmem:[%s19 + $0x8] sm:$0xff]
  %v820 = vld [vmem:[%s19 + $0x10] sm:$0xff]
  %v821 = vld [vmem:[%s19 + $0x18] sm:$0xff]
  %v822 = vld [vmem:[%s19 + $0x20] sm:$0xff]
  %v823 = vld [vmem:[%s19 + $0x28] sm:$0xff]
  %v824 = vld [vmem:[%s19 + $0x30] sm:$0xff]
  %v825 = vld [vmem:[%s19 + $0x38] sm:$0xff]
  %v826 = vld [vmem:[%s19 + $0x40] sm:$0xff]
  %v827 = vld [vmem:[%s19 + $0x48] sm:$0xff]
  %v828 = vld [vmem:[%s19 + $0x50] sm:$0xff]
  %v829 = vld [vmem:[%s19 + $0x58] sm:$0xff]
  %v830 = vld [vmem:[%s19 + $0x60] sm:$0xff]
  %v831 = vld [vmem:[%s19 + $0x68] sm:$0xff]
  %v832 = vld [vmem:[%s19 + $0x70] sm:$0xff]
  %v833 = vld [vmem:[%s19 + $0x78] sm:$0xff]
  %v834 = vld [vmem:[%s19 + $0x80] sm:$0xff]
  %v835 = vld [vmem:[%s19 + $0x88] sm:$0xff]
  %v836 = vld [vmem:[%s19 + $0x90] sm:$0xff]
  %v837 = vld [vmem:[%s19 + $0x98] sm:$0xff]
  %v838 = vld [vmem:[%s19 + $0xa0] sm:$0xff]
  %v839 = vld [vmem:[%s19 + $0xa8] sm:$0xff]
  %v840 = vld [vmem:[%s19 + $0xb0] sm:$0xff]
  %v841 = vld [vmem:[%s19 + $0xb8] sm:$0xff]
  %v842 = vld [vmem:[%s19 + $0xc0] sm:$0xff]
  %v843 = vld [vmem:[%s19 + $0xc8] sm:$0xff]
  %v844 = vld [vmem:[%s19 + $0xd0] sm:$0xff]
  %v845 = vld [vmem:[%s19 + $0xd8] sm:$0xff]
  %v846 = vld [vmem:[%s19 + $0xe0] sm:$0xff]
  %v847 = vld [vmem:[%s19 + $0xe8] sm:$0xff]
  %v848 = vld [vmem:[%s19 + $0xf0] sm:$0xff]
  %v849 = vld [vmem:[%s19 + $0xf8] sm:$0xff]
  %v850 = vpack.c.bf16 %v817, %v816
  %v851 = vld [vmem:[%s21] sm:$0xff]
  %v852 = vld [vmem:[%s21 + $0x8] sm:$0xff]
  %v855 = vperm.slane %v851, 0
  %v856 = vperm.slane %v851, 1
  %v857 = vperm.slane %v851, 2
  %v858 = vperm.slane %v851, 3
  %v859 = vperm.slane %v851, 4
  %v860 = vperm.slane %v851, 5
  %v861 = vperm.slane %v851, 6
  %v862 = vperm.slane %v851, 7
  %v863 = vperm.slane %v852, 0
  %v864 = vperm.slane %v852, 1
  %v865 = vperm.slane %v852, 2
  %v866 = vperm.slane %v852, 3
  %v867 = vperm.slane %v852, 4
  %v868 = vperm.slane %v852, 5
  %v869 = vperm.slane %v852, 6
  %v870 = vperm.slane %v852, 7
  %v919 = vunpack.c.l.b16 %v818
  %v920 = vunpack.c.h.b16 %v818
  %v921 = vunpack.c.l.b16 %v819
  %v922 = vunpack.c.h.b16 %v819
  %v923 = vunpack.c.l.b16 %v820
  %v924 = vunpack.c.h.b16 %v820
  %v925 = vunpack.c.l.b16 %v821
  %v926 = vunpack.c.h.b16 %v821
  %v927 = vunpack.c.l.b16 %v822
  %v928 = vunpack.c.h.b16 %v822
  %v929 = vunpack.c.l.b16 %v823
  %v930 = vunpack.c.h.b16 %v823
  %v931 = vunpack.c.l.b16 %v824
  %v932 = vunpack.c.h.b16 %v824
  %v933 = vunpack.c.l.b16 %v825
  %v934 = vunpack.c.h.b16 %v825
  %v935 = vunpack.c.l.b16 %v826
  %v936 = vunpack.c.h.b16 %v826
  %v937 = vunpack.c.l.b16 %v827
  %v938 = vunpack.c.h.b16 %v827
  %v939 = vunpack.c.l.b16 %v828
  %v940 = vunpack.c.h.b16 %v828
  %v941 = vunpack.c.l.b16 %v829
  %v942 = vunpack.c.h.b16 %v829
  %v943 = vunpack.c.l.b16 %v830
  %v944 = vunpack.c.h.b16 %v830
  %v945 = vunpack.c.l.b16 %v831
  %v946 = vunpack.c.h.b16 %v831
  %v947 = vunpack.c.l.b16 %v832
  %v948 = vunpack.c.h.b16 %v832
  %v949 = vunpack.c.l.b16 %v833
  %v950 = vunpack.c.h.b16 %v833
  %v951 = vunpack.c.l.b16 %v834
  %v952 = vunpack.c.h.b16 %v834
  %v953 = vunpack.c.l.b16 %v835
  %v954 = vunpack.c.h.b16 %v835
  %v955 = vunpack.c.l.b16 %v836
  %v956 = vunpack.c.h.b16 %v836
  %v957 = vunpack.c.l.b16 %v837
  %v958 = vunpack.c.h.b16 %v837
  %v959 = vunpack.c.l.b16 %v838
  %v960 = vunpack.c.h.b16 %v838
  %v961 = vunpack.c.l.b16 %v839
  %v962 = vunpack.c.h.b16 %v839
  %v963 = vunpack.c.l.b16 %v840
  %v964 = vunpack.c.h.b16 %v840
  %v965 = vunpack.c.l.b16 %v841
  %v966 = vunpack.c.h.b16 %v841
  %v967 = vunpack.c.l.b16 %v842
  %v968 = vunpack.c.h.b16 %v842
  %v969 = vunpack.c.l.b16 %v843
  %v970 = vunpack.c.h.b16 %v843
  %v971 = vunpack.c.l.b16 %v844
  %v972 = vunpack.c.h.b16 %v844
  %v973 = vunpack.c.l.b16 %v845
  %v974 = vunpack.c.h.b16 %v845
  %v975 = vunpack.c.l.b16 %v846
  %v976 = vunpack.c.h.b16 %v846
  %v977 = vunpack.c.l.b16 %v847
  %v978 = vunpack.c.h.b16 %v847
  %v979 = vunpack.c.l.b16 %v848
  %v980 = vunpack.c.h.b16 %v848
  %v981 = vunpack.c.l.b16 %v849
  %v982 = vunpack.c.h.b16 %v849
  %v983 = vpack.c.b16 %v935, %v919
  %v984 = vpack.c.b16 %v936, %v920
  %v985 = vpack.c.b16 %v937, %v921
  %v986 = vpack.c.b16 %v938, %v922
  %v987 = vpack.c.b16 %v939, %v923
  %v988 = vpack.c.b16 %v940, %v924
  %v989 = vpack.c.b16 %v941, %v925
  %v990 = vpack.c.b16 %v942, %v926
  %v991 = vpack.c.b16 %v943, %v927
  %v992 = vpack.c.b16 %v944, %v928
  %v993 = vpack.c.b16 %v945, %v929
  %v994 = vpack.c.b16 %v946, %v930
  %v995 = vpack.c.b16 %v947, %v931
  %v996 = vpack.c.b16 %v948, %v932
  %v997 = vpack.c.b16 %v949, %v933
  %v998 = vpack.c.b16 %v950, %v934
  %v999 = vpack.c.b16 %v967, %v951
  %v1000 = vpack.c.b16 %v968, %v952
  %v1001 = vpack.c.b16 %v969, %v953
  %v1002 = vpack.c.b16 %v970, %v954
  %v1003 = vpack.c.b16 %v971, %v955
  %v1004 = vpack.c.b16 %v972, %v956
  %v1005 = vpack.c.b16 %v973, %v957
  %v1006 = vpack.c.b16 %v974, %v958
  %v1007 = vpack.c.b16 %v975, %v959
  %v1008 = vpack.c.b16 %v976, %v960
  %v1009 = vpack.c.b16 %v977, %v961
  %v1010 = vpack.c.b16 %v978, %v962
  %v1011 = vpack.c.b16 %v979, %v963
  %v1012 = vpack.c.b16 %v980, %v964
  %v1013 = vpack.c.b16 %v981, %v965
  %v1014 = vpack.c.b16 %v982, %v966
  %v1048 = vsel %vm179, %v850, 0
  %1050 = vmatpush.bf16.msra.mxu0 0
  %1051 = vmatpush.bf16.msra.mxu0 0
  %1052 = vmatpush.bf16.msra.mxu0 0
  %1053 = vmatpush.bf16.msra.mxu0 0
  %1054 = vmatpush.bf16.msra.mxu0 0
  %1055 = vmatpush.bf16.msra.mxu0 0
  %1056 = vmatpush.bf16.msra.mxu0 %v999
  %1057 = vmatpush.bf16.msra.mxu0 %v983
  %1058 = vmatmul.bf16.gmra.mxu0 %v1048
  %v1059 = vpop.f32.mrf.mxu0
  %v1060 = vadd.f32 %v855, %v1059
  %v1061 = vpop.f32.mrf.mxu0
  %v1062 = vadd.f32 %v855, %v1061
  %1063 = vdwg.mxu0
  %1064 = vmatpush.bf16.msra.mxu0 0
  %1065 = vmatpush.bf16.msra.mxu0 0
  %1066 = vmatpush.bf16.msra.mxu0 0
  %1067 = vmatpush.bf16.msra.mxu0 0
  %1068 = vmatpush.bf16.msra.mxu0 0
  %1069 = vmatpush.bf16.msra.mxu0 0
  %1070 = vmatpush.bf16.msra.mxu0 %v1000
  %1071 = vmatpush.bf16.msra.mxu0 %v984
  %1072 = vmatmul.bf16.gmra.mxu0 %v1048
  %v1073 = vpop.f32.mrf.mxu0
  %v1074 = vadd.f32 %v856, %v1073
  %v1075 = vpop.f32.mrf.mxu0
  %v1076 = vadd.f32 %v856, %v1075
  %1077 = vdwg.mxu0
  %1078 = vmatpush.bf16.msra.mxu0 0
  %1079 = vmatpush.bf16.msra.mxu0 0
  %1080 = vmatpush.bf16.msra.mxu0 0
  %1081 = vmatpush.bf16.msra.mxu0 0
  %1082 = vmatpush.bf16.msra.mxu0 0
  %1083 = vmatpush.bf16.msra.mxu0 0
  %1084 = vmatpush.bf16.msra.mxu0 %v1001
  %1085 = vmatpush.bf16.msra.mxu0 %v985
  %1086 = vmatmul.bf16.gmra.mxu0 %v1048
  %v1087 = vpop.f32.mrf.mxu0
  %v1088 = vadd.f32 %v857, %v1087
  %v1089 = vpop.f32.mrf.mxu0
  %v1090 = vadd.f32 %v857, %v1089
  %1091 = vdwg.mxu0
  %1092 = vmatpush.bf16.msra.mxu0 0
  %1093 = vmatpush.bf16.msra.mxu0 0
  %1094 = vmatpush.bf16.msra.mxu0 0
  %1095 = vmatpush.bf16.msra.mxu0 0
  %1096 = vmatpush.bf16.msra.mxu0 0
  %1097 = vmatpush.bf16.msra.mxu0 0
  %1098 = vmatpush.bf16.msra.mxu0 %v1002
  %1099 = vmatpush.bf16.msra.mxu0 %v986
  %1100 = vmatmul.bf16.gmra.mxu0 %v1048
  %v1101 = vpop.f32.mrf.mxu0
  %v1102 = vadd.f32 %v858, %v1101
  %v1103 = vpop.f32.mrf.mxu0
  %v1104 = vadd.f32 %v858, %v1103
  %1105 = vdwg.mxu0
  %1106 = vmatpush.bf16.msra.mxu0 0
  %1107 = vmatpush.bf16.msra.mxu0 0
  %1108 = vmatpush.bf16.msra.mxu0 0
  %1109 = vmatpush.bf16.msra.mxu0 0
  %1110 = vmatpush.bf16.msra.mxu0 0
  %1111 = vmatpush.bf16.msra.mxu0 0
  %1112 = vmatpush.bf16.msra.mxu0 %v1003
  %1113 = vmatpush.bf16.msra.mxu0 %v987
  %1114 = vmatmul.bf16.gmra.mxu0 %v1048
  %v1115 = vpop.f32.mrf.mxu0
  %v1116 = vadd.f32 %v859, %v1115
  %v1117 = vpop.f32.mrf.mxu0
  %v1118 = vadd.f32 %v859, %v1117
  %1119 = vdwg.mxu0
  %1120 = vmatpush.bf16.msra.mxu0 0
  %1121 = vmatpush.bf16.msra.mxu0 0
  %1122 = vmatpush.bf16.msra.mxu0 0
  %1123 = vmatpush.bf16.msra.mxu0 0
  %1124 = vmatpush.bf16.msra.mxu0 0
  %1125 = vmatpush.bf16.msra.mxu0 0
  %1126 = vmatpush.bf16.msra.mxu0 %v1004
  %1127 = vmatpush.bf16.msra.mxu0 %v988
  %1128 = vmatmul.bf16.gmra.mxu0 %v1048
  %v1129 = vpop.f32.mrf.mxu0
  %v1130 = vadd.f32 %v860, %v1129
  %v1131 = vpop.f32.mrf.mxu0
  %v1132 = vadd.f32 %v860, %v1131
  %1133 = vdwg.mxu0
  %1134 = vmatpush.bf16.msra.mxu0 0
  %1135 = vmatpush.bf16.msra.mxu0 0
  %1136 = vmatpush.bf16.msra.mxu0 0
  %1137 = vmatpush.bf16.msra.mxu0 0
  %1138 = vmatpush.bf16.msra.mxu0 0
  %1139 = vmatpush.bf16.msra.mxu0 0
  %1140 = vmatpush.bf16.msra.mxu0 %v1005
  %1141 = vmatpush.bf16.msra.mxu0 %v989
  %1142 = vmatmul.bf16.gmra.mxu0 %v1048
  %v1143 = vpop.f32.mrf.mxu0
  %v1144 = vadd.f32 %v861, %v1143
  %v1145 = vpop.f32.mrf.mxu0
  %v1146 = vadd.f32 %v861, %v1145
  %1147 = vdwg.mxu0
  %1148 = vmatpush.bf16.msra.mxu0 0
  %1149 = vmatpush.bf16.msra.mxu0 0
  %1150 = vmatpush.bf16.msra.mxu0 0
  %1151 = vmatpush.bf16.msra.mxu0 0
  %1152 = vmatpush.bf16.msra.mxu0 0
  %1153 = vmatpush.bf16.msra.mxu0 0
  %1154 = vmatpush.bf16.msra.mxu0 %v1006
  %1155 = vmatpush.bf16.msra.mxu0 %v990
  %1156 = vmatmul.bf16.gmra.mxu0 %v1048
  %v1157 = vpop.f32.mrf.mxu0
  %v1158 = vadd.f32 %v862, %v1157
  %v1159 = vpop.f32.mrf.mxu0
  %v1160 = vadd.f32 %v862, %v1159
  %1161 = vdwg.mxu0
  %1162 = vmatpush.bf16.msra.mxu0 0
  %1163 = vmatpush.bf16.msra.mxu0 0
  %1164 = vmatpush.bf16.msra.mxu0 0
  %1165 = vmatpush.bf16.msra.mxu0 0
  %1166 = vmatpush.bf16.msra.mxu0 0
  %1167 = vmatpush.bf16.msra.mxu0 0
  %1168 = vmatpush.bf16.msra.mxu0 %v1007
  %1169 = vmatpush.bf16.msra.mxu0 %v991
  %1170 = vmatmul.bf16.gmra.mxu0 %v1048
  %v1171 = vpop.f32.mrf.mxu0
  %v1172 = vadd.f32 %v863, %v1171
  %v1173 = vpop.f32.mrf.mxu0
  %v1174 = vadd.f32 %v863, %v1173
  %1175 = vdwg.mxu0
  %1176 = vmatpush.bf16.msra.mxu0 0
  %1177 = vmatpush.bf16.msra.mxu0 0
  %1178 = vmatpush.bf16.msra.mxu0 0
  %1179 = vmatpush.bf16.msra.mxu0 0
  %1180 = vmatpush.bf16.msra.mxu0 0
  %1181 = vmatpush.bf16.msra.mxu0 0
  %1182 = vmatpush.bf16.msra.mxu0 %v1008
  %1183 = vmatpush.bf16.msra.mxu0 %v992
  %1184 = vmatmul.bf16.gmra.mxu0 %v1048
  %v1185 = vpop.f32.mrf.mxu0
  %v1186 = vadd.f32 %v864, %v1185
  %v1187 = vpop.f32.mrf.mxu0
  %v1188 = vadd.f32 %v864, %v1187
  %1189 = vdwg.mxu0
  %1190 = vmatpush.bf16.msra.mxu0 0
  %1191 = vmatpush.bf16.msra.mxu0 0
  %1192 = vmatpush.bf16.msra.mxu0 0
  %1193 = vmatpush.bf16.msra.mxu0 0
  %1194 = vmatpush.bf16.msra.mxu0 0
  %1195 = vmatpush.bf16.msra.mxu0 0
  %1196 = vmatpush.bf16.msra.mxu0 %v1009
  %1197 = vmatpush.bf16.msra.mxu0 %v993
  %1198 = vmatmul.bf16.gmra.mxu0 %v1048
  %v1199 = vpop.f32.mrf.mxu0
  %v1200 = vadd.f32 %v865, %v1199
  %v1201 = vpop.f32.mrf.mxu0
  %v1202 = vadd.f32 %v865, %v1201
  %1203 = vdwg.mxu0
  %1204 = vmatpush.bf16.msra.mxu0 0
  %1205 = vmatpush.bf16.msra.mxu0 0
  %1206 = vmatpush.bf16.msra.mxu0 0
  %1207 = vmatpush.bf16.msra.mxu0 0
  %1208 = vmatpush.bf16.msra.mxu0 0
  %1209 = vmatpush.bf16.msra.mxu0 0
  %1210 = vmatpush.bf16.msra.mxu0 %v1010
  %1211 = vmatpush.bf16.msra.mxu0 %v994
  %1212 = vmatmul.bf16.gmra.mxu0 %v1048
  %v1213 = vpop.f32.mrf.mxu0
  %v1214 = vadd.f32 %v866, %v1213
  %v1215 = vpop.f32.mrf.mxu0
  %v1216 = vadd.f32 %v866, %v1215
  %1217 = vdwg.mxu0
  %1218 = vmatpush.bf16.msra.mxu0 0
  %1219 = vmatpush.bf16.msra.mxu0 0
  %1220 = vmatpush.bf16.msra.mxu0 0
  %1221 = vmatpush.bf16.msra.mxu0 0
  %1222 = vmatpush.bf16.msra.mxu0 0
  %1223 = vmatpush.bf16.msra.mxu0 0
  %1224 = vmatpush.bf16.msra.mxu0 %v1011
  %1225 = vmatpush.bf16.msra.mxu0 %v995
  %1226 = vmatmul.bf16.gmra.mxu0 %v1048
  %v1227 = vpop.f32.mrf.mxu0
  %v1228 = vadd.f32 %v867, %v1227
  %v1229 = vpop.f32.mrf.mxu0
  %v1230 = vadd.f32 %v867, %v1229
  %1231 = vdwg.mxu0
  %1232 = vmatpush.bf16.msra.mxu0 0
  %1233 = vmatpush.bf16.msra.mxu0 0
  %1234 = vmatpush.bf16.msra.mxu0 0
  %1235 = vmatpush.bf16.msra.mxu0 0
  %1236 = vmatpush.bf16.msra.mxu0 0
  %1237 = vmatpush.bf16.msra.mxu0 0
  %1238 = vmatpush.bf16.msra.mxu0 %v1012
  %1239 = vmatpush.bf16.msra.mxu0 %v996
  %1240 = vmatmul.bf16.gmra.mxu0 %v1048
  %v1241 = vpop.f32.mrf.mxu0
  %v1242 = vadd.f32 %v868, %v1241
  %v1243 = vpop.f32.mrf.mxu0
  %v1244 = vadd.f32 %v868, %v1243
  %1245 = vdwg.mxu0
  %1246 = vmatpush.bf16.msra.mxu0 0
  %1247 = vmatpush.bf16.msra.mxu0 0
  %1248 = vmatpush.bf16.msra.mxu0 0
  %1249 = vmatpush.bf16.msra.mxu0 0
  %1250 = vmatpush.bf16.msra.mxu0 0
  %1251 = vmatpush.bf16.msra.mxu0 0
  %1252 = vmatpush.bf16.msra.mxu0 %v1013
  %1253 = vmatpush.bf16.msra.mxu0 %v997
  %1254 = vmatmul.bf16.gmra.mxu0 %v1048
  %v1255 = vpop.f32.mrf.mxu0
  %v1256 = vadd.f32 %v869, %v1255
  %v1257 = vpop.f32.mrf.mxu0
  %v1258 = vadd.f32 %v869, %v1257
  %1259 = vdwg.mxu0
  %1260 = vmatpush.bf16.msra.mxu0 0
  %1261 = vmatpush.bf16.msra.mxu0 0
  %1262 = vmatpush.bf16.msra.mxu0 0
  %1263 = vmatpush.bf16.msra.mxu0 0
  %1264 = vmatpush.bf16.msra.mxu0 0
  %1265 = vmatpush.bf16.msra.mxu0 0
  %1266 = vmatpush.bf16.msra.mxu0 %v1014
  %1267 = vmatpush.bf16.msra.mxu0 %v998
  %1268 = vmatmul.bf16.gmra.mxu0 %v1048
  %v1269 = vpop.f32.mrf.mxu0
  %v1270 = vadd.f32 %v870, %v1269
  %v1271 = vpop.f32.mrf.mxu0
  %v1272 = vadd.f32 %v870, %v1271
  %1273 = vdwg.mxu0
  %v1274 = vmax.f32 %v1060, 0.0
  %v1275 = vmax.f32 %v1074, 0.0
  %v1276 = vmax.f32 %v1088, 0.0
  %v1277 = vmax.f32 %v1102, 0.0
  %v1278 = vmax.f32 %v1116, 0.0
  %v1279 = vmax.f32 %v1130, 0.0
  %v1280 = vmax.f32 %v1144, 0.0
  %v1281 = vmax.f32 %v1158, 0.0
  %v1282 = vmax.f32 %v1172, 0.0
  %v1283 = vmax.f32 %v1186, 0.0
  %v1284 = vmax.f32 %v1200, 0.0
  %v1285 = vmax.f32 %v1214, 0.0
  %v1286 = vmax.f32 %v1228, 0.0
  %v1287 = vmax.f32 %v1242, 0.0
  %v1288 = vmax.f32 %v1256, 0.0
  %v1289 = vmax.f32 %v1270, 0.0
  %v1290 = vmax.f32 %v1062, 0.0
  %v1291 = vmax.f32 %v1076, 0.0
  %v1292 = vmax.f32 %v1090, 0.0
  %v1293 = vmax.f32 %v1104, 0.0
  %v1294 = vmax.f32 %v1118, 0.0
  %v1295 = vmax.f32 %v1132, 0.0
  %v1296 = vmax.f32 %v1146, 0.0
  %v1297 = vmax.f32 %v1160, 0.0
  %v1298 = vmax.f32 %v1174, 0.0
  %v1299 = vmax.f32 %v1188, 0.0
  %v1300 = vmax.f32 %v1202, 0.0
  %v1301 = vmax.f32 %v1216, 0.0
  %v1302 = vmax.f32 %v1230, 0.0
  %v1303 = vmax.f32 %v1244, 0.0
  %v1304 = vmax.f32 %v1258, 0.0
  %v1305 = vmax.f32 %v1272, 0.0
  %v1306 = vld [vmem:[%s23] sm:$0xf]
  %v1307 = vld [vmem:[%s23 + $0x4] sm:$0xf]
  %v1308 = vld [vmem:[%s23 + $0x8] sm:$0xf]
  %v1309 = vld [vmem:[%s23 + $0xc] sm:$0xf]
  %v1310 = vld [vmem:[%s23 + $0x10] sm:$0xf]
  %v1311 = vld [vmem:[%s23 + $0x14] sm:$0xf]
  %v1312 = vld [vmem:[%s23 + $0x18] sm:$0xf]
  %v1313 = vld [vmem:[%s23 + $0x1c] sm:$0xf]
  %v1314 = vld [vmem:[%s23 + $0x20] sm:$0xf]
  %v1315 = vld [vmem:[%s23 + $0x24] sm:$0xf]
  %v1316 = vld [vmem:[%s23 + $0x28] sm:$0xf]
  %v1317 = vld [vmem:[%s23 + $0x2c] sm:$0xf]
  %v1318 = vld [vmem:[%s23 + $0x30] sm:$0xf]
  %v1319 = vld [vmem:[%s23 + $0x34] sm:$0xf]
  %v1320 = vld [vmem:[%s23 + $0x38] sm:$0xf]
  %v1321 = vld [vmem:[%s23 + $0x3c] sm:$0xf]
  %v1322 = vld [vmem:[%s23 + $0x40] sm:$0xf]
  %v1323 = vld [vmem:[%s23 + $0x44] sm:$0xf]
  %v1324 = vld [vmem:[%s23 + $0x48] sm:$0xf]
  %v1325 = vld [vmem:[%s23 + $0x4c] sm:$0xf]
  %v1326 = vld [vmem:[%s23 + $0x50] sm:$0xf]
  %v1327 = vld [vmem:[%s23 + $0x54] sm:$0xf]
  %v1328 = vld [vmem:[%s23 + $0x58] sm:$0xf]
  %v1329 = vld [vmem:[%s23 + $0x5c] sm:$0xf]
  %v1330 = vld [vmem:[%s23 + $0x60] sm:$0xf]
  %v1331 = vld [vmem:[%s23 + $0x64] sm:$0xf]
  %v1332 = vld [vmem:[%s23 + $0x68] sm:$0xf]
  %v1333 = vld [vmem:[%s23 + $0x6c] sm:$0xf]
  %v1334 = vld [vmem:[%s23 + $0x70] sm:$0xf]
  %v1335 = vld [vmem:[%s23 + $0x74] sm:$0xf]
  %v1336 = vld [vmem:[%s23 + $0x78] sm:$0xf]
  %v1337 = vld [vmem:[%s23 + $0x7c] sm:$0xf]
  %v1338 = vld [vmem:[%s23 + $0x80] sm:$0xf]
  %v1339 = vld [vmem:[%s23 + $0x84] sm:$0xf]
  %v1340 = vld [vmem:[%s23 + $0x88] sm:$0xf]
  %v1341 = vld [vmem:[%s23 + $0x8c] sm:$0xf]
  %v1342 = vld [vmem:[%s23 + $0x90] sm:$0xf]
  %v1343 = vld [vmem:[%s23 + $0x94] sm:$0xf]
  %v1344 = vld [vmem:[%s23 + $0x98] sm:$0xf]
  %v1345 = vld [vmem:[%s23 + $0x9c] sm:$0xf]
  %v1346 = vld [vmem:[%s23 + $0xa0] sm:$0xf]
  %v1347 = vld [vmem:[%s23 + $0xa4] sm:$0xf]
  %v1348 = vld [vmem:[%s23 + $0xa8] sm:$0xf]
  %v1349 = vld [vmem:[%s23 + $0xac] sm:$0xf]
  %v1350 = vld [vmem:[%s23 + $0xb0] sm:$0xf]
  %v1351 = vld [vmem:[%s23 + $0xb4] sm:$0xf]
  %v1352 = vld [vmem:[%s23 + $0xb8] sm:$0xf]
  %v1353 = vld [vmem:[%s23 + $0xbc] sm:$0xf]
  %v1354 = vld [vmem:[%s23 + $0xc0] sm:$0xf]
  %v1355 = vld [vmem:[%s23 + $0xc4] sm:$0xf]
  %v1356 = vld [vmem:[%s23 + $0xc8] sm:$0xf]
  %v1357 = vld [vmem:[%s23 + $0xcc] sm:$0xf]
  %v1358 = vld [vmem:[%s23 + $0xd0] sm:$0xf]
  %v1359 = vld [vmem:[%s23 + $0xd4] sm:$0xf]
  %v1360 = vld [vmem:[%s23 + $0xd8] sm:$0xf]
  %v1361 = vld [vmem:[%s23 + $0xdc] sm:$0xf]
  %v1362 = vld [vmem:[%s23 + $0xe0] sm:$0xf]
  %v1363 = vld [vmem:[%s23 + $0xe4] sm:$0xf]
  %v1364 = vld [vmem:[%s23 + $0xe8] sm:$0xf]
  %v1365 = vld [vmem:[%s23 + $0xec] sm:$0xf]
  %v1366 = vld [vmem:[%s23 + $0xf0] sm:$0xf]
  %v1367 = vld [vmem:[%s23 + $0xf4] sm:$0xf]
  %v1368 = vld [vmem:[%s23 + $0xf8] sm:$0xf]
  %v1369 = vld [vmem:[%s23 + $0xfc] sm:$0xf]
  %v1370 = vld [vmem:[%s23 + $0x100] sm:$0xf]
  %v1371 = vld [vmem:[%s23 + $0x104] sm:$0xf]
  %v1372 = vld [vmem:[%s23 + $0x108] sm:$0xf]
  %v1373 = vld [vmem:[%s23 + $0x10c] sm:$0xf]
  %v1374 = vld [vmem:[%s23 + $0x110] sm:$0xf]
  %v1375 = vld [vmem:[%s23 + $0x114] sm:$0xf]
  %v1376 = vld [vmem:[%s23 + $0x118] sm:$0xf]
  %v1377 = vld [vmem:[%s23 + $0x11c] sm:$0xf]
  %v1378 = vld [vmem:[%s23 + $0x120] sm:$0xf]
  %v1379 = vld [vmem:[%s23 + $0x124] sm:$0xf]
  %v1380 = vld [vmem:[%s23 + $0x128] sm:$0xf]
  %v1381 = vld [vmem:[%s23 + $0x12c] sm:$0xf]
  %v1382 = vld [vmem:[%s23 + $0x130] sm:$0xf]
  %v1383 = vld [vmem:[%s23 + $0x134] sm:$0xf]
  %v1384 = vld [vmem:[%s23 + $0x138] sm:$0xf]
  %v1385 = vld [vmem:[%s23 + $0x13c] sm:$0xf]
  %v1386 = vld [vmem:[%s23 + $0x140] sm:$0xf]
  %v1387 = vld [vmem:[%s23 + $0x144] sm:$0xf]
  %v1388 = vld [vmem:[%s23 + $0x148] sm:$0xf]
  %v1389 = vld [vmem:[%s23 + $0x14c] sm:$0xf]
  %v1390 = vld [vmem:[%s23 + $0x150] sm:$0xf]
  %v1391 = vld [vmem:[%s23 + $0x154] sm:$0xf]
  %v1392 = vld [vmem:[%s23 + $0x158] sm:$0xf]
  %v1393 = vld [vmem:[%s23 + $0x15c] sm:$0xf]
  %v1394 = vld [vmem:[%s23 + $0x160] sm:$0xf]
  %v1395 = vld [vmem:[%s23 + $0x164] sm:$0xf]
  %v1396 = vld [vmem:[%s23 + $0x168] sm:$0xf]
  %v1397 = vld [vmem:[%s23 + $0x16c] sm:$0xf]
  %v1398 = vld [vmem:[%s23 + $0x170] sm:$0xf]
  %v1399 = vld [vmem:[%s23 + $0x174] sm:$0xf]
  %v1400 = vld [vmem:[%s23 + $0x178] sm:$0xf]
  %v1401 = vld [vmem:[%s23 + $0x17c] sm:$0xf]
  %v1402 = vld [vmem:[%s23 + $0x180] sm:$0xf]
  %v1403 = vld [vmem:[%s23 + $0x184] sm:$0xf]
  %v1404 = vld [vmem:[%s23 + $0x188] sm:$0xf]
  %v1405 = vld [vmem:[%s23 + $0x18c] sm:$0xf]
  %v1406 = vld [vmem:[%s23 + $0x190] sm:$0xf]
  %v1407 = vld [vmem:[%s23 + $0x194] sm:$0xf]
  %v1408 = vld [vmem:[%s23 + $0x198] sm:$0xf]
  %v1409 = vld [vmem:[%s23 + $0x19c] sm:$0xf]
  %v1410 = vld [vmem:[%s23 + $0x1a0] sm:$0xf]
  %v1411 = vld [vmem:[%s23 + $0x1a4] sm:$0xf]
  %v1412 = vld [vmem:[%s23 + $0x1a8] sm:$0xf]
  %v1413 = vld [vmem:[%s23 + $0x1ac] sm:$0xf]
  %v1414 = vld [vmem:[%s23 + $0x1b0] sm:$0xf]
  %v1415 = vld [vmem:[%s23 + $0x1b4] sm:$0xf]
  %v1416 = vld [vmem:[%s23 + $0x1b8] sm:$0xf]
  %v1417 = vld [vmem:[%s23 + $0x1bc] sm:$0xf]
  %v1418 = vld [vmem:[%s23 + $0x1c0] sm:$0xf]
  %v1419 = vld [vmem:[%s23 + $0x1c4] sm:$0xf]
  %v1420 = vld [vmem:[%s23 + $0x1c8] sm:$0xf]
  %v1421 = vld [vmem:[%s23 + $0x1cc] sm:$0xf]
  %v1422 = vld [vmem:[%s23 + $0x1d0] sm:$0xf]
  %v1423 = vld [vmem:[%s23 + $0x1d4] sm:$0xf]
  %v1424 = vld [vmem:[%s23 + $0x1d8] sm:$0xf]
  %v1425 = vld [vmem:[%s23 + $0x1dc] sm:$0xf]
  %v1426 = vld [vmem:[%s23 + $0x1e0] sm:$0xf]
  %v1427 = vld [vmem:[%s23 + $0x1e4] sm:$0xf]
  %v1428 = vld [vmem:[%s23 + $0x1e8] sm:$0xf]
  %v1429 = vld [vmem:[%s23 + $0x1ec] sm:$0xf]
  %v1430 = vld [vmem:[%s23 + $0x1f0] sm:$0xf]
  %v1431 = vld [vmem:[%s23 + $0x1f4] sm:$0xf]
  %v1432 = vld [vmem:[%s23 + $0x1f8] sm:$0xf]
  %v1433 = vld [vmem:[%s23 + $0x1fc] sm:$0xf]
  %v1434 = vld [vmem:[%s23 + $0x200] sm:$0xf]
  %v1435 = vld [vmem:[%s23 + $0x204] sm:$0xf]
  %v1436 = vld [vmem:[%s23 + $0x208] sm:$0xf]
  %v1437 = vld [vmem:[%s23 + $0x20c] sm:$0xf]
  %v1438 = vld [vmem:[%s23 + $0x210] sm:$0xf]
  %v1439 = vld [vmem:[%s23 + $0x214] sm:$0xf]
  %v1440 = vld [vmem:[%s23 + $0x218] sm:$0xf]
  %v1441 = vld [vmem:[%s23 + $0x21c] sm:$0xf]
  %v1442 = vld [vmem:[%s23 + $0x220] sm:$0xf]
  %v1443 = vld [vmem:[%s23 + $0x224] sm:$0xf]
  %v1444 = vld [vmem:[%s23 + $0x228] sm:$0xf]
  %v1445 = vld [vmem:[%s23 + $0x22c] sm:$0xf]
  %v1446 = vld [vmem:[%s23 + $0x230] sm:$0xf]
  %v1447 = vld [vmem:[%s23 + $0x234] sm:$0xf]
  %v1448 = vld [vmem:[%s23 + $0x238] sm:$0xf]
  %v1449 = vld [vmem:[%s23 + $0x23c] sm:$0xf]
  %v1450 = vld [vmem:[%s23 + $0x240] sm:$0xf]
  %v1451 = vld [vmem:[%s23 + $0x244] sm:$0xf]
  %v1452 = vld [vmem:[%s23 + $0x248] sm:$0xf]
  %v1453 = vld [vmem:[%s23 + $0x24c] sm:$0xf]
  %v1454 = vld [vmem:[%s23 + $0x250] sm:$0xf]
  %v1455 = vld [vmem:[%s23 + $0x254] sm:$0xf]
  %v1456 = vld [vmem:[%s23 + $0x258] sm:$0xf]
  %v1457 = vld [vmem:[%s23 + $0x25c] sm:$0xf]
  %v1458 = vld [vmem:[%s23 + $0x260] sm:$0xf]
  %v1459 = vld [vmem:[%s23 + $0x264] sm:$0xf]
  %v1460 = vld [vmem:[%s23 + $0x268] sm:$0xf]
  %v1461 = vld [vmem:[%s23 + $0x26c] sm:$0xf]
  %v1462 = vld [vmem:[%s23 + $0x270] sm:$0xf]
  %v1463 = vld [vmem:[%s23 + $0x274] sm:$0xf]
  %v1464 = vld [vmem:[%s23 + $0x278] sm:$0xf]
  %v1465 = vld [vmem:[%s23 + $0x27c] sm:$0xf]
  %v1466 = vld [vmem:[%s23 + $0x280] sm:$0xf]
  %v1467 = vld [vmem:[%s23 + $0x284] sm:$0xf]
  %v1468 = vld [vmem:[%s23 + $0x288] sm:$0xf]
  %v1469 = vld [vmem:[%s23 + $0x28c] sm:$0xf]
  %v1470 = vld [vmem:[%s23 + $0x290] sm:$0xf]
  %v1471 = vld [vmem:[%s23 + $0x294] sm:$0xf]
  %v1472 = vld [vmem:[%s23 + $0x298] sm:$0xf]
  %v1473 = vld [vmem:[%s23 + $0x29c] sm:$0xf]
  %v1474 = vld [vmem:[%s23 + $0x2a0] sm:$0xf]
  %v1475 = vld [vmem:[%s23 + $0x2a4] sm:$0xf]
  %v1476 = vld [vmem:[%s23 + $0x2a8] sm:$0xf]
  %v1477 = vld [vmem:[%s23 + $0x2ac] sm:$0xf]
  %v1478 = vld [vmem:[%s23 + $0x2b0] sm:$0xf]
  %v1479 = vld [vmem:[%s23 + $0x2b4] sm:$0xf]
  %v1480 = vld [vmem:[%s23 + $0x2b8] sm:$0xf]
  %v1481 = vld [vmem:[%s23 + $0x2bc] sm:$0xf]
  %v1482 = vld [vmem:[%s23 + $0x2c0] sm:$0xf]
  %v1483 = vld [vmem:[%s23 + $0x2c4] sm:$0xf]
  %v1484 = vld [vmem:[%s23 + $0x2c8] sm:$0xf]
  %v1485 = vld [vmem:[%s23 + $0x2cc] sm:$0xf]
  %v1486 = vld [vmem:[%s23 + $0x2d0] sm:$0xf]
  %v1487 = vld [vmem:[%s23 + $0x2d4] sm:$0xf]
  %v1488 = vld [vmem:[%s23 + $0x2d8] sm:$0xf]
  %v1489 = vld [vmem:[%s23 + $0x2dc] sm:$0xf]
  %v1490 = vld [vmem:[%s23 + $0x2e0] sm:$0xf]
  %v1491 = vld [vmem:[%s23 + $0x2e4] sm:$0xf]
  %v1492 = vld [vmem:[%s23 + $0x2e8] sm:$0xf]
  %v1493 = vld [vmem:[%s23 + $0x2ec] sm:$0xf]
  %v1494 = vld [vmem:[%s23 + $0x2f0] sm:$0xf]
  %v1495 = vld [vmem:[%s23 + $0x2f4] sm:$0xf]
  %v1496 = vld [vmem:[%s23 + $0x2f8] sm:$0xf]
  %v1497 = vld [vmem:[%s23 + $0x2fc] sm:$0xf]
  %v1498 = vld [vmem:[%s23 + $0x300] sm:$0xf]
  %v1499 = vld [vmem:[%s23 + $0x304] sm:$0xf]
  %v1500 = vld [vmem:[%s23 + $0x308] sm:$0xf]
  %v1501 = vld [vmem:[%s23 + $0x30c] sm:$0xf]
  %v1502 = vld [vmem:[%s23 + $0x310] sm:$0xf]
  %v1503 = vld [vmem:[%s23 + $0x314] sm:$0xf]
  %v1504 = vld [vmem:[%s23 + $0x318] sm:$0xf]
  %v1505 = vld [vmem:[%s23 + $0x31c] sm:$0xf]
  %v1506 = vld [vmem:[%s23 + $0x320] sm:$0xf]
  %v1507 = vld [vmem:[%s23 + $0x324] sm:$0xf]
  %v1508 = vld [vmem:[%s23 + $0x328] sm:$0xf]
  %v1509 = vld [vmem:[%s23 + $0x32c] sm:$0xf]
  %v1510 = vld [vmem:[%s23 + $0x330] sm:$0xf]
  %v1511 = vld [vmem:[%s23 + $0x334] sm:$0xf]
  %v1512 = vld [vmem:[%s23 + $0x338] sm:$0xf]
  %v1513 = vld [vmem:[%s23 + $0x33c] sm:$0xf]
  %v1514 = vld [vmem:[%s23 + $0x340] sm:$0xf]
  %v1515 = vld [vmem:[%s23 + $0x344] sm:$0xf]
  %v1516 = vld [vmem:[%s23 + $0x348] sm:$0xf]
  %v1517 = vld [vmem:[%s23 + $0x34c] sm:$0xf]
  %v1518 = vld [vmem:[%s23 + $0x350] sm:$0xf]
  %v1519 = vld [vmem:[%s23 + $0x354] sm:$0xf]
  %v1520 = vld [vmem:[%s23 + $0x358] sm:$0xf]
  %v1521 = vld [vmem:[%s23 + $0x35c] sm:$0xf]
  %v1522 = vld [vmem:[%s23 + $0x360] sm:$0xf]
  %v1523 = vld [vmem:[%s23 + $0x364] sm:$0xf]
  %v1524 = vld [vmem:[%s23 + $0x368] sm:$0xf]
  %v1525 = vld [vmem:[%s23 + $0x36c] sm:$0xf]
  %v1526 = vld [vmem:[%s23 + $0x370] sm:$0xf]
  %v1527 = vld [vmem:[%s23 + $0x374] sm:$0xf]
  %v1528 = vld [vmem:[%s23 + $0x378] sm:$0xf]
  %v1529 = vld [vmem:[%s23 + $0x37c] sm:$0xf]
  %v1530 = vld [vmem:[%s23 + $0x380] sm:$0xf]
  %v1531 = vld [vmem:[%s23 + $0x384] sm:$0xf]
  %v1532 = vld [vmem:[%s23 + $0x388] sm:$0xf]
  %v1533 = vld [vmem:[%s23 + $0x38c] sm:$0xf]
  %v1534 = vld [vmem:[%s23 + $0x390] sm:$0xf]
  %v1535 = vld [vmem:[%s23 + $0x394] sm:$0xf]
  %v1536 = vld [vmem:[%s23 + $0x398] sm:$0xf]
  %v1537 = vld [vmem:[%s23 + $0x39c] sm:$0xf]
  %v1538 = vld [vmem:[%s23 + $0x3a0] sm:$0xf]
  %v1539 = vld [vmem:[%s23 + $0x3a4] sm:$0xf]
  %v1540 = vld [vmem:[%s23 + $0x3a8] sm:$0xf]
  %v1541 = vld [vmem:[%s23 + $0x3ac] sm:$0xf]
  %v1542 = vld [vmem:[%s23 + $0x3b0] sm:$0xf]
  %v1543 = vld [vmem:[%s23 + $0x3b4] sm:$0xf]
  %v1544 = vld [vmem:[%s23 + $0x3b8] sm:$0xf]
  %v1545 = vld [vmem:[%s23 + $0x3bc] sm:$0xf]
  %v1546 = vld [vmem:[%s23 + $0x3c0] sm:$0xf]
  %v1547 = vld [vmem:[%s23 + $0x3c4] sm:$0xf]
  %v1548 = vld [vmem:[%s23 + $0x3c8] sm:$0xf]
  %v1549 = vld [vmem:[%s23 + $0x3cc] sm:$0xf]
  %v1550 = vld [vmem:[%s23 + $0x3d0] sm:$0xf]
  %v1551 = vld [vmem:[%s23 + $0x3d4] sm:$0xf]
  %v1552 = vld [vmem:[%s23 + $0x3d8] sm:$0xf]
  %v1553 = vld [vmem:[%s23 + $0x3dc] sm:$0xf]
  %v1554 = vld [vmem:[%s23 + $0x3e0] sm:$0xf]
  %v1555 = vld [vmem:[%s23 + $0x3e4] sm:$0xf]
  %v1556 = vld [vmem:[%s23 + $0x3e8] sm:$0xf]
  %v1557 = vld [vmem:[%s23 + $0x3ec] sm:$0xf]
  %v1558 = vld [vmem:[%s23 + $0x3f0] sm:$0xf]
  %v1559 = vld [vmem:[%s23 + $0x3f4] sm:$0xf]
  %v1560 = vld [vmem:[%s23 + $0x3f8] sm:$0xf]
  %v1561 = vld [vmem:[%s23 + $0x3fc] sm:$0xf]
  %v1562 = vpack.c.bf16 %v1290, %v1274
  %v1563 = vpack.c.bf16 %v1291, %v1275
  %v1564 = vpack.c.bf16 %v1292, %v1276
  %v1565 = vpack.c.bf16 %v1293, %v1277
  %v1566 = vpack.c.bf16 %v1294, %v1278
  %v1567 = vpack.c.bf16 %v1295, %v1279
  %v1568 = vpack.c.bf16 %v1296, %v1280
  %v1569 = vpack.c.bf16 %v1297, %v1281
  %v1570 = vpack.c.bf16 %v1298, %v1282
  %v1571 = vpack.c.bf16 %v1299, %v1283
  %v1572 = vpack.c.bf16 %v1300, %v1284
  %v1573 = vpack.c.bf16 %v1301, %v1285
  %v1574 = vpack.c.bf16 %v1302, %v1286
  %v1575 = vpack.c.bf16 %v1303, %v1287
  %v1576 = vpack.c.bf16 %v1304, %v1288
  %v1577 = vpack.c.bf16 %v1305, %v1289
  %v1578 = vld [vmem:[%s25] sm:$0x1]
  %v1580 = vperm.slane %v1578, 0
  %v1838 = vunpack.c.l.b16 %v1306
  %v1839 = vunpack.c.l.b16 %v1307
  %v1840 = vunpack.c.l.b16 %v1308
  %v1841 = vunpack.c.l.b16 %v1309
  %v1842 = vunpack.c.l.b16 %v1310
  %v1843 = vunpack.c.l.b16 %v1311
  %v1844 = vunpack.c.l.b16 %v1312
  %v1845 = vunpack.c.l.b16 %v1313
  %v1846 = vunpack.c.l.b16 %v1314
  %v1847 = vunpack.c.l.b16 %v1315
  %v1848 = vunpack.c.l.b16 %v1316
  %v1849 = vunpack.c.l.b16 %v1317
  %v1850 = vunpack.c.l.b16 %v1318
  %v1851 = vunpack.c.l.b16 %v1319
  %v1852 = vunpack.c.l.b16 %v1320
  %v1853 = vunpack.c.l.b16 %v1321
  %v1854 = vunpack.c.l.b16 %v1322
  %v1855 = vunpack.c.l.b16 %v1323
  %v1856 = vunpack.c.l.b16 %v1324
  %v1857 = vunpack.c.l.b16 %v1325
  %v1858 = vunpack.c.l.b16 %v1326
  %v1859 = vunpack.c.l.b16 %v1327
  %v1860 = vunpack.c.l.b16 %v1328
  %v1861 = vunpack.c.l.b16 %v1329
  %v1862 = vunpack.c.l.b16 %v1330
  %v1863 = vunpack.c.l.b16 %v1331
  %v1864 = vunpack.c.l.b16 %v1332
  %v1865 = vunpack.c.l.b16 %v1333
  %v1866 = vunpack.c.l.b16 %v1334
  %v1867 = vunpack.c.l.b16 %v1335
  %v1868 = vunpack.c.l.b16 %v1336
  %v1869 = vunpack.c.l.b16 %v1337
  %v1870 = vunpack.c.l.b16 %v1338
  %v1871 = vunpack.c.l.b16 %v1339
  %v1872 = vunpack.c.l.b16 %v1340
  %v1873 = vunpack.c.l.b16 %v1341
  %v1874 = vunpack.c.l.b16 %v1342
  %v1875 = vunpack.c.l.b16 %v1343
  %v1876 = vunpack.c.l.b16 %v1344
  %v1877 = vunpack.c.l.b16 %v1345
  %v1878 = vunpack.c.l.b16 %v1346
  %v1879 = vunpack.c.l.b16 %v1347
  %v1880 = vunpack.c.l.b16 %v1348
  %v1881 = vunpack.c.l.b16 %v1349
  %v1882 = vunpack.c.l.b16 %v1350
  %v1883 = vunpack.c.l.b16 %v1351
  %v1884 = vunpack.c.l.b16 %v1352
  %v1885 = vunpack.c.l.b16 %v1353
  %v1886 = vunpack.c.l.b16 %v1354
  %v1887 = vunpack.c.l.b16 %v1355
  %v1888 = vunpack.c.l.b16 %v1356
  %v1889 = vunpack.c.l.b16 %v1357
  %v1890 = vunpack.c.l.b16 %v1358
  %v1891 = vunpack.c.l.b16 %v1359
  %v1892 = vunpack.c.l.b16 %v1360
  %v1893 = vunpack.c.l.b16 %v1361
  %v1894 = vunpack.c.l.b16 %v1362
  %v1895 = vunpack.c.l.b16 %v1363
  %v1896 = vunpack.c.l.b16 %v1364
  %v1897 = vunpack.c.l.b16 %v1365
  %v1898 = vunpack.c.l.b16 %v1366
  %v1899 = vunpack.c.l.b16 %v1367
  %v1900 = vunpack.c.l.b16 %v1368
  %v1901 = vunpack.c.l.b16 %v1369
  %v1902 = vunpack.c.l.b16 %v1370
  %v1903 = vunpack.c.l.b16 %v1371
  %v1904 = vunpack.c.l.b16 %v1372
  %v1905 = vunpack.c.l.b16 %v1373
  %v1906 = vunpack.c.l.b16 %v1374
  %v1907 = vunpack.c.l.b16 %v1375
  %v1908 = vunpack.c.l.b16 %v1376
  %v1909 = vunpack.c.l.b16 %v1377
  %v1910 = vunpack.c.l.b16 %v1378
  %v1911 = vunpack.c.l.b16 %v1379
  %v1912 = vunpack.c.l.b16 %v1380
  %v1913 = vunpack.c.l.b16 %v1381
  %v1914 = vunpack.c.l.b16 %v1382
  %v1915 = vunpack.c.l.b16 %v1383
  %v1916 = vunpack.c.l.b16 %v1384
  %v1917 = vunpack.c.l.b16 %v1385
  %v1918 = vunpack.c.l.b16 %v1386
  %v1919 = vunpack.c.l.b16 %v1387
  %v1920 = vunpack.c.l.b16 %v1388
  %v1921 = vunpack.c.l.b16 %v1389
  %v1922 = vunpack.c.l.b16 %v1390
  %v1923 = vunpack.c.l.b16 %v1391
  %v1924 = vunpack.c.l.b16 %v1392
  %v1925 = vunpack.c.l.b16 %v1393
  %v1926 = vunpack.c.l.b16 %v1394
  %v1927 = vunpack.c.l.b16 %v1395
  %v1928 = vunpack.c.l.b16 %v1396
  %v1929 = vunpack.c.l.b16 %v1397
  %v1930 = vunpack.c.l.b16 %v1398
  %v1931 = vunpack.c.l.b16 %v1399
  %v1932 = vunpack.c.l.b16 %v1400
  %v1933 = vunpack.c.l.b16 %v1401
  %v1934 = vunpack.c.l.b16 %v1402
  %v1935 = vunpack.c.l.b16 %v1403
  %v1936 = vunpack.c.l.b16 %v1404
  %v1937 = vunpack.c.l.b16 %v1405
  %v1938 = vunpack.c.l.b16 %v1406
  %v1939 = vunpack.c.l.b16 %v1407
  %v1940 = vunpack.c.l.b16 %v1408
  %v1941 = vunpack.c.l.b16 %v1409
  %v1942 = vunpack.c.l.b16 %v1410
  %v1943 = vunpack.c.l.b16 %v1411
  %v1944 = vunpack.c.l.b16 %v1412
  %v1945 = vunpack.c.l.b16 %v1413
  %v1946 = vunpack.c.l.b16 %v1414
  %v1947 = vunpack.c.l.b16 %v1415
  %v1948 = vunpack.c.l.b16 %v1416
  %v1949 = vunpack.c.l.b16 %v1417
  %v1950 = vunpack.c.l.b16 %v1418
  %v1951 = vunpack.c.l.b16 %v1419
  %v1952 = vunpack.c.l.b16 %v1420
  %v1953 = vunpack.c.l.b16 %v1421
  %v1954 = vunpack.c.l.b16 %v1422
  %v1955 = vunpack.c.l.b16 %v1423
  %v1956 = vunpack.c.l.b16 %v1424
  %v1957 = vunpack.c.l.b16 %v1425
  %v1958 = vunpack.c.l.b16 %v1426
  %v1959 = vunpack.c.l.b16 %v1427
  %v1960 = vunpack.c.l.b16 %v1428
  %v1961 = vunpack.c.l.b16 %v1429
  %v1962 = vunpack.c.l.b16 %v1430
  %v1963 = vunpack.c.l.b16 %v1431
  %v1964 = vunpack.c.l.b16 %v1432
  %v1965 = vunpack.c.l.b16 %v1433
  %v1966 = vunpack.c.l.b16 %v1434
  %v1967 = vunpack.c.l.b16 %v1435
  %v1968 = vunpack.c.l.b16 %v1436
  %v1969 = vunpack.c.l.b16 %v1437
  %v1970 = vunpack.c.l.b16 %v1438
  %v1971 = vunpack.c.l.b16 %v1439
  %v1972 = vunpack.c.l.b16 %v1440
  %v1973 = vunpack.c.l.b16 %v1441
  %v1974 = vunpack.c.l.b16 %v1442
  %v1975 = vunpack.c.l.b16 %v1443
  %v1976 = vunpack.c.l.b16 %v1444
  %v1977 = vunpack.c.l.b16 %v1445
  %v1978 = vunpack.c.l.b16 %v1446
  %v1979 = vunpack.c.l.b16 %v1447
  %v1980 = vunpack.c.l.b16 %v1448
  %v1981 = vunpack.c.l.b16 %v1449
  %v1982 = vunpack.c.l.b16 %v1450
  %v1983 = vunpack.c.l.b16 %v1451
  %v1984 = vunpack.c.l.b16 %v1452
  %v1985 = vunpack.c.l.b16 %v1453
  %v1986 = vunpack.c.l.b16 %v1454
  %v1987 = vunpack.c.l.b16 %v1455
  %v1988 = vunpack.c.l.b16 %v1456
  %v1989 = vunpack.c.l.b16 %v1457
  %v1990 = vunpack.c.l.b16 %v1458
  %v1991 = vunpack.c.l.b16 %v1459
  %v1992 = vunpack.c.l.b16 %v1460
  %v1993 = vunpack.c.l.b16 %v1461
  %v1994 = vunpack.c.l.b16 %v1462
  %v1995 = vunpack.c.l.b16 %v1463
  %v1996 = vunpack.c.l.b16 %v1464
  %v1997 = vunpack.c.l.b16 %v1465
  %v1998 = vunpack.c.l.b16 %v1466
  %v1999 = vunpack.c.l.b16 %v1467
  %v2000 = vunpack.c.l.b16 %v1468
  %v2001 = vunpack.c.l.b16 %v1469
  %v2002 = vunpack.c.l.b16 %v1470
  %v2003 = vunpack.c.l.b16 %v1471
  %v2004 = vunpack.c.l.b16 %v1472
  %v2005 = vunpack.c.l.b16 %v1473
  %v2006 = vunpack.c.l.b16 %v1474
  %v2007 = vunpack.c.l.b16 %v1475
  %v2008 = vunpack.c.l.b16 %v1476
  %v2009 = vunpack.c.l.b16 %v1477
  %v2010 = vunpack.c.l.b16 %v1478
  %v2011 = vunpack.c.l.b16 %v1479
  %v2012 = vunpack.c.l.b16 %v1480
  %v2013 = vunpack.c.l.b16 %v1481
  %v2014 = vunpack.c.l.b16 %v1482
  %v2015 = vunpack.c.l.b16 %v1483
  %v2016 = vunpack.c.l.b16 %v1484
  %v2017 = vunpack.c.l.b16 %v1485
  %v2018 = vunpack.c.l.b16 %v1486
  %v2019 = vunpack.c.l.b16 %v1487
  %v2020 = vunpack.c.l.b16 %v1488
  %v2021 = vunpack.c.l.b16 %v1489
  %v2022 = vunpack.c.l.b16 %v1490
  %v2023 = vunpack.c.l.b16 %v1491
  %v2024 = vunpack.c.l.b16 %v1492
  %v2025 = vunpack.c.l.b16 %v1493
  %v2026 = vunpack.c.l.b16 %v1494
  %v2027 = vunpack.c.l.b16 %v1495
  %v2028 = vunpack.c.l.b16 %v1496
  %v2029 = vunpack.c.l.b16 %v1497
  %v2030 = vunpack.c.l.b16 %v1498
  %v2031 = vunpack.c.l.b16 %v1499
  %v2032 = vunpack.c.l.b16 %v1500
  %v2033 = vunpack.c.l.b16 %v1501
  %v2034 = vunpack.c.l.b16 %v1502
  %v2035 = vunpack.c.l.b16 %v1503
  %v2036 = vunpack.c.l.b16 %v1504
  %v2037 = vunpack.c.l.b16 %v1505
  %v2038 = vunpack.c.l.b16 %v1506
  %v2039 = vunpack.c.l.b16 %v1507
  %v2040 = vunpack.c.l.b16 %v1508
  %v2041 = vunpack.c.l.b16 %v1509
  %v2042 = vunpack.c.l.b16 %v1510
  %v2043 = vunpack.c.l.b16 %v1511
  %v2044 = vunpack.c.l.b16 %v1512
  %v2045 = vunpack.c.l.b16 %v1513
  %v2046 = vunpack.c.l.b16 %v1514
  %v2047 = vunpack.c.l.b16 %v1515
  %v2048 = vunpack.c.l.b16 %v1516
  %v2049 = vunpack.c.l.b16 %v1517
  %v2050 = vunpack.c.l.b16 %v1518
  %v2051 = vunpack.c.l.b16 %v1519
  %v2052 = vunpack.c.l.b16 %v1520
  %v2053 = vunpack.c.l.b16 %v1521
  %v2054 = vunpack.c.l.b16 %v1522
  %v2055 = vunpack.c.l.b16 %v1523
  %v2056 = vunpack.c.l.b16 %v1524
  %v2057 = vunpack.c.l.b16 %v1525
  %v2058 = vunpack.c.l.b16 %v1526
  %v2059 = vunpack.c.l.b16 %v1527
  %v2060 = vunpack.c.l.b16 %v1528
  %v2061 = vunpack.c.l.b16 %v1529
  %v2062 = vunpack.c.l.b16 %v1530
  %v2063 = vunpack.c.l.b16 %v1531
  %v2064 = vunpack.c.l.b16 %v1532
  %v2065 = vunpack.c.l.b16 %v1533
  %v2066 = vunpack.c.l.b16 %v1534
  %v2067 = vunpack.c.l.b16 %v1535
  %v2068 = vunpack.c.l.b16 %v1536
  %v2069 = vunpack.c.l.b16 %v1537
  %v2070 = vunpack.c.l.b16 %v1538
  %v2071 = vunpack.c.l.b16 %v1539
  %v2072 = vunpack.c.l.b16 %v1540
  %v2073 = vunpack.c.l.b16 %v1541
  %v2074 = vunpack.c.l.b16 %v1542
  %v2075 = vunpack.c.l.b16 %v1543
  %v2076 = vunpack.c.l.b16 %v1544
  %v2077 = vunpack.c.l.b16 %v1545
  %v2078 = vunpack.c.l.b16 %v1546
  %v2079 = vunpack.c.l.b16 %v1547
  %v2080 = vunpack.c.l.b16 %v1548
  %v2081 = vunpack.c.l.b16 %v1549
  %v2082 = vunpack.c.l.b16 %v1550
  %v2083 = vunpack.c.l.b16 %v1551
  %v2084 = vunpack.c.l.b16 %v1552
  %v2085 = vunpack.c.l.b16 %v1553
  %v2086 = vunpack.c.l.b16 %v1554
  %v2087 = vunpack.c.l.b16 %v1555
  %v2088 = vunpack.c.l.b16 %v1556
  %v2089 = vunpack.c.l.b16 %v1557
  %v2090 = vunpack.c.l.b16 %v1558
  %v2091 = vunpack.c.l.b16 %v1559
  %v2092 = vunpack.c.l.b16 %v1560
  %v2093 = vunpack.c.l.b16 %v1561
  %v2094 = vpack.c.b16 %v1839, %v1838
  %v2095 = vpack.c.b16 %v1841, %v1840
  %v2096 = vpack.c.b16 %v1843, %v1842
  %v2097 = vpack.c.b16 %v1845, %v1844
  %v2098 = vpack.c.b16 %v1847, %v1846
  %v2099 = vpack.c.b16 %v1849, %v1848
  %v2100 = vpack.c.b16 %v1851, %v1850
  %v2101 = vpack.c.b16 %v1853, %v1852
  %v2102 = vpack.c.b16 %v1855, %v1854
  %v2103 = vpack.c.b16 %v1857, %v1856
  %v2104 = vpack.c.b16 %v1859, %v1858
  %v2105 = vpack.c.b16 %v1861, %v1860
  %v2106 = vpack.c.b16 %v1863, %v1862
  %v2107 = vpack.c.b16 %v1865, %v1864
  %v2108 = vpack.c.b16 %v1867, %v1866
  %v2109 = vpack.c.b16 %v1869, %v1868
  %v2110 = vpack.c.b16 %v1871, %v1870
  %v2111 = vpack.c.b16 %v1873, %v1872
  %v2112 = vpack.c.b16 %v1875, %v1874
  %v2113 = vpack.c.b16 %v1877, %v1876
  %v2114 = vpack.c.b16 %v1879, %v1878
  %v2115 = vpack.c.b16 %v1881, %v1880
  %v2116 = vpack.c.b16 %v1883, %v1882
  %v2117 = vpack.c.b16 %v1885, %v1884
  %v2118 = vpack.c.b16 %v1887, %v1886
  %v2119 = vpack.c.b16 %v1889, %v1888
  %v2120 = vpack.c.b16 %v1891, %v1890
  %v2121 = vpack.c.b16 %v1893, %v1892
  %v2122 = vpack.c.b16 %v1895, %v1894
  %v2123 = vpack.c.b16 %v1897, %v1896
  %v2124 = vpack.c.b16 %v1899, %v1898
  %v2125 = vpack.c.b16 %v1901, %v1900
  %v2126 = vpack.c.b16 %v1903, %v1902
  %v2127 = vpack.c.b16 %v1905, %v1904
  %v2128 = vpack.c.b16 %v1907, %v1906
  %v2129 = vpack.c.b16 %v1909, %v1908
  %v2130 = vpack.c.b16 %v1911, %v1910
  %v2131 = vpack.c.b16 %v1913, %v1912
  %v2132 = vpack.c.b16 %v1915, %v1914
  %v2133 = vpack.c.b16 %v1917, %v1916
  %v2134 = vpack.c.b16 %v1919, %v1918
  %v2135 = vpack.c.b16 %v1921, %v1920
  %v2136 = vpack.c.b16 %v1923, %v1922
  %v2137 = vpack.c.b16 %v1925, %v1924
  %v2138 = vpack.c.b16 %v1927, %v1926
  %v2139 = vpack.c.b16 %v1929, %v1928
  %v2140 = vpack.c.b16 %v1931, %v1930
  %v2141 = vpack.c.b16 %v1933, %v1932
  %v2142 = vpack.c.b16 %v1935, %v1934
  %v2143 = vpack.c.b16 %v1937, %v1936
  %v2144 = vpack.c.b16 %v1939, %v1938
  %v2145 = vpack.c.b16 %v1941, %v1940
  %v2146 = vpack.c.b16 %v1943, %v1942
  %v2147 = vpack.c.b16 %v1945, %v1944
  %v2148 = vpack.c.b16 %v1947, %v1946
  %v2149 = vpack.c.b16 %v1949, %v1948
  %v2150 = vpack.c.b16 %v1951, %v1950
  %v2151 = vpack.c.b16 %v1953, %v1952
  %v2152 = vpack.c.b16 %v1955, %v1954
  %v2153 = vpack.c.b16 %v1957, %v1956
  %v2154 = vpack.c.b16 %v1959, %v1958
  %v2155 = vpack.c.b16 %v1961, %v1960
  %v2156 = vpack.c.b16 %v1963, %v1962
  %v2157 = vpack.c.b16 %v1965, %v1964
  %v2158 = vpack.c.b16 %v1967, %v1966
  %v2159 = vpack.c.b16 %v1969, %v1968
  %v2160 = vpack.c.b16 %v1971, %v1970
  %v2161 = vpack.c.b16 %v1973, %v1972
  %v2162 = vpack.c.b16 %v1975, %v1974
  %v2163 = vpack.c.b16 %v1977, %v1976
  %v2164 = vpack.c.b16 %v1979, %v1978
  %v2165 = vpack.c.b16 %v1981, %v1980
  %v2166 = vpack.c.b16 %v1983, %v1982
  %v2167 = vpack.c.b16 %v1985, %v1984
  %v2168 = vpack.c.b16 %v1987, %v1986
  %v2169 = vpack.c.b16 %v1989, %v1988
  %v2170 = vpack.c.b16 %v1991, %v1990
  %v2171 = vpack.c.b16 %v1993, %v1992
  %v2172 = vpack.c.b16 %v1995, %v1994
  %v2173 = vpack.c.b16 %v1997, %v1996
  %v2174 = vpack.c.b16 %v1999, %v1998
  %v2175 = vpack.c.b16 %v2001, %v2000
  %v2176 = vpack.c.b16 %v2003, %v2002
  %v2177 = vpack.c.b16 %v2005, %v2004
  %v2178 = vpack.c.b16 %v2007, %v2006
  %v2179 = vpack.c.b16 %v2009, %v2008
  %v2180 = vpack.c.b16 %v2011, %v2010
  %v2181 = vpack.c.b16 %v2013, %v2012
  %v2182 = vpack.c.b16 %v2015, %v2014
  %v2183 = vpack.c.b16 %v2017, %v2016
  %v2184 = vpack.c.b16 %v2019, %v2018
  %v2185 = vpack.c.b16 %v2021, %v2020
  %v2186 = vpack.c.b16 %v2023, %v2022
  %v2187 = vpack.c.b16 %v2025, %v2024
  %v2188 = vpack.c.b16 %v2027, %v2026
  %v2189 = vpack.c.b16 %v2029, %v2028
  %v2190 = vpack.c.b16 %v2031, %v2030
  %v2191 = vpack.c.b16 %v2033, %v2032
  %v2192 = vpack.c.b16 %v2035, %v2034
  %v2193 = vpack.c.b16 %v2037, %v2036
  %v2194 = vpack.c.b16 %v2039, %v2038
  %v2195 = vpack.c.b16 %v2041, %v2040
  %v2196 = vpack.c.b16 %v2043, %v2042
  %v2197 = vpack.c.b16 %v2045, %v2044
  %v2198 = vpack.c.b16 %v2047, %v2046
  %v2199 = vpack.c.b16 %v2049, %v2048
  %v2200 = vpack.c.b16 %v2051, %v2050
  %v2201 = vpack.c.b16 %v2053, %v2052
  %v2202 = vpack.c.b16 %v2055, %v2054
  %v2203 = vpack.c.b16 %v2057, %v2056
  %v2204 = vpack.c.b16 %v2059, %v2058
  %v2205 = vpack.c.b16 %v2061, %v2060
  %v2206 = vpack.c.b16 %v2063, %v2062
  %v2207 = vpack.c.b16 %v2065, %v2064
  %v2208 = vpack.c.b16 %v2067, %v2066
  %v2209 = vpack.c.b16 %v2069, %v2068
  %v2210 = vpack.c.b16 %v2071, %v2070
  %v2211 = vpack.c.b16 %v2073, %v2072
  %v2212 = vpack.c.b16 %v2075, %v2074
  %v2213 = vpack.c.b16 %v2077, %v2076
  %v2214 = vpack.c.b16 %v2079, %v2078
  %v2215 = vpack.c.b16 %v2081, %v2080
  %v2216 = vpack.c.b16 %v2083, %v2082
  %v2217 = vpack.c.b16 %v2085, %v2084
  %v2218 = vpack.c.b16 %v2087, %v2086
  %v2219 = vpack.c.b16 %v2089, %v2088
  %v2220 = vpack.c.b16 %v2091, %v2090
  %v2221 = vpack.c.b16 %v2093, %v2092
  %2350 = vmatpush.bf16.msra.mxu0 %v2101
  %2351 = vmatpush.bf16.msra.mxu0 %v2100
  %2352 = vmatpush.bf16.msra.mxu0 %v2099
  %2353 = vmatpush.bf16.msra.mxu0 %v2098
  %2354 = vmatpush.bf16.msra.mxu0 %v2097
  %2355 = vmatpush.bf16.msra.mxu0 %v2096
  %2356 = vmatpush.bf16.msra.mxu0 %v2095
  %2357 = vmatpush.bf16.msra.mxu0 %v2094
  %2358 = vmatmul.bf16.gmra.mxu0 %v1562
  %v2359 = vpop.f32.mrf.mxu0
  %v2360 = vadd.f32 %v1580, %v2359
  %v2361 = vpop.f32.mrf.mxu0
  %v2362 = vadd.f32 %v1580, %v2361
  %2363 = vdwg.mxu0
  %2364 = vmatpush.bf16.msra.mxu0 %v2109
  %2365 = vmatpush.bf16.msra.mxu0 %v2108
  %2366 = vmatpush.bf16.msra.mxu0 %v2107
  %2367 = vmatpush.bf16.msra.mxu0 %v2106
  %2368 = vmatpush.bf16.msra.mxu0 %v2105
  %2369 = vmatpush.bf16.msra.mxu0 %v2104
  %2370 = vmatpush.bf16.msra.mxu0 %v2103
  %2371 = vmatpush.bf16.msra.mxu0 %v2102
  %2372 = vmatmul.bf16.gmra.mxu0 %v1563
  %v2373 = vpop.f32.mrf.mxu0
  %v2374 = vadd.f32 %v2360, %v2373
  %v2375 = vpop.f32.mrf.mxu0
  %v2376 = vadd.f32 %v2362, %v2375
  %2377 = vdwg.mxu0
  %2378 = vmatpush.bf16.msra.mxu0 %v2117
  %2379 = vmatpush.bf16.msra.mxu0 %v2116
  %2380 = vmatpush.bf16.msra.mxu0 %v2115
  %2381 = vmatpush.bf16.msra.mxu0 %v2114
  %2382 = vmatpush.bf16.msra.mxu0 %v2113
  %2383 = vmatpush.bf16.msra.mxu0 %v2112
  %2384 = vmatpush.bf16.msra.mxu0 %v2111
  %2385 = vmatpush.bf16.msra.mxu0 %v2110
  %2386 = vmatmul.bf16.gmra.mxu0 %v1564
  %v2387 = vpop.f32.mrf.mxu0
  %v2388 = vadd.f32 %v2374, %v2387
  %v2389 = vpop.f32.mrf.mxu0
  %v2390 = vadd.f32 %v2376, %v2389
  %2391 = vdwg.mxu0
  %2392 = vmatpush.bf16.msra.mxu0 %v2125
  %2393 = vmatpush.bf16.msra.mxu0 %v2124
  %2394 = vmatpush.bf16.msra.mxu0 %v2123
  %2395 = vmatpush.bf16.msra.mxu0 %v2122
  %2396 = vmatpush.bf16.msra.mxu0 %v2121
  %2397 = vmatpush.bf16.msra.mxu0 %v2120
  %2398 = vmatpush.bf16.msra.mxu0 %v2119
  %2399 = vmatpush.bf16.msra.mxu0 %v2118
  %2400 = vmatmul.bf16.gmra.mxu0 %v1565
  %v2401 = vpop.f32.mrf.mxu0
  %v2402 = vadd.f32 %v2388, %v2401
  %v2403 = vpop.f32.mrf.mxu0
  %v2404 = vadd.f32 %v2390, %v2403
  %2405 = vdwg.mxu0
  %2406 = vmatpush.bf16.msra.mxu0 %v2133
  %2407 = vmatpush.bf16.msra.mxu0 %v2132
  %2408 = vmatpush.bf16.msra.mxu0 %v2131
  %2409 = vmatpush.bf16.msra.mxu0 %v2130
  %2410 = vmatpush.bf16.msra.mxu0 %v2129
  %2411 = vmatpush.bf16.msra.mxu0 %v2128
  %2412 = vmatpush.bf16.msra.mxu0 %v2127
  %2413 = vmatpush.bf16.msra.mxu0 %v2126
  %2414 = vmatmul.bf16.gmra.mxu0 %v1566
  %v2415 = vpop.f32.mrf.mxu0
  %v2416 = vadd.f32 %v2402, %v2415
  %v2417 = vpop.f32.mrf.mxu0
  %v2418 = vadd.f32 %v2404, %v2417
  %2419 = vdwg.mxu0
  %2420 = vmatpush.bf16.msra.mxu0 %v2141
  %2421 = vmatpush.bf16.msra.mxu0 %v2140
  %2422 = vmatpush.bf16.msra.mxu0 %v2139
  %2423 = vmatpush.bf16.msra.mxu0 %v2138
  %2424 = vmatpush.bf16.msra.mxu0 %v2137
  %2425 = vmatpush.bf16.msra.mxu0 %v2136
  %2426 = vmatpush.bf16.msra.mxu0 %v2135
  %2427 = vmatpush.bf16.msra.mxu0 %v2134
  %2428 = vmatmul.bf16.gmra.mxu0 %v1567
  %v2429 = vpop.f32.mrf.mxu0
  %v2430 = vadd.f32 %v2416, %v2429
  %v2431 = vpop.f32.mrf.mxu0
  %v2432 = vadd.f32 %v2418, %v2431
  %2433 = vdwg.mxu0
  %2434 = vmatpush.bf16.msra.mxu0 %v2149
  %2435 = vmatpush.bf16.msra.mxu0 %v2148
  %2436 = vmatpush.bf16.msra.mxu0 %v2147
  %2437 = vmatpush.bf16.msra.mxu0 %v2146
  %2438 = vmatpush.bf16.msra.mxu0 %v2145
  %2439 = vmatpush.bf16.msra.mxu0 %v2144
  %2440 = vmatpush.bf16.msra.mxu0 %v2143
  %2441 = vmatpush.bf16.msra.mxu0 %v2142
  %2442 = vmatmul.bf16.gmra.mxu0 %v1568
  %v2443 = vpop.f32.mrf.mxu0
  %v2444 = vadd.f32 %v2430, %v2443
  %v2445 = vpop.f32.mrf.mxu0
  %v2446 = vadd.f32 %v2432, %v2445
  %2447 = vdwg.mxu0
  %2448 = vmatpush.bf16.msra.mxu0 %v2157
  %2449 = vmatpush.bf16.msra.mxu0 %v2156
  %2450 = vmatpush.bf16.msra.mxu0 %v2155
  %2451 = vmatpush.bf16.msra.mxu0 %v2154
  %2452 = vmatpush.bf16.msra.mxu0 %v2153
  %2453 = vmatpush.bf16.msra.mxu0 %v2152
  %2454 = vmatpush.bf16.msra.mxu0 %v2151
  %2455 = vmatpush.bf16.msra.mxu0 %v2150
  %2456 = vmatmul.bf16.gmra.mxu0 %v1569
  %v2457 = vpop.f32.mrf.mxu0
  %v2458 = vadd.f32 %v2444, %v2457
  %v2459 = vpop.f32.mrf.mxu0
  %v2460 = vadd.f32 %v2446, %v2459
  %2461 = vdwg.mxu0
  %2462 = vmatpush.bf16.msra.mxu0 %v2165
  %2463 = vmatpush.bf16.msra.mxu0 %v2164
  %2464 = vmatpush.bf16.msra.mxu0 %v2163
  %2465 = vmatpush.bf16.msra.mxu0 %v2162
  %2466 = vmatpush.bf16.msra.mxu0 %v2161
  %2467 = vmatpush.bf16.msra.mxu0 %v2160
  %2468 = vmatpush.bf16.msra.mxu0 %v2159
  %2469 = vmatpush.bf16.msra.mxu0 %v2158
  %2470 = vmatmul.bf16.gmra.mxu0 %v1570
  %v2471 = vpop.f32.mrf.mxu0
  %v2472 = vadd.f32 %v2458, %v2471
  %v2473 = vpop.f32.mrf.mxu0
  %v2474 = vadd.f32 %v2460, %v2473
  %2475 = vdwg.mxu0
  %2476 = vmatpush.bf16.msra.mxu0 %v2173
  %2477 = vmatpush.bf16.msra.mxu0 %v2172
  %2478 = vmatpush.bf16.msra.mxu0 %v2171
  %2479 = vmatpush.bf16.msra.mxu0 %v2170
  %2480 = vmatpush.bf16.msra.mxu0 %v2169
  %2481 = vmatpush.bf16.msra.mxu0 %v2168
  %2482 = vmatpush.bf16.msra.mxu0 %v2167
  %2483 = vmatpush.bf16.msra.mxu0 %v2166
  %2484 = vmatmul.bf16.gmra.mxu0 %v1571
  %v2485 = vpop.f32.mrf.mxu0
  %v2486 = vadd.f32 %v2472, %v2485
  %v2487 = vpop.f32.mrf.mxu0
  %v2488 = vadd.f32 %v2474, %v2487
  %2489 = vdwg.mxu0
  %2490 = vmatpush.bf16.msra.mxu0 %v2181
  %2491 = vmatpush.bf16.msra.mxu0 %v2180
  %2492 = vmatpush.bf16.msra.mxu0 %v2179
  %2493 = vmatpush.bf16.msra.mxu0 %v2178
  %2494 = vmatpush.bf16.msra.mxu0 %v2177
  %2495 = vmatpush.bf16.msra.mxu0 %v2176
  %2496 = vmatpush.bf16.msra.mxu0 %v2175
  %2497 = vmatpush.bf16.msra.mxu0 %v2174
  %2498 = vmatmul.bf16.gmra.mxu0 %v1572
  %v2499 = vpop.f32.mrf.mxu0
  %v2500 = vadd.f32 %v2486, %v2499
  %v2501 = vpop.f32.mrf.mxu0
  %v2502 = vadd.f32 %v2488, %v2501
  %2503 = vdwg.mxu0
  %2504 = vmatpush.bf16.msra.mxu0 %v2189
  %2505 = vmatpush.bf16.msra.mxu0 %v2188
  %2506 = vmatpush.bf16.msra.mxu0 %v2187
  %2507 = vmatpush.bf16.msra.mxu0 %v2186
  %2508 = vmatpush.bf16.msra.mxu0 %v2185
  %2509 = vmatpush.bf16.msra.mxu0 %v2184
  %2510 = vmatpush.bf16.msra.mxu0 %v2183
  %2511 = vmatpush.bf16.msra.mxu0 %v2182
  %2512 = vmatmul.bf16.gmra.mxu0 %v1573
  %v2513 = vpop.f32.mrf.mxu0
  %v2514 = vadd.f32 %v2500, %v2513
  %v2515 = vpop.f32.mrf.mxu0
  %v2516 = vadd.f32 %v2502, %v2515
  %2517 = vdwg.mxu0
  %2518 = vmatpush.bf16.msra.mxu0 %v2197
  %2519 = vmatpush.bf16.msra.mxu0 %v2196
  %2520 = vmatpush.bf16.msra.mxu0 %v2195
  %2521 = vmatpush.bf16.msra.mxu0 %v2194
  %2522 = vmatpush.bf16.msra.mxu0 %v2193
  %2523 = vmatpush.bf16.msra.mxu0 %v2192
  %2524 = vmatpush.bf16.msra.mxu0 %v2191
  %2525 = vmatpush.bf16.msra.mxu0 %v2190
  %2526 = vmatmul.bf16.gmra.mxu0 %v1574
  %v2527 = vpop.f32.mrf.mxu0
  %v2528 = vadd.f32 %v2514, %v2527
  %v2529 = vpop.f32.mrf.mxu0
  %v2530 = vadd.f32 %v2516, %v2529
  %2531 = vdwg.mxu0
  %2532 = vmatpush.bf16.msra.mxu0 %v2205
  %2533 = vmatpush.bf16.msra.mxu0 %v2204
  %2534 = vmatpush.bf16.msra.mxu0 %v2203
  %2535 = vmatpush.bf16.msra.mxu0 %v2202
  %2536 = vmatpush.bf16.msra.mxu0 %v2201
  %2537 = vmatpush.bf16.msra.mxu0 %v2200
  %2538 = vmatpush.bf16.msra.mxu0 %v2199
  %2539 = vmatpush.bf16.msra.mxu0 %v2198
  %2540 = vmatmul.bf16.gmra.mxu0 %v1575
  %v2541 = vpop.f32.mrf.mxu0
  %v2542 = vadd.f32 %v2528, %v2541
  %v2543 = vpop.f32.mrf.mxu0
  %v2544 = vadd.f32 %v2530, %v2543
  %2545 = vdwg.mxu0
  %2546 = vmatpush.bf16.msra.mxu0 %v2213
  %2547 = vmatpush.bf16.msra.mxu0 %v2212
  %2548 = vmatpush.bf16.msra.mxu0 %v2211
  %2549 = vmatpush.bf16.msra.mxu0 %v2210
  %2550 = vmatpush.bf16.msra.mxu0 %v2209
  %2551 = vmatpush.bf16.msra.mxu0 %v2208
  %2552 = vmatpush.bf16.msra.mxu0 %v2207
  %2553 = vmatpush.bf16.msra.mxu0 %v2206
  %2554 = vmatmul.bf16.gmra.mxu0 %v1576
  %v2555 = vpop.f32.mrf.mxu0
  %v2556 = vadd.f32 %v2542, %v2555
  %v2557 = vpop.f32.mrf.mxu0
  %v2558 = vadd.f32 %v2544, %v2557
  %2559 = vdwg.mxu0
  %2560 = vmatpush.bf16.msra.mxu0 %v2221
  %2561 = vmatpush.bf16.msra.mxu0 %v2220
  %2562 = vmatpush.bf16.msra.mxu0 %v2219
  %2563 = vmatpush.bf16.msra.mxu0 %v2218
  %2564 = vmatpush.bf16.msra.mxu0 %v2217
  %2565 = vmatpush.bf16.msra.mxu0 %v2216
  %2566 = vmatpush.bf16.msra.mxu0 %v2215
  %2567 = vmatpush.bf16.msra.mxu0 %v2214
  %2568 = vmatmul.bf16.gmra.mxu0 %v1577
  %v2569 = vpop.f32.mrf.mxu0
  %v2570 = vadd.f32 %v2556, %v2569
  %v2571 = vpop.f32.mrf.mxu0
  %v2572 = vadd.f32 %v2558, %v2571
  %2573 = vdwg.mxu0
  %v2574 = vadd.f32 %v816, %v2570
  %v2575 = vadd.f32 %v817, %v2572
  %v2576 = vsel %vm179, %v2574, 0.0
  %2577 = vadd.xlane.f32.xlu0 %v2576
  %v2578 = vpop.xlane.xlu0 %2577
  %v2579 = vsel %vm179, %v2575, 0.0
  %2580 = vadd.xlane.f32.xlu0 %v2579
  %v2581 = vpop.xlane.xlu0 %2580
  %v2582 = vmul.f32 %v2578, %v767
  %v2583 = vmul.f32 %v2581, %v767
  %v2584 = vsub.f32 %v2574, %v2582
  %v2585 = vsub.f32 %v2575, %v2583
  %v2586 = vmul.f32 %v2584, %v2584
  %v2587 = vmul.f32 %v2585, %v2585
  %v2588 = vsel %vm179, %v2586, 0.0
  %2589 = vadd.xlane.f32.xlu0 %v2588
  %v2590 = vpop.xlane.xlu0 %2589
  %v2591 = vsel %vm179, %v2587, 0.0
  %2592 = vadd.xlane.f32.xlu0 %v2591
  %v2593 = vpop.xlane.xlu0 %2592
  %v2594 = vmul.f32 %v2590, %v767
  %v2595 = vmul.f32 %v2593, %v767
  %v2596 = vadd.f32 %v2594, 1e-05
  %v2597 = vadd.f32 %v2595, 1e-05
  %v2598 = vrsqrt.pop %v2596
  %v2599 = vmul.f32 %v2598, %v2596
  %v2600 = vmul.f32 %v2599, %v2598
  %v2601 = vmul.f32 0.5, %v2600
  %v2602 = vsub.f32 1.5, %v2601
  %v2603 = vmul.f32 %v2598, %v2602
  %vm2604 = vweird.f32 %v2596
  %vm2605 = vweird.f32 %v2598
  %vm2606 = vmor %vm2604, %vm2605
  %v2607 = vsel %vm2606, %v2598, %v2603
  %v2608 = vrsqrt.pop %v2597
  %v2609 = vmul.f32 %v2608, %v2597
  %v2610 = vmul.f32 %v2609, %v2608
  %v2611 = vmul.f32 0.5, %v2610
  %v2612 = vsub.f32 1.5, %v2611
  %v2613 = vmul.f32 %v2608, %v2612
  %vm2614 = vweird.f32 %v2597
  %vm2615 = vweird.f32 %v2608
  %vm2616 = vmor %vm2614, %vm2615
  %v2617 = vsel %vm2616, %v2608, %v2613
  %v2618 = vmul.f32 %v2584, %v2607
  %v2619 = vmul.f32 %v2585, %v2617
  %v2620 = vld [vmem:[%s31] sm:$0x1]
  %v2622 = vperm.slane %v2620, 0
  %v2624 = vmul.f32 %v2618, %v2622
  %v2625 = vmul.f32 %v2619, %v2622
  %v2626 = vld [vmem:[%s33] sm:$0x1]
  %v2628 = vperm.slane %v2626, 0
  %v2630 = vadd.f32 %v2624, %v2628
  %v2631 = vadd.f32 %v2625, %v2628
  %v2632 = vld [vmem:[%s35] sm:$0xf]
  %v2633 = vld [vmem:[%s35 + $0x4] sm:$0xf]
  %v2634 = vld [vmem:[%s35 + $0x8] sm:$0xf]
  %v2635 = vld [vmem:[%s35 + $0xc] sm:$0xf]
  %v2636 = vpack.c.bf16 %v2631, %v2630
  %v2637 = vld [vmem:[%s37] sm:$0x1]
  %v2639 = vperm.slane %v2637, 0
  %v2645 = vunpack.c.l.b16 %v2632
  %v2646 = vunpack.c.l.b16 %v2633
  %v2647 = vunpack.c.l.b16 %v2634
  %v2648 = vunpack.c.l.b16 %v2635
  %v2649 = vpack.c.b16 %v2646, %v2645
  %v2650 = vpack.c.b16 %v2648, %v2647
  %v2654 = vsel %vm179, %v2636, 0
  %2656 = vmatpush.bf16.msra.mxu0 0
  %2657 = vmatpush.bf16.msra.mxu0 0
  %2658 = vmatpush.bf16.msra.mxu0 0
  %2659 = vmatpush.bf16.msra.mxu0 0
  %2660 = vmatpush.bf16.msra.mxu0 0
  %2661 = vmatpush.bf16.msra.mxu0 0
  %2662 = vmatpush.bf16.msra.mxu0 %v2650
  %2663 = vmatpush.bf16.msra.mxu0 %v2649
  %2664 = vmatmul.bf16.gmra.mxu0 %v2654
  %v2665 = vpop.f32.mrf.mxu0
  %v2666 = vadd.f32 %v2639, %v2665
  %v2667 = vpop.f32.mrf.mxu0
  %v2668 = vadd.f32 %v2639, %v2667
  %2669 = vdwg.mxu0
  %v2670 = vpack.c.bf16 %v2666, %v2666
  %2672 = vrot.lane.b32.xlu0 %v2670, 96
  %v2673 = vpop.permute.xlu0 %2672
  %v2675 = vsel %vm201, %v2670, 0
  %v2678 = vsel %vm201, %v2673, 0
  %2680 = vmatpush.bf16.xpose.msra.mxu0 0
  %2681 = vmatpush.bf16.xpose.msra.mxu0 0
  %2682 = vmatpush.bf16.xpose.msra.mxu0 0
  %2683 = vmatpush.bf16.xpose.msra.mxu0 0
  %2684 = vmatpush.bf16.xpose.msra.mxu0 0
  %2685 = vmatpush.bf16.xpose.msra.mxu0 0
  %2686 = vmatpush.bf16.xpose.msra.mxu0 0
  %2687 = vmatpush.bf16.xpose.msra.mxu0 %v2678
  %2688 = vmatmul.bf16.gmra.mxu0 %v2675
  %v2689 = vpop.f32.mrf.mxu0
  %v2690 = vadd.f32 0.0, %v2689
  %v2691 = vpop.f32.mrf.mxu0
  %2692 = vdwg.mxu0
  %v2693 = vmul.f32 %v2690, 0.35355338
  %v2694 = vsel %vm201, %v2693, -inf
  %2695 = vmax.xlane.f32.xlu0 %v2694
  %v2696 = vpop.xlane.xlu0 %2695
  %v2697 = vsub.f32 %v2693, %v2696
  %v2698 = vmul.f32 %v2697, 1.442695
  %v2699 = vpow.pop %v2698
  %v2700 = vsel %vm201, %v2699, 0.0
  %2701 = vadd.xlane.f32.xlu0 %v2700
  %v2702 = vpop.xlane.xlu0 %2701
  %v2703 = vrcp.pop %v2702
  %v2704 = vmul.f32 %v2699, %v2703
  %v2705 = vpack.c.bf16 %v2704, %v2704
  %2706 = vrot.lane.b32.xlu0 %v2670, 64
  %v2707 = vpop.permute.xlu0 %2706
  %v2709 = vsel %vm201, %v2705, 0
  %v2712 = vsel %vm239, %v2707, 0
  %2714 = vmatpush.bf16.msra.mxu0 0
  %2715 = vmatpush.bf16.msra.mxu0 0
  %2716 = vmatpush.bf16.msra.mxu0 0
  %2717 = vmatpush.bf16.msra.mxu0 0
  %2718 = vmatpush.bf16.msra.mxu0 0
  %2719 = vmatpush.bf16.msra.mxu0 0
  %2720 = vmatpush.bf16.msra.mxu0 0
  %2721 = vmatpush.bf16.msra.mxu0 %v2712
  %2722 = vmatmul.bf16.gmra.mxu0 %v2709
  %v2723 = vpop.f32.mrf.mxu0
  %v2724 = vadd.f32 0.0, %v2723
  %v2725 = vpop.f32.mrf.mxu0
  %2726 = vdwg.mxu0
  %v2727 = vpack.c.bf16 %v2668, %v2668
  %2729 = vrot.lane.b32.xlu0 %v2727, 96
  %v2730 = vpop.permute.xlu0 %2729
  %v2732 = vsel %vm201, %v2727, 0
  %v2735 = vsel %vm201, %v2730, 0
  %2737 = vmatpush.bf16.xpose.msra.mxu0 0
  %2738 = vmatpush.bf16.xpose.msra.mxu0 0
  %2739 = vmatpush.bf16.xpose.msra.mxu0 0
  %2740 = vmatpush.bf16.xpose.msra.mxu0 0
  %2741 = vmatpush.bf16.xpose.msra.mxu0 0
  %2742 = vmatpush.bf16.xpose.msra.mxu0 0
  %2743 = vmatpush.bf16.xpose.msra.mxu0 0
  %2744 = vmatpush.bf16.xpose.msra.mxu0 %v2735
  %2745 = vmatmul.bf16.gmra.mxu0 %v2732
  %v2746 = vpop.f32.mrf.mxu0
  %v2747 = vadd.f32 0.0, %v2746
  %v2748 = vpop.f32.mrf.mxu0
  %2749 = vdwg.mxu0
  %v2750 = vmul.f32 %v2747, 0.35355338
  %v2751 = vsel %vm201, %v2750, -inf
  %2752 = vmax.xlane.f32.xlu0 %v2751
  %v2753 = vpop.xlane.xlu0 %2752
  %v2754 = vsub.f32 %v2750, %v2753
  %v2755 = vmul.f32 %v2754, 1.442695
  %v2756 = vpow.pop %v2755
  %v2757 = vsel %vm201, %v2756, 0.0
  %2758 = vadd.xlane.f32.xlu0 %v2757
  %v2759 = vpop.xlane.xlu0 %2758
  %v2760 = vrcp.pop %v2759
  %v2761 = vmul.f32 %v2756, %v2760
  %v2762 = vpack.c.bf16 %v2761, %v2761
  %2763 = vrot.lane.b32.xlu0 %v2727, 64
  %v2764 = vpop.permute.xlu0 %2763
  %v2766 = vsel %vm201, %v2762, 0
  %v2769 = vsel %vm239, %v2764, 0
  %2771 = vmatpush.bf16.msra.mxu0 0
  %2772 = vmatpush.bf16.msra.mxu0 0
  %2773 = vmatpush.bf16.msra.mxu0 0
  %2774 = vmatpush.bf16.msra.mxu0 0
  %2775 = vmatpush.bf16.msra.mxu0 0
  %2776 = vmatpush.bf16.msra.mxu0 0
  %2777 = vmatpush.bf16.msra.mxu0 0
  %2778 = vmatpush.bf16.msra.mxu0 %v2769
  %2779 = vmatmul.bf16.gmra.mxu0 %v2766
  %v2780 = vpop.f32.mrf.mxu0
  %v2781 = vadd.f32 0.0, %v2780
  %v2782 = vpop.f32.mrf.mxu0
  %2783 = vdwg.mxu0
  %v2784 = vld [vmem:[%s39] sm:$0xf]
  %v2785 = vpack.c.bf16 %v2781, %v2724
  %2786 = vrot.lane.b32.xlu0 %v2670, 120
  %v2787 = vpop.permute.xlu0 %2786
  %2788 = vrot.lane.b32.xlu0 %v2670, 88
  %v2789 = vpop.permute.xlu0 %2788
  %v2791 = vsel %vm201, %v2787, 0
  %v2794 = vsel %vm201, %v2789, 0
  %2796 = vmatpush.bf16.xpose.msra.mxu0 0
  %2797 = vmatpush.bf16.xpose.msra.mxu0 0
  %2798 = vmatpush.bf16.xpose.msra.mxu0 0
  %2799 = vmatpush.bf16.xpose.msra.mxu0 0
  %2800 = vmatpush.bf16.xpose.msra.mxu0 0
  %2801 = vmatpush.bf16.xpose.msra.mxu0 0
  %2802 = vmatpush.bf16.xpose.msra.mxu0 0
  %2803 = vmatpush.bf16.xpose.msra.mxu0 %v2794
  %2804 = vmatmul.bf16.gmra.mxu0 %v2791
  %v2805 = vpop.f32.mrf.mxu0
  %v2806 = vadd.f32 0.0, %v2805
  %v2807 = vpop.f32.mrf.mxu0
  %2808 = vdwg.mxu0
  %v2809 = vmul.f32 %v2806, 0.35355338
  %v2810 = vsel %vm201, %v2809, -inf
  %2811 = vmax.xlane.f32.xlu0 %v2810
  %v2812 = vpop.xlane.xlu0 %2811
  %v2813 = vsub.f32 %v2809, %v2812
  %v2814 = vmul.f32 %v2813, 1.442695
  %v2815 = vpow.pop %v2814
  %v2816 = vsel %vm201, %v2815, 0.0
  %2817 = vadd.xlane.f32.xlu0 %v2816
  %v2818 = vpop.xlane.xlu0 %2817
  %v2819 = vrcp.pop %v2818
  %v2820 = vmul.f32 %v2815, %v2819
  %v2821 = vpack.c.bf16 %v2820, %v2820
  %2822 = vrot.lane.b32.xlu0 %v2670, 56
  %v2823 = vpop.permute.xlu0 %2822
  %v2825 = vsel %vm201, %v2821, 0
  %v2828 = vsel %vm239, %v2823, 0
  %2830 = vmatpush.bf16.msra.mxu0 0
  %2831 = vmatpush.bf16.msra.mxu0 0
  %2832 = vmatpush.bf16.msra.mxu0 0
  %2833 = vmatpush.bf16.msra.mxu0 0
  %2834 = vmatpush.bf16.msra.mxu0 0
  %2835 = vmatpush.bf16.msra.mxu0 0
  %2836 = vmatpush.bf16.msra.mxu0 0
  %2837 = vmatpush.bf16.msra.mxu0 %v2828
  %2838 = vmatmul.bf16.gmra.mxu0 %v2825
  %v2839 = vpop.f32.mrf.mxu0
  %v2840 = vadd.f32 0.0, %v2839
  %v2841 = vpop.f32.mrf.mxu0
  %2842 = vdwg.mxu0
  %2843 = vrot.lane.b32.xlu0 %v2727, 120
  %v2844 = vpop.permute.xlu0 %2843
  %2845 = vrot.lane.b32.xlu0 %v2727, 88
  %v2846 = vpop.permute.xlu0 %2845
  %v2848 = vsel %vm201, %v2844, 0
  %v2851 = vsel %vm201, %v2846, 0
  %2853 = vmatpush.bf16.xpose.msra.mxu0 0
  %2854 = vmatpush.bf16.xpose.msra.mxu0 0
  %2855 = vmatpush.bf16.xpose.msra.mxu0 0
  %2856 = vmatpush.bf16.xpose.msra.mxu0 0
  %2857 = vmatpush.bf16.xpose.msra.mxu0 0
  %2858 = vmatpush.bf16.xpose.msra.mxu0 0
  %2859 = vmatpush.bf16.xpose.msra.mxu0 0
  %2860 = vmatpush.bf16.xpose.msra.mxu0 %v2851
  %2861 = vmatmul.bf16.gmra.mxu0 %v2848
  %v2862 = vpop.f32.mrf.mxu0
  %v2863 = vadd.f32 0.0, %v2862
  %v2864 = vpop.f32.mrf.mxu0
  %2865 = vdwg.mxu0
  %v2866 = vmul.f32 %v2863, 0.35355338
  %v2867 = vsel %vm201, %v2866, -inf
  %2868 = vmax.xlane.f32.xlu0 %v2867
  %v2869 = vpop.xlane.xlu0 %2868
  %v2870 = vsub.f32 %v2866, %v2869
  %v2871 = vmul.f32 %v2870, 1.442695
  %v2872 = vpow.pop %v2871
  %v2873 = vsel %vm201, %v2872, 0.0
  %2874 = vadd.xlane.f32.xlu0 %v2873
  %v2875 = vpop.xlane.xlu0 %2874
  %v2876 = vrcp.pop %v2875
  %v2877 = vmul.f32 %v2872, %v2876
  %v2878 = vpack.c.bf16 %v2877, %v2877
  %2879 = vrot.lane.b32.xlu0 %v2727, 56
  %v2880 = vpop.permute.xlu0 %2879
  %v2882 = vsel %vm201, %v2878, 0
  %v2885 = vsel %vm239, %v2880, 0
  %2887 = vmatpush.bf16.msra.mxu0 0
  %2888 = vmatpush.bf16.msra.mxu0 0
  %2889 = vmatpush.bf16.msra.mxu0 0
  %2890 = vmatpush.bf16.msra.mxu0 0
  %2891 = vmatpush.bf16.msra.mxu0 0
  %2892 = vmatpush.bf16.msra.mxu0 0
  %2893 = vmatpush.bf16.msra.mxu0 0
  %2894 = vmatpush.bf16.msra.mxu0 %v2885
  %2895 = vmatmul.bf16.gmra.mxu0 %v2882
  %v2896 = vpop.f32.mrf.mxu0
  %v2897 = vadd.f32 0.0, %v2896
  %v2898 = vpop.f32.mrf.mxu0
  %2899 = vdwg.mxu0
  %v2900 = vld [vmem:[%s39 + $0x4] sm:$0xf]
  %v2901 = vpack.c.bf16 %v2897, %v2840
  %v2903 = vsel %vm201, %v2901, 0
  %v2906 = vsel %vm239, %v2900, 0
  %2908 = vmatpush.bf16.msra.mxu0 0
  %2909 = vmatpush.bf16.msra.mxu0 0
  %2910 = vmatpush.bf16.msra.mxu0 0
  %2911 = vmatpush.bf16.msra.mxu0 0
  %2912 = vmatpush.bf16.msra.mxu0 0
  %2913 = vmatpush.bf16.msra.mxu0 0
  %2914 = vmatpush.bf16.msra.mxu0 0
  %2915 = vmatpush.bf16.msra.mxu0 %v2906
  %2916 = vmatmul.bf16.gmra.mxu0 %v2903
  %v2917 = vpop.f32.mrf.mxu0
  %v2918 = vadd.f32 0.0, %v2917
  %v2919 = vpop.f32.mrf.mxu0
  %v2920 = vadd.f32 0.0, %v2919
  %2921 = vdwg.mxu0
  %v2923 = vsel %vm201, %v2785, 0
  %v2926 = vsel %vm239, %v2784, 0
  %2928 = vmatpush.bf16.msra.mxu0 0
  %2929 = vmatpush.bf16.msra.mxu0 0
  %2930 = vmatpush.bf16.msra.mxu0 0
  %2931 = vmatpush.bf16.msra.mxu0 0
  %2932 = vmatpush.bf16.msra.mxu0 0
  %2933 = vmatpush.bf16.msra.mxu0 0
  %2934 = vmatpush.bf16.msra.mxu0 0
  %2935 = vmatpush.bf16.msra.mxu0 %v2926
  %2936 = vmatmul.bf16.gmra.mxu0 %v2923
  %v2937 = vpop.f32.mrf.mxu0
  %v2938 = vadd.f32 %v2918, %v2937
  %v2939 = vpop.f32.mrf.mxu0
  %v2940 = vadd.f32 %v2920, %v2939
  %2941 = vdwg.mxu0
  %2942 = vrot.lane.b32.xlu0 %v2670, 112
  %v2943 = vpop.permute.xlu0 %2942
  %2944 = vrot.lane.b32.xlu0 %v2670, 80
  %v2945 = vpop.permute.xlu0 %2944
  %v2947 = vsel %vm201, %v2943, 0
  %v2950 = vsel %vm201, %v2945, 0
  %2952 = vmatpush.bf16.xpose.msra.mxu0 0
  %2953 = vmatpush.bf16.xpose.msra.mxu0 0
  %2954 = vmatpush.bf16.xpose.msra.mxu0 0
  %2955 = vmatpush.bf16.xpose.msra.mxu0 0
  %2956 = vmatpush.bf16.xpose.msra.mxu0 0
  %2957 = vmatpush.bf16.xpose.msra.mxu0 0
  %2958 = vmatpush.bf16.xpose.msra.mxu0 0
  %2959 = vmatpush.bf16.xpose.msra.mxu0 %v2950
  %2960 = vmatmul.bf16.gmra.mxu0 %v2947
  %v2961 = vpop.f32.mrf.mxu0
  %v2962 = vadd.f32 0.0, %v2961
  %v2963 = vpop.f32.mrf.mxu0
  %2964 = vdwg.mxu0
  %v2965 = vmul.f32 %v2962, 0.35355338
  %v2966 = vsel %vm201, %v2965, -inf
  %2967 = vmax.xlane.f32.xlu0 %v2966
  %v2968 = vpop.xlane.xlu0 %2967
  %v2969 = vsub.f32 %v2965, %v2968
  %v2970 = vmul.f32 %v2969, 1.442695
  %v2971 = vpow.pop %v2970
  %v2972 = vsel %vm201, %v2971, 0.0
  %2973 = vadd.xlane.f32.xlu0 %v2972
  %v2974 = vpop.xlane.xlu0 %2973
  %v2975 = vrcp.pop %v2974
  %v2976 = vmul.f32 %v2971, %v2975
  %v2977 = vpack.c.bf16 %v2976, %v2976
  %2978 = vrot.lane.b32.xlu0 %v2670, 48
  %v2979 = vpop.permute.xlu0 %2978
  %v2981 = vsel %vm201, %v2977, 0
  %v2984 = vsel %vm239, %v2979, 0
  %2986 = vmatpush.bf16.msra.mxu0 0
  %2987 = vmatpush.bf16.msra.mxu0 0
  %2988 = vmatpush.bf16.msra.mxu0 0
  %2989 = vmatpush.bf16.msra.mxu0 0
  %2990 = vmatpush.bf16.msra.mxu0 0
  %2991 = vmatpush.bf16.msra.mxu0 0
  %2992 = vmatpush.bf16.msra.mxu0 0
  %2993 = vmatpush.bf16.msra.mxu0 %v2984
  %2994 = vmatmul.bf16.gmra.mxu0 %v2981
  %v2995 = vpop.f32.mrf.mxu0
  %v2996 = vadd.f32 0.0, %v2995
  %v2997 = vpop.f32.mrf.mxu0
  %2998 = vdwg.mxu0
  %2999 = vrot.lane.b32.xlu0 %v2727, 112
  %v3000 = vpop.permute.xlu0 %2999
  %3001 = vrot.lane.b32.xlu0 %v2727, 80
  %v3002 = vpop.permute.xlu0 %3001
  %v3004 = vsel %vm201, %v3000, 0
  %v3007 = vsel %vm201, %v3002, 0
  %3009 = vmatpush.bf16.xpose.msra.mxu0 0
  %3010 = vmatpush.bf16.xpose.msra.mxu0 0
  %3011 = vmatpush.bf16.xpose.msra.mxu0 0
  %3012 = vmatpush.bf16.xpose.msra.mxu0 0
  %3013 = vmatpush.bf16.xpose.msra.mxu0 0
  %3014 = vmatpush.bf16.xpose.msra.mxu0 0
  %3015 = vmatpush.bf16.xpose.msra.mxu0 0
  %3016 = vmatpush.bf16.xpose.msra.mxu0 %v3007
  %3017 = vmatmul.bf16.gmra.mxu0 %v3004
  %v3018 = vpop.f32.mrf.mxu0
  %v3019 = vadd.f32 0.0, %v3018
  %v3020 = vpop.f32.mrf.mxu0
  %3021 = vdwg.mxu0
  %v3022 = vmul.f32 %v3019, 0.35355338
  %v3023 = vsel %vm201, %v3022, -inf
  %3024 = vmax.xlane.f32.xlu0 %v3023
  %v3025 = vpop.xlane.xlu0 %3024
  %v3026 = vsub.f32 %v3022, %v3025
  %v3027 = vmul.f32 %v3026, 1.442695
  %v3028 = vpow.pop %v3027
  %v3029 = vsel %vm201, %v3028, 0.0
  %3030 = vadd.xlane.f32.xlu0 %v3029
  %v3031 = vpop.xlane.xlu0 %3030
  %v3032 = vrcp.pop %v3031
  %v3033 = vmul.f32 %v3028, %v3032
  %v3034 = vpack.c.bf16 %v3033, %v3033
  %3035 = vrot.lane.b32.xlu0 %v2727, 48
  %v3036 = vpop.permute.xlu0 %3035
  %v3038 = vsel %vm201, %v3034, 0
  %v3041 = vsel %vm239, %v3036, 0
  %3043 = vmatpush.bf16.msra.mxu0 0
  %3044 = vmatpush.bf16.msra.mxu0 0
  %3045 = vmatpush.bf16.msra.mxu0 0
  %3046 = vmatpush.bf16.msra.mxu0 0
  %3047 = vmatpush.bf16.msra.mxu0 0
  %3048 = vmatpush.bf16.msra.mxu0 0
  %3049 = vmatpush.bf16.msra.mxu0 0
  %3050 = vmatpush.bf16.msra.mxu0 %v3041
  %3051 = vmatmul.bf16.gmra.mxu0 %v3038
  %v3052 = vpop.f32.mrf.mxu0
  %v3053 = vadd.f32 0.0, %v3052
  %v3054 = vpop.f32.mrf.mxu0
  %3055 = vdwg.mxu0
  %v3056 = vld [vmem:[%s39 + $0x8] sm:$0xf]
  %v3057 = vpack.c.bf16 %v3053, %v2996
  %v3059 = vsel %vm201, %v3057, 0
  %v3062 = vsel %vm239, %v3056, 0
  %3064 = vmatpush.bf16.msra.mxu0 0
  %3065 = vmatpush.bf16.msra.mxu0 0
  %3066 = vmatpush.bf16.msra.mxu0 0
  %3067 = vmatpush.bf16.msra.mxu0 0
  %3068 = vmatpush.bf16.msra.mxu0 0
  %3069 = vmatpush.bf16.msra.mxu0 0
  %3070 = vmatpush.bf16.msra.mxu0 0
  %3071 = vmatpush.bf16.msra.mxu0 %v3062
  %3072 = vmatmul.bf16.gmra.mxu0 %v3059
  %v3073 = vpop.f32.mrf.mxu0
  %v3074 = vadd.f32 0.0, %v3073
  %v3075 = vpop.f32.mrf.mxu0
  %v3076 = vadd.f32 0.0, %v3075
  %3077 = vdwg.mxu0
  %v3078 = vadd.f32 %v2938, %v3074
  %v3079 = vadd.f32 %v2940, %v3076
  %3080 = vrot.lane.b32.xlu0 %v2670, 104
  %v3081 = vpop.permute.xlu0 %3080
  %3082 = vrot.lane.b32.xlu0 %v2670, 72
  %v3083 = vpop.permute.xlu0 %3082
  %v3085 = vsel %vm201, %v3081, 0
  %v3088 = vsel %vm201, %v3083, 0
  %3090 = vmatpush.bf16.xpose.msra.mxu0 0
  %3091 = vmatpush.bf16.xpose.msra.mxu0 0
  %3092 = vmatpush.bf16.xpose.msra.mxu0 0
  %3093 = vmatpush.bf16.xpose.msra.mxu0 0
  %3094 = vmatpush.bf16.xpose.msra.mxu0 0
  %3095 = vmatpush.bf16.xpose.msra.mxu0 0
  %3096 = vmatpush.bf16.xpose.msra.mxu0 0
  %3097 = vmatpush.bf16.xpose.msra.mxu0 %v3088
  %3098 = vmatmul.bf16.gmra.mxu0 %v3085
  %v3099 = vpop.f32.mrf.mxu0
  %v3100 = vadd.f32 0.0, %v3099
  %v3101 = vpop.f32.mrf.mxu0
  %3102 = vdwg.mxu0
  %v3103 = vmul.f32 %v3100, 0.35355338
  %v3104 = vsel %vm201, %v3103, -inf
  %3105 = vmax.xlane.f32.xlu0 %v3104
  %v3106 = vpop.xlane.xlu0 %3105
  %v3107 = vsub.f32 %v3103, %v3106
  %v3108 = vmul.f32 %v3107, 1.442695
  %v3109 = vpow.pop %v3108
  %v3110 = vsel %vm201, %v3109, 0.0
  %3111 = vadd.xlane.f32.xlu0 %v3110
  %v3112 = vpop.xlane.xlu0 %3111
  %v3113 = vrcp.pop %v3112
  %v3114 = vmul.f32 %v3109, %v3113
  %v3115 = vpack.c.bf16 %v3114, %v3114
  %3116 = vrot.lane.b32.xlu0 %v2670, 40
  %v3117 = vpop.permute.xlu0 %3116
  %v3119 = vsel %vm201, %v3115, 0
  %v3122 = vsel %vm239, %v3117, 0
  %3124 = vmatpush.bf16.msra.mxu0 0
  %3125 = vmatpush.bf16.msra.mxu0 0
  %3126 = vmatpush.bf16.msra.mxu0 0
  %3127 = vmatpush.bf16.msra.mxu0 0
  %3128 = vmatpush.bf16.msra.mxu0 0
  %3129 = vmatpush.bf16.msra.mxu0 0
  %3130 = vmatpush.bf16.msra.mxu0 0
  %3131 = vmatpush.bf16.msra.mxu0 %v3122
  %3132 = vmatmul.bf16.gmra.mxu0 %v3119
  %v3133 = vpop.f32.mrf.mxu0
  %v3134 = vadd.f32 0.0, %v3133
  %v3135 = vpop.f32.mrf.mxu0
  %3136 = vdwg.mxu0
  %3137 = vrot.lane.b32.xlu0 %v2727, 104
  %v3138 = vpop.permute.xlu0 %3137
  %3139 = vrot.lane.b32.xlu0 %v2727, 72
  %v3140 = vpop.permute.xlu0 %3139
  %v3142 = vsel %vm201, %v3138, 0
  %v3145 = vsel %vm201, %v3140, 0
  %3147 = vmatpush.bf16.xpose.msra.mxu0 0
  %3148 = vmatpush.bf16.xpose.msra.mxu0 0
  %3149 = vmatpush.bf16.xpose.msra.mxu0 0
  %3150 = vmatpush.bf16.xpose.msra.mxu0 0
  %3151 = vmatpush.bf16.xpose.msra.mxu0 0
  %3152 = vmatpush.bf16.xpose.msra.mxu0 0
  %3153 = vmatpush.bf16.xpose.msra.mxu0 0
  %3154 = vmatpush.bf16.xpose.msra.mxu0 %v3145
  %3155 = vmatmul.bf16.gmra.mxu0 %v3142
  %v3156 = vpop.f32.mrf.mxu0
  %v3157 = vadd.f32 0.0, %v3156
  %v3158 = vpop.f32.mrf.mxu0
  %3159 = vdwg.mxu0
  %v3160 = vmul.f32 %v3157, 0.35355338
  %v3161 = vsel %vm201, %v3160, -inf
  %3162 = vmax.xlane.f32.xlu0 %v3161
  %v3163 = vpop.xlane.xlu0 %3162
  %v3164 = vsub.f32 %v3160, %v3163
  %v3165 = vmul.f32 %v3164, 1.442695
  %v3166 = vpow.pop %v3165
  %v3167 = vsel %vm201, %v3166, 0.0
  %3168 = vadd.xlane.f32.xlu0 %v3167
  %v3169 = vpop.xlane.xlu0 %3168
  %v3170 = vrcp.pop %v3169
  %v3171 = vmul.f32 %v3166, %v3170
  %v3172 = vpack.c.bf16 %v3171, %v3171
  %3173 = vrot.lane.b32.xlu0 %v2727, 40
  %v3174 = vpop.permute.xlu0 %3173
  %v3176 = vsel %vm201, %v3172, 0
  %v3179 = vsel %vm239, %v3174, 0
  %3181 = vmatpush.bf16.msra.mxu0 0
  %3182 = vmatpush.bf16.msra.mxu0 0
  %3183 = vmatpush.bf16.msra.mxu0 0
  %3184 = vmatpush.bf16.msra.mxu0 0
  %3185 = vmatpush.bf16.msra.mxu0 0
  %3186 = vmatpush.bf16.msra.mxu0 0
  %3187 = vmatpush.bf16.msra.mxu0 0
  %3188 = vmatpush.bf16.msra.mxu0 %v3179
  %3189 = vmatmul.bf16.gmra.mxu0 %v3176
  %v3190 = vpop.f32.mrf.mxu0
  %v3191 = vadd.f32 0.0, %v3190
  %v3192 = vpop.f32.mrf.mxu0
  %3193 = vdwg.mxu0
  %v3194 = vld [vmem:[%s39 + $0xc] sm:$0xf]
  %v3195 = vpack.c.bf16 %v3191, %v3134
  %v3197 = vsel %vm201, %v3195, 0
  %v3200 = vsel %vm239, %v3194, 0
  %3202 = vmatpush.bf16.msra.mxu0 0
  %3203 = vmatpush.bf16.msra.mxu0 0
  %3204 = vmatpush.bf16.msra.mxu0 0
  %3205 = vmatpush.bf16.msra.mxu0 0
  %3206 = vmatpush.bf16.msra.mxu0 0
  %3207 = vmatpush.bf16.msra.mxu0 0
  %3208 = vmatpush.bf16.msra.mxu0 0
  %3209 = vmatpush.bf16.msra.mxu0 %v3200
  %3210 = vmatmul.bf16.gmra.mxu0 %v3197
  %v3211 = vpop.f32.mrf.mxu0
  %v3212 = vadd.f32 0.0, %v3211
  %v3213 = vpop.f32.mrf.mxu0
  %v3214 = vadd.f32 0.0, %v3213
  %3215 = vdwg.mxu0
  %v3216 = vadd.f32 %v3078, %v3212
  %v3217 = vadd.f32 %v3079, %v3214
  %v3218 = vld [vmem:[%s41] sm:$0x1]
  %v3220 = vperm.slane %v3218, 0
  %v3222 = vadd.f32 %v3216, %v3220
  %v3223 = vadd.f32 %v3217, %v3220
  %v3224 = vadd.f32 %v2630, %v3222
  %v3225 = vadd.f32 %v2631, %v3223
  %v3226 = vsel %vm179, %v3224, 0.0
  %3227 = vadd.xlane.f32.xlu0 %v3226
  %v3228 = vpop.xlane.xlu0 %3227
  %v3229 = vsel %vm179, %v3225, 0.0
  %3230 = vadd.xlane.f32.xlu0 %v3229
  %v3231 = vpop.xlane.xlu0 %3230
  %v3232 = vmul.f32 %v3228, %v767
  %v3233 = vmul.f32 %v3231, %v767
  %v3234 = vsub.f32 %v3224, %v3232
  %v3235 = vsub.f32 %v3225, %v3233
  %v3236 = vmul.f32 %v3234, %v3234
  %v3237 = vmul.f32 %v3235, %v3235
  %v3238 = vsel %vm179, %v3236, 0.0
  %3239 = vadd.xlane.f32.xlu0 %v3238
  %v3240 = vpop.xlane.xlu0 %3239
  %v3241 = vsel %vm179, %v3237, 0.0
  %3242 = vadd.xlane.f32.xlu0 %v3241
  %v3243 = vpop.xlane.xlu0 %3242
  %v3244 = vmul.f32 %v3240, %v767
  %v3245 = vmul.f32 %v3243, %v767
  %v3246 = vadd.f32 %v3244, 1e-05
  %v3247 = vadd.f32 %v3245, 1e-05
  %v3248 = vrsqrt.pop %v3246
  %v3249 = vmul.f32 %v3248, %v3246
  %v3250 = vmul.f32 %v3249, %v3248
  %v3251 = vmul.f32 0.5, %v3250
  %v3252 = vsub.f32 1.5, %v3251
  %v3253 = vmul.f32 %v3248, %v3252
  %vm3254 = vweird.f32 %v3246
  %vm3255 = vweird.f32 %v3248
  %vm3256 = vmor %vm3254, %vm3255
  %v3257 = vsel %vm3256, %v3248, %v3253
  %v3258 = vrsqrt.pop %v3247
  %v3259 = vmul.f32 %v3258, %v3247
  %v3260 = vmul.f32 %v3259, %v3258
  %v3261 = vmul.f32 0.5, %v3260
  %v3262 = vsub.f32 1.5, %v3261
  %v3263 = vmul.f32 %v3258, %v3262
  %vm3264 = vweird.f32 %v3247
  %vm3265 = vweird.f32 %v3258
  %vm3266 = vmor %vm3264, %vm3265
  %v3267 = vsel %vm3266, %v3258, %v3263
  %v3268 = vmul.f32 %v3234, %v3257
  %v3269 = vmul.f32 %v3235, %v3267
  %v3270 = vld [vmem:[%s51] sm:$0x1]
  %v3272 = vperm.slane %v3270, 0
  %v3274 = vmul.f32 %v3268, %v3272
  %v3275 = vmul.f32 %v3269, %v3272
  %v3276 = vld [vmem:[%s53] sm:$0x1]
  %v3278 = vperm.slane %v3276, 0
  %v3280 = vadd.f32 %v3274, %v3278
  %v3281 = vadd.f32 %v3275, %v3278
  %v3282 = vld [vmem:[%s43] sm:$0xff]
  %v3283 = vld [vmem:[%s43 + $0x8] sm:$0xff]
  %v3284 = vld [vmem:[%s43 + $0x10] sm:$0xff]
  %v3285 = vld [vmem:[%s43 + $0x18] sm:$0xff]
  %v3286 = vld [vmem:[%s43 + $0x20] sm:$0xff]
  %v3287 = vld [vmem:[%s43 + $0x28] sm:$0xff]
  %v3288 = vld [vmem:[%s43 + $0x30] sm:$0xff]
  %v3289 = vld [vmem:[%s43 + $0x38] sm:$0xff]
  %v3290 = vld [vmem:[%s43 + $0x40] sm:$0xff]
  %v3291 = vld [vmem:[%s43 + $0x48] sm:$0xff]
  %v3292 = vld [vmem:[%s43 + $0x50] sm:$0xff]
  %v3293 = vld [vmem:[%s43 + $0x58] sm:$0xff]
  %v3294 = vld [vmem:[%s43 + $0x60] sm:$0xff]
  %v3295 = vld [vmem:[%s43 + $0x68] sm:$0xff]
  %v3296 = vld [vmem:[%s43 + $0x70] sm:$0xff]
  %v3297 = vld [vmem:[%s43 + $0x78] sm:$0xff]
  %v3298 = vld [vmem:[%s43 + $0x80] sm:$0xff]
  %v3299 = vld [vmem:[%s43 + $0x88] sm:$0xff]
  %v3300 = vld [vmem:[%s43 + $0x90] sm:$0xff]
  %v3301 = vld [vmem:[%s43 + $0x98] sm:$0xff]
  %v3302 = vld [vmem:[%s43 + $0xa0] sm:$0xff]
  %v3303 = vld [vmem:[%s43 + $0xa8] sm:$0xff]
  %v3304 = vld [vmem:[%s43 + $0xb0] sm:$0xff]
  %v3305 = vld [vmem:[%s43 + $0xb8] sm:$0xff]
  %v3306 = vld [vmem:[%s43 + $0xc0] sm:$0xff]
  %v3307 = vld [vmem:[%s43 + $0xc8] sm:$0xff]
  %v3308 = vld [vmem:[%s43 + $0xd0] sm:$0xff]
  %v3309 = vld [vmem:[%s43 + $0xd8] sm:$0xff]
  %v3310 = vld [vmem:[%s43 + $0xe0] sm:$0xff]
  %v3311 = vld [vmem:[%s43 + $0xe8] sm:$0xff]
  %v3312 = vld [vmem:[%s43 + $0xf0] sm:$0xff]
  %v3313 = vld [vmem:[%s43 + $0xf8] sm:$0xff]
  %v3314 = vpack.c.bf16 %v3281, %v3280
  %v3315 = vld [vmem:[%s45] sm:$0xff]
  %v3316 = vld [vmem:[%s45 + $0x8] sm:$0xff]
  %v3319 = vperm.slane %v3315, 0
  %v3320 = vperm.slane %v3315, 1
  %v3321 = vperm.slane %v3315, 2
  %v3322 = vperm.slane %v3315, 3
  %v3323 = vperm.slane %v3315, 4
  %v3324 = vperm.slane %v3315, 5
  %v3325 = vperm.slane %v3315, 6
  %v3326 = vperm.slane %v3315, 7
  %v3327 = vperm.slane %v3316, 0
  %v3328 = vperm.slane %v3316, 1
  %v3329 = vperm.slane %v3316, 2
  %v3330 = vperm.slane %v3316, 3
  %v3331 = vperm.slane %v3316, 4
  %v3332 = vperm.slane %v3316, 5
  %v3333 = vperm.slane %v3316, 6
  %v3334 = vperm.slane %v3316, 7
  %v3383 = vunpack.c.l.b16 %v3282
  %v3384 = vunpack.c.h.b16 %v3282
  %v3385 = vunpack.c.l.b16 %v3283
  %v3386 = vunpack.c.h.b16 %v3283
  %v3387 = vunpack.c.l.b16 %v3284
  %v3388 = vunpack.c.h.b16 %v3284
  %v3389 = vunpack.c.l.b16 %v3285
  %v3390 = vunpack.c.h.b16 %v3285
  %v3391 = vunpack.c.l.b16 %v3286
  %v3392 = vunpack.c.h.b16 %v3286
  %v3393 = vunpack.c.l.b16 %v3287
  %v3394 = vunpack.c.h.b16 %v3287
  %v3395 = vunpack.c.l.b16 %v3288
  %v3396 = vunpack.c.h.b16 %v3288
  %v3397 = vunpack.c.l.b16 %v3289
  %v3398 = vunpack.c.h.b16 %v3289
  %v3399 = vunpack.c.l.b16 %v3290
  %v3400 = vunpack.c.h.b16 %v3290
  %v3401 = vunpack.c.l.b16 %v3291
  %v3402 = vunpack.c.h.b16 %v3291
  %v3403 = vunpack.c.l.b16 %v3292
  %v3404 = vunpack.c.h.b16 %v3292
  %v3405 = vunpack.c.l.b16 %v3293
  %v3406 = vunpack.c.h.b16 %v3293
  %v3407 = vunpack.c.l.b16 %v3294
  %v3408 = vunpack.c.h.b16 %v3294
  %v3409 = vunpack.c.l.b16 %v3295
  %v3410 = vunpack.c.h.b16 %v3295
  %v3411 = vunpack.c.l.b16 %v3296
  %v3412 = vunpack.c.h.b16 %v3296
  %v3413 = vunpack.c.l.b16 %v3297
  %v3414 = vunpack.c.h.b16 %v3297
  %v3415 = vunpack.c.l.b16 %v3298
  %v3416 = vunpack.c.h.b16 %v3298
  %v3417 = vunpack.c.l.b16 %v3299
  %v3418 = vunpack.c.h.b16 %v3299
  %v3419 = vunpack.c.l.b16 %v3300
  %v3420 = vunpack.c.h.b16 %v3300
  %v3421 = vunpack.c.l.b16 %v3301
  %v3422 = vunpack.c.h.b16 %v3301
  %v3423 = vunpack.c.l.b16 %v3302
  %v3424 = vunpack.c.h.b16 %v3302
  %v3425 = vunpack.c.l.b16 %v3303
  %v3426 = vunpack.c.h.b16 %v3303
  %v3427 = vunpack.c.l.b16 %v3304
  %v3428 = vunpack.c.h.b16 %v3304
  %v3429 = vunpack.c.l.b16 %v3305
  %v3430 = vunpack.c.h.b16 %v3305
  %v3431 = vunpack.c.l.b16 %v3306
  %v3432 = vunpack.c.h.b16 %v3306
  %v3433 = vunpack.c.l.b16 %v3307
  %v3434 = vunpack.c.h.b16 %v3307
  %v3435 = vunpack.c.l.b16 %v3308
  %v3436 = vunpack.c.h.b16 %v3308
  %v3437 = vunpack.c.l.b16 %v3309
  %v3438 = vunpack.c.h.b16 %v3309
  %v3439 = vunpack.c.l.b16 %v3310
  %v3440 = vunpack.c.h.b16 %v3310
  %v3441 = vunpack.c.l.b16 %v3311
  %v3442 = vunpack.c.h.b16 %v3311
  %v3443 = vunpack.c.l.b16 %v3312
  %v3444 = vunpack.c.h.b16 %v3312
  %v3445 = vunpack.c.l.b16 %v3313
  %v3446 = vunpack.c.h.b16 %v3313
  %v3447 = vpack.c.b16 %v3399, %v3383
  %v3448 = vpack.c.b16 %v3400, %v3384
  %v3449 = vpack.c.b16 %v3401, %v3385
  %v3450 = vpack.c.b16 %v3402, %v3386
  %v3451 = vpack.c.b16 %v3403, %v3387
  %v3452 = vpack.c.b16 %v3404, %v3388
  %v3453 = vpack.c.b16 %v3405, %v3389
  %v3454 = vpack.c.b16 %v3406, %v3390
  %v3455 = vpack.c.b16 %v3407, %v3391
  %v3456 = vpack.c.b16 %v3408, %v3392
  %v3457 = vpack.c.b16 %v3409, %v3393
  %v3458 = vpack.c.b16 %v3410, %v3394
  %v3459 = vpack.c.b16 %v3411, %v3395
  %v3460 = vpack.c.b16 %v3412, %v3396
  %v3461 = vpack.c.b16 %v3413, %v3397
  %v3462 = vpack.c.b16 %v3414, %v3398
  %v3463 = vpack.c.b16 %v3431, %v3415
  %v3464 = vpack.c.b16 %v3432, %v3416
  %v3465 = vpack.c.b16 %v3433, %v3417
  %v3466 = vpack.c.b16 %v3434, %v3418
  %v3467 = vpack.c.b16 %v3435, %v3419
  %v3468 = vpack.c.b16 %v3436, %v3420
  %v3469 = vpack.c.b16 %v3437, %v3421
  %v3470 = vpack.c.b16 %v3438, %v3422
  %v3471 = vpack.c.b16 %v3439, %v3423
  %v3472 = vpack.c.b16 %v3440, %v3424
  %v3473 = vpack.c.b16 %v3441, %v3425
  %v3474 = vpack.c.b16 %v3442, %v3426
  %v3475 = vpack.c.b16 %v3443, %v3427
  %v3476 = vpack.c.b16 %v3444, %v3428
  %v3477 = vpack.c.b16 %v3445, %v3429
  %v3478 = vpack.c.b16 %v3446, %v3430
  %v3512 = vsel %vm179, %v3314, 0
  %3514 = vmatpush.bf16.msra.mxu0 0
  %3515 = vmatpush.bf16.msra.mxu0 0
  %3516 = vmatpush.bf16.msra.mxu0 0
  %3517 = vmatpush.bf16.msra.mxu0 0
  %3518 = vmatpush.bf16.msra.mxu0 0
  %3519 = vmatpush.bf16.msra.mxu0 0
  %3520 = vmatpush.bf16.msra.mxu0 %v3463
  %3521 = vmatpush.bf16.msra.mxu0 %v3447
  %3522 = vmatmul.bf16.gmra.mxu0 %v3512
  %v3523 = vpop.f32.mrf.mxu0
  %v3524 = vadd.f32 %v3319, %v3523
  %v3525 = vpop.f32.mrf.mxu0
  %v3526 = vadd.f32 %v3319, %v3525
  %3527 = vdwg.mxu0
  %3528 = vmatpush.bf16.msra.mxu0 0
  %3529 = vmatpush.bf16.msra.mxu0 0
  %3530 = vmatpush.bf16.msra.mxu0 0
  %3531 = vmatpush.bf16.msra.mxu0 0
  %3532 = vmatpush.bf16.msra.mxu0 0
  %3533 = vmatpush.bf16.msra.mxu0 0
  %3534 = vmatpush.bf16.msra.mxu0 %v3464
  %3535 = vmatpush.bf16.msra.mxu0 %v3448
  %3536 = vmatmul.bf16.gmra.mxu0 %v3512
  %v3537 = vpop.f32.mrf.mxu0
  %v3538 = vadd.f32 %v3320, %v3537
  %v3539 = vpop.f32.mrf.mxu0
  %v3540 = vadd.f32 %v3320, %v3539
  %3541 = vdwg.mxu0
  %3542 = vmatpush.bf16.msra.mxu0 0
  %3543 = vmatpush.bf16.msra.mxu0 0
  %3544 = vmatpush.bf16.msra.mxu0 0
  %3545 = vmatpush.bf16.msra.mxu0 0
  %3546 = vmatpush.bf16.msra.mxu0 0
  %3547 = vmatpush.bf16.msra.mxu0 0
  %3548 = vmatpush.bf16.msra.mxu0 %v3465
  %3549 = vmatpush.bf16.msra.mxu0 %v3449
  %3550 = vmatmul.bf16.gmra.mxu0 %v3512
  %v3551 = vpop.f32.mrf.mxu0
  %v3552 = vadd.f32 %v3321, %v3551
  %v3553 = vpop.f32.mrf.mxu0
  %v3554 = vadd.f32 %v3321, %v3553
  %3555 = vdwg.mxu0
  %3556 = vmatpush.bf16.msra.mxu0 0
  %3557 = vmatpush.bf16.msra.mxu0 0
  %3558 = vmatpush.bf16.msra.mxu0 0
  %3559 = vmatpush.bf16.msra.mxu0 0
  %3560 = vmatpush.bf16.msra.mxu0 0
  %3561 = vmatpush.bf16.msra.mxu0 0
  %3562 = vmatpush.bf16.msra.mxu0 %v3466
  %3563 = vmatpush.bf16.msra.mxu0 %v3450
  %3564 = vmatmul.bf16.gmra.mxu0 %v3512
  %v3565 = vpop.f32.mrf.mxu0
  %v3566 = vadd.f32 %v3322, %v3565
  %v3567 = vpop.f32.mrf.mxu0
  %v3568 = vadd.f32 %v3322, %v3567
  %3569 = vdwg.mxu0
  %3570 = vmatpush.bf16.msra.mxu0 0
  %3571 = vmatpush.bf16.msra.mxu0 0
  %3572 = vmatpush.bf16.msra.mxu0 0
  %3573 = vmatpush.bf16.msra.mxu0 0
  %3574 = vmatpush.bf16.msra.mxu0 0
  %3575 = vmatpush.bf16.msra.mxu0 0
  %3576 = vmatpush.bf16.msra.mxu0 %v3467
  %3577 = vmatpush.bf16.msra.mxu0 %v3451
  %3578 = vmatmul.bf16.gmra.mxu0 %v3512
  %v3579 = vpop.f32.mrf.mxu0
  %v3580 = vadd.f32 %v3323, %v3579
  %v3581 = vpop.f32.mrf.mxu0
  %v3582 = vadd.f32 %v3323, %v3581
  %3583 = vdwg.mxu0
  %3584 = vmatpush.bf16.msra.mxu0 0
  %3585 = vmatpush.bf16.msra.mxu0 0
  %3586 = vmatpush.bf16.msra.mxu0 0
  %3587 = vmatpush.bf16.msra.mxu0 0
  %3588 = vmatpush.bf16.msra.mxu0 0
  %3589 = vmatpush.bf16.msra.mxu0 0
  %3590 = vmatpush.bf16.msra.mxu0 %v3468
  %3591 = vmatpush.bf16.msra.mxu0 %v3452
  %3592 = vmatmul.bf16.gmra.mxu0 %v3512
  %v3593 = vpop.f32.mrf.mxu0
  %v3594 = vadd.f32 %v3324, %v3593
  %v3595 = vpop.f32.mrf.mxu0
  %v3596 = vadd.f32 %v3324, %v3595
  %3597 = vdwg.mxu0
  %3598 = vmatpush.bf16.msra.mxu0 0
  %3599 = vmatpush.bf16.msra.mxu0 0
  %3600 = vmatpush.bf16.msra.mxu0 0
  %3601 = vmatpush.bf16.msra.mxu0 0
  %3602 = vmatpush.bf16.msra.mxu0 0
  %3603 = vmatpush.bf16.msra.mxu0 0
  %3604 = vmatpush.bf16.msra.mxu0 %v3469
  %3605 = vmatpush.bf16.msra.mxu0 %v3453
  %3606 = vmatmul.bf16.gmra.mxu0 %v3512
  %v3607 = vpop.f32.mrf.mxu0
  %v3608 = vadd.f32 %v3325, %v3607
  %v3609 = vpop.f32.mrf.mxu0
  %v3610 = vadd.f32 %v3325, %v3609
  %3611 = vdwg.mxu0
  %3612 = vmatpush.bf16.msra.mxu0 0
  %3613 = vmatpush.bf16.msra.mxu0 0
  %3614 = vmatpush.bf16.msra.mxu0 0
  %3615 = vmatpush.bf16.msra.mxu0 0
  %3616 = vmatpush.bf16.msra.mxu0 0
  %3617 = vmatpush.bf16.msra.mxu0 0
  %3618 = vmatpush.bf16.msra.mxu0 %v3470
  %3619 = vmatpush.bf16.msra.mxu0 %v3454
  %3620 = vmatmul.bf16.gmra.mxu0 %v3512
  %v3621 = vpop.f32.mrf.mxu0
  %v3622 = vadd.f32 %v3326, %v3621
  %v3623 = vpop.f32.mrf.mxu0
  %v3624 = vadd.f32 %v3326, %v3623
  %3625 = vdwg.mxu0
  %3626 = vmatpush.bf16.msra.mxu0 0
  %3627 = vmatpush.bf16.msra.mxu0 0
  %3628 = vmatpush.bf16.msra.mxu0 0
  %3629 = vmatpush.bf16.msra.mxu0 0
  %3630 = vmatpush.bf16.msra.mxu0 0
  %3631 = vmatpush.bf16.msra.mxu0 0
  %3632 = vmatpush.bf16.msra.mxu0 %v3471
  %3633 = vmatpush.bf16.msra.mxu0 %v3455
  %3634 = vmatmul.bf16.gmra.mxu0 %v3512
  %v3635 = vpop.f32.mrf.mxu0
  %v3636 = vadd.f32 %v3327, %v3635
  %v3637 = vpop.f32.mrf.mxu0
  %v3638 = vadd.f32 %v3327, %v3637
  %3639 = vdwg.mxu0
  %3640 = vmatpush.bf16.msra.mxu0 0
  %3641 = vmatpush.bf16.msra.mxu0 0
  %3642 = vmatpush.bf16.msra.mxu0 0
  %3643 = vmatpush.bf16.msra.mxu0 0
  %3644 = vmatpush.bf16.msra.mxu0 0
  %3645 = vmatpush.bf16.msra.mxu0 0
  %3646 = vmatpush.bf16.msra.mxu0 %v3472
  %3647 = vmatpush.bf16.msra.mxu0 %v3456
  %3648 = vmatmul.bf16.gmra.mxu0 %v3512
  %v3649 = vpop.f32.mrf.mxu0
  %v3650 = vadd.f32 %v3328, %v3649
  %v3651 = vpop.f32.mrf.mxu0
  %v3652 = vadd.f32 %v3328, %v3651
  %3653 = vdwg.mxu0
  %3654 = vmatpush.bf16.msra.mxu0 0
  %3655 = vmatpush.bf16.msra.mxu0 0
  %3656 = vmatpush.bf16.msra.mxu0 0
  %3657 = vmatpush.bf16.msra.mxu0 0
  %3658 = vmatpush.bf16.msra.mxu0 0
  %3659 = vmatpush.bf16.msra.mxu0 0
  %3660 = vmatpush.bf16.msra.mxu0 %v3473
  %3661 = vmatpush.bf16.msra.mxu0 %v3457
  %3662 = vmatmul.bf16.gmra.mxu0 %v3512
  %v3663 = vpop.f32.mrf.mxu0
  %v3664 = vadd.f32 %v3329, %v3663
  %v3665 = vpop.f32.mrf.mxu0
  %v3666 = vadd.f32 %v3329, %v3665
  %3667 = vdwg.mxu0
  %3668 = vmatpush.bf16.msra.mxu0 0
  %3669 = vmatpush.bf16.msra.mxu0 0
  %3670 = vmatpush.bf16.msra.mxu0 0
  %3671 = vmatpush.bf16.msra.mxu0 0
  %3672 = vmatpush.bf16.msra.mxu0 0
  %3673 = vmatpush.bf16.msra.mxu0 0
  %3674 = vmatpush.bf16.msra.mxu0 %v3474
  %3675 = vmatpush.bf16.msra.mxu0 %v3458
  %3676 = vmatmul.bf16.gmra.mxu0 %v3512
  %v3677 = vpop.f32.mrf.mxu0
  %v3678 = vadd.f32 %v3330, %v3677
  %v3679 = vpop.f32.mrf.mxu0
  %v3680 = vadd.f32 %v3330, %v3679
  %3681 = vdwg.mxu0
  %3682 = vmatpush.bf16.msra.mxu0 0
  %3683 = vmatpush.bf16.msra.mxu0 0
  %3684 = vmatpush.bf16.msra.mxu0 0
  %3685 = vmatpush.bf16.msra.mxu0 0
  %3686 = vmatpush.bf16.msra.mxu0 0
  %3687 = vmatpush.bf16.msra.mxu0 0
  %3688 = vmatpush.bf16.msra.mxu0 %v3475
  %3689 = vmatpush.bf16.msra.mxu0 %v3459
  %3690 = vmatmul.bf16.gmra.mxu0 %v3512
  %v3691 = vpop.f32.mrf.mxu0
  %v3692 = vadd.f32 %v3331, %v3691
  %v3693 = vpop.f32.mrf.mxu0
  %v3694 = vadd.f32 %v3331, %v3693
  %3695 = vdwg.mxu0
  %3696 = vmatpush.bf16.msra.mxu0 0
  %3697 = vmatpush.bf16.msra.mxu0 0
  %3698 = vmatpush.bf16.msra.mxu0 0
  %3699 = vmatpush.bf16.msra.mxu0 0
  %3700 = vmatpush.bf16.msra.mxu0 0
  %3701 = vmatpush.bf16.msra.mxu0 0
  %3702 = vmatpush.bf16.msra.mxu0 %v3476
  %3703 = vmatpush.bf16.msra.mxu0 %v3460
  %3704 = vmatmul.bf16.gmra.mxu0 %v3512
  %v3705 = vpop.f32.mrf.mxu0
  %v3706 = vadd.f32 %v3332, %v3705
  %v3707 = vpop.f32.mrf.mxu0
  %v3708 = vadd.f32 %v3332, %v3707
  %3709 = vdwg.mxu0
  %3710 = vmatpush.bf16.msra.mxu0 0
  %3711 = vmatpush.bf16.msra.mxu0 0
  %3712 = vmatpush.bf16.msra.mxu0 0
  %3713 = vmatpush.bf16.msra.mxu0 0
  %3714 = vmatpush.bf16.msra.mxu0 0
  %3715 = vmatpush.bf16.msra.mxu0 0
  %3716 = vmatpush.bf16.msra.mxu0 %v3477
  %3717 = vmatpush.bf16.msra.mxu0 %v3461
  %3718 = vmatmul.bf16.gmra.mxu0 %v3512
  %v3719 = vpop.f32.mrf.mxu0
  %v3720 = vadd.f32 %v3333, %v3719
  %v3721 = vpop.f32.mrf.mxu0
  %v3722 = vadd.f32 %v3333, %v3721
  %3723 = vdwg.mxu0
  %3724 = vmatpush.bf16.msra.mxu0 0
  %3725 = vmatpush.bf16.msra.mxu0 0
  %3726 = vmatpush.bf16.msra.mxu0 0
  %3727 = vmatpush.bf16.msra.mxu0 0
  %3728 = vmatpush.bf16.msra.mxu0 0
  %3729 = vmatpush.bf16.msra.mxu0 0
  %3730 = vmatpush.bf16.msra.mxu0 %v3478
  %3731 = vmatpush.bf16.msra.mxu0 %v3462
  %3732 = vmatmul.bf16.gmra.mxu0 %v3512
  %v3733 = vpop.f32.mrf.mxu0
  %v3734 = vadd.f32 %v3334, %v3733
  %v3735 = vpop.f32.mrf.mxu0
  %v3736 = vadd.f32 %v3334, %v3735
  %3737 = vdwg.mxu0
  %v3738 = vmax.f32 %v3524, 0.0
  %v3739 = vmax.f32 %v3538, 0.0
  %v3740 = vmax.f32 %v3552, 0.0
  %v3741 = vmax.f32 %v3566, 0.0
  %v3742 = vmax.f32 %v3580, 0.0
  %v3743 = vmax.f32 %v3594, 0.0
  %v3744 = vmax.f32 %v3608, 0.0
  %v3745 = vmax.f32 %v3622, 0.0
  %v3746 = vmax.f32 %v3636, 0.0
  %v3747 = vmax.f32 %v3650, 0.0
  %v3748 = vmax.f32 %v3664, 0.0
  %v3749 = vmax.f32 %v3678, 0.0
  %v3750 = vmax.f32 %v3692, 0.0
  %v3751 = vmax.f32 %v3706, 0.0
  %v3752 = vmax.f32 %v3720, 0.0
  %v3753 = vmax.f32 %v3734, 0.0
  %v3754 = vmax.f32 %v3526, 0.0
  %v3755 = vmax.f32 %v3540, 0.0
  %v3756 = vmax.f32 %v3554, 0.0
  %v3757 = vmax.f32 %v3568, 0.0
  %v3758 = vmax.f32 %v3582, 0.0
  %v3759 = vmax.f32 %v3596, 0.0
  %v3760 = vmax.f32 %v3610, 0.0
  %v3761 = vmax.f32 %v3624, 0.0
  %v3762 = vmax.f32 %v3638, 0.0
  %v3763 = vmax.f32 %v3652, 0.0
  %v3764 = vmax.f32 %v3666, 0.0
  %v3765 = vmax.f32 %v3680, 0.0
  %v3766 = vmax.f32 %v3694, 0.0
  %v3767 = vmax.f32 %v3708, 0.0
  %v3768 = vmax.f32 %v3722, 0.0
  %v3769 = vmax.f32 %v3736, 0.0
  %v3770 = vld [vmem:[%s47] sm:$0xf]
  %v3771 = vld [vmem:[%s47 + $0x4] sm:$0xf]
  %v3772 = vld [vmem:[%s47 + $0x8] sm:$0xf]
  %v3773 = vld [vmem:[%s47 + $0xc] sm:$0xf]
  %v3774 = vld [vmem:[%s47 + $0x10] sm:$0xf]
  %v3775 = vld [vmem:[%s47 + $0x14] sm:$0xf]
  %v3776 = vld [vmem:[%s47 + $0x18] sm:$0xf]
  %v3777 = vld [vmem:[%s47 + $0x1c] sm:$0xf]
  %v3778 = vld [vmem:[%s47 + $0x20] sm:$0xf]
  %v3779 = vld [vmem:[%s47 + $0x24] sm:$0xf]
  %v3780 = vld [vmem:[%s47 + $0x28] sm:$0xf]
  %v3781 = vld [vmem:[%s47 + $0x2c] sm:$0xf]
  %v3782 = vld [vmem:[%s47 + $0x30] sm:$0xf]
  %v3783 = vld [vmem:[%s47 + $0x34] sm:$0xf]
  %v3784 = vld [vmem:[%s47 + $0x38] sm:$0xf]
  %v3785 = vld [vmem:[%s47 + $0x3c] sm:$0xf]
  %v3786 = vld [vmem:[%s47 + $0x40] sm:$0xf]
  %v3787 = vld [vmem:[%s47 + $0x44] sm:$0xf]
  %v3788 = vld [vmem:[%s47 + $0x48] sm:$0xf]
  %v3789 = vld [vmem:[%s47 + $0x4c] sm:$0xf]
  %v3790 = vld [vmem:[%s47 + $0x50] sm:$0xf]
  %v3791 = vld [vmem:[%s47 + $0x54] sm:$0xf]
  %v3792 = vld [vmem:[%s47 + $0x58] sm:$0xf]
  %v3793 = vld [vmem:[%s47 + $0x5c] sm:$0xf]
  %v3794 = vld [vmem:[%s47 + $0x60] sm:$0xf]
  %v3795 = vld [vmem:[%s47 + $0x64] sm:$0xf]
  %v3796 = vld [vmem:[%s47 + $0x68] sm:$0xf]
  %v3797 = vld [vmem:[%s47 + $0x6c] sm:$0xf]
  %v3798 = vld [vmem:[%s47 + $0x70] sm:$0xf]
  %v3799 = vld [vmem:[%s47 + $0x74] sm:$0xf]
  %v3800 = vld [vmem:[%s47 + $0x78] sm:$0xf]
  %v3801 = vld [vmem:[%s47 + $0x7c] sm:$0xf]
  %v3802 = vld [vmem:[%s47 + $0x80] sm:$0xf]
  %v3803 = vld [vmem:[%s47 + $0x84] sm:$0xf]
  %v3804 = vld [vmem:[%s47 + $0x88] sm:$0xf]
  %v3805 = vld [vmem:[%s47 + $0x8c] sm:$0xf]
  %v3806 = vld [vmem:[%s47 + $0x90] sm:$0xf]
  %v3807 = vld [vmem:[%s47 + $0x94] sm:$0xf]
  %v3808 = vld [vmem:[%s47 + $0x98] sm:$0xf]
  %v3809 = vld [vmem:[%s47 + $0x9c] sm:$0xf]
  %v3810 = vld [vmem:[%s47 + $0xa0] sm:$0xf]
  %v3811 = vld [vmem:[%s47 + $0xa4] sm:$0xf]
  %v3812 = vld [vmem:[%s47 + $0xa8] sm:$0xf]
  %v3813 = vld [vmem:[%s47 + $0xac] sm:$0xf]
  %v3814 = vld [vmem:[%s47 + $0xb0] sm:$0xf]
  %v3815 = vld [vmem:[%s47 + $0xb4] sm:$0xf]
  %v3816 = vld [vmem:[%s47 + $0xb8] sm:$0xf]
  %v3817 = vld [vmem:[%s47 + $0xbc] sm:$0xf]
  %v3818 = vld [vmem:[%s47 + $0xc0] sm:$0xf]
  %v3819 = vld [vmem:[%s47 + $0xc4] sm:$0xf]
  %v3820 = vld [vmem:[%s47 + $0xc8] sm:$0xf]
  %v3821 = vld [vmem:[%s47 + $0xcc] sm:$0xf]
  %v3822 = vld [vmem:[%s47 + $0xd0] sm:$0xf]
  %v3823 = vld [vmem:[%s47 + $0xd4] sm:$0xf]
  %v3824 = vld [vmem:[%s47 + $0xd8] sm:$0xf]
  %v3825 = vld [vmem:[%s47 + $0xdc] sm:$0xf]
  %v3826 = vld [vmem:[%s47 + $0xe0] sm:$0xf]
  %v3827 = vld [vmem:[%s47 + $0xe4] sm:$0xf]
  %v3828 = vld [vmem:[%s47 + $0xe8] sm:$0xf]
  %v3829 = vld [vmem:[%s47 + $0xec] sm:$0xf]
  %v3830 = vld [vmem:[%s47 + $0xf0] sm:$0xf]
  %v3831 = vld [vmem:[%s47 + $0xf4] sm:$0xf]
  %v3832 = vld [vmem:[%s47 + $0xf8] sm:$0xf]
  %v3833 = vld [vmem:[%s47 + $0xfc] sm:$0xf]
  %v3834 = vld [vmem:[%s47 + $0x100] sm:$0xf]
  %v3835 = vld [vmem:[%s47 + $0x104] sm:$0xf]
  %v3836 = vld [vmem:[%s47 + $0x108] sm:$0xf]
  %v3837 = vld [vmem:[%s47 + $0x10c] sm:$0xf]
  %v3838 = vld [vmem:[%s47 + $0x110] sm:$0xf]
  %v3839 = vld [vmem:[%s47 + $0x114] sm:$0xf]
  %v3840 = vld [vmem:[%s47 + $0x118] sm:$0xf]
  %v3841 = vld [vmem:[%s47 + $0x11c] sm:$0xf]
  %v3842 = vld [vmem:[%s47 + $0x120] sm:$0xf]
  %v3843 = vld [vmem:[%s47 + $0x124] sm:$0xf]
  %v3844 = vld [vmem:[%s47 + $0x128] sm:$0xf]
  %v3845 = vld [vmem:[%s47 + $0x12c] sm:$0xf]
  %v3846 = vld [vmem:[%s47 + $0x130] sm:$0xf]
  %v3847 = vld [vmem:[%s47 + $0x134] sm:$0xf]
  %v3848 = vld [vmem:[%s47 + $0x138] sm:$0xf]
  %v3849 = vld [vmem:[%s47 + $0x13c] sm:$0xf]
  %v3850 = vld [vmem:[%s47 + $0x140] sm:$0xf]
  %v3851 = vld [vmem:[%s47 + $0x144] sm:$0xf]
  %v3852 = vld [vmem:[%s47 + $0x148] sm:$0xf]
  %v3853 = vld [vmem:[%s47 + $0x14c] sm:$0xf]
  %v3854 = vld [vmem:[%s47 + $0x150] sm:$0xf]
  %v3855 = vld [vmem:[%s47 + $0x154] sm:$0xf]
  %v3856 = vld [vmem:[%s47 + $0x158] sm:$0xf]
  %v3857 = vld [vmem:[%s47 + $0x15c] sm:$0xf]
  %v3858 = vld [vmem:[%s47 + $0x160] sm:$0xf]
  %v3859 = vld [vmem:[%s47 + $0x164] sm:$0xf]
  %v3860 = vld [vmem:[%s47 + $0x168] sm:$0xf]
  %v3861 = vld [vmem:[%s47 + $0x16c] sm:$0xf]
  %v3862 = vld [vmem:[%s47 + $0x170] sm:$0xf]
  %v3863 = vld [vmem:[%s47 + $0x174] sm:$0xf]
  %v3864 = vld [vmem:[%s47 + $0x178] sm:$0xf]
  %v3865 = vld [vmem:[%s47 + $0x17c] sm:$0xf]
  %v3866 = vld [vmem:[%s47 + $0x180] sm:$0xf]
  %v3867 = vld [vmem:[%s47 + $0x184] sm:$0xf]
  %v3868 = vld [vmem:[%s47 + $0x188] sm:$0xf]
  %v3869 = vld [vmem:[%s47 + $0x18c] sm:$0xf]
  %v3870 = vld [vmem:[%s47 + $0x190] sm:$0xf]
  %v3871 = vld [vmem:[%s47 + $0x194] sm:$0xf]
  %v3872 = vld [vmem:[%s47 + $0x198] sm:$0xf]
  %v3873 = vld [vmem:[%s47 + $0x19c] sm:$0xf]
  %v3874 = vld [vmem:[%s47 + $0x1a0] sm:$0xf]
  %v3875 = vld [vmem:[%s47 + $0x1a4] sm:$0xf]
  %v3876 = vld [vmem:[%s47 + $0x1a8] sm:$0xf]
  %v3877 = vld [vmem:[%s47 + $0x1ac] sm:$0xf]
  %v3878 = vld [vmem:[%s47 + $0x1b0] sm:$0xf]
  %v3879 = vld [vmem:[%s47 + $0x1b4] sm:$0xf]
  %v3880 = vld [vmem:[%s47 + $0x1b8] sm:$0xf]
  %v3881 = vld [vmem:[%s47 + $0x1bc] sm:$0xf]
  %v3882 = vld [vmem:[%s47 + $0x1c0] sm:$0xf]
  %v3883 = vld [vmem:[%s47 + $0x1c4] sm:$0xf]
  %v3884 = vld [vmem:[%s47 + $0x1c8] sm:$0xf]
  %v3885 = vld [vmem:[%s47 + $0x1cc] sm:$0xf]
  %v3886 = vld [vmem:[%s47 + $0x1d0] sm:$0xf]
  %v3887 = vld [vmem:[%s47 + $0x1d4] sm:$0xf]
  %v3888 = vld [vmem:[%s47 + $0x1d8] sm:$0xf]
  %v3889 = vld [vmem:[%s47 + $0x1dc] sm:$0xf]
  %v3890 = vld [vmem:[%s47 + $0x1e0] sm:$0xf]
  %v3891 = vld [vmem:[%s47 + $0x1e4] sm:$0xf]
  %v3892 = vld [vmem:[%s47 + $0x1e8] sm:$0xf]
  %v3893 = vld [vmem:[%s47 + $0x1ec] sm:$0xf]
  %v3894 = vld [vmem:[%s47 + $0x1f0] sm:$0xf]
  %v3895 = vld [vmem:[%s47 + $0x1f4] sm:$0xf]
  %v3896 = vld [vmem:[%s47 + $0x1f8] sm:$0xf]
  %v3897 = vld [vmem:[%s47 + $0x1fc] sm:$0xf]
  %v3898 = vld [vmem:[%s47 + $0x200] sm:$0xf]
  %v3899 = vld [vmem:[%s47 + $0x204] sm:$0xf]
  %v3900 = vld [vmem:[%s47 + $0x208] sm:$0xf]
  %v3901 = vld [vmem:[%s47 + $0x20c] sm:$0xf]
  %v3902 = vld [vmem:[%s47 + $0x210] sm:$0xf]
  %v3903 = vld [vmem:[%s47 + $0x214] sm:$0xf]
  %v3904 = vld [vmem:[%s47 + $0x218] sm:$0xf]
  %v3905 = vld [vmem:[%s47 + $0x21c] sm:$0xf]
  %v3906 = vld [vmem:[%s47 + $0x220] sm:$0xf]
  %v3907 = vld [vmem:[%s47 + $0x224] sm:$0xf]
  %v3908 = vld [vmem:[%s47 + $0x228] sm:$0xf]
  %v3909 = vld [vmem:[%s47 + $0x22c] sm:$0xf]
  %v3910 = vld [vmem:[%s47 + $0x230] sm:$0xf]
  %v3911 = vld [vmem:[%s47 + $0x234] sm:$0xf]
  %v3912 = vld [vmem:[%s47 + $0x238] sm:$0xf]
  %v3913 = vld [vmem:[%s47 + $0x23c] sm:$0xf]
  %v3914 = vld [vmem:[%s47 + $0x240] sm:$0xf]
  %v3915 = vld [vmem:[%s47 + $0x244] sm:$0xf]
  %v3916 = vld [vmem:[%s47 + $0x248] sm:$0xf]
  %v3917 = vld [vmem:[%s47 + $0x24c] sm:$0xf]
  %v3918 = vld [vmem:[%s47 + $0x250] sm:$0xf]
  %v3919 = vld [vmem:[%s47 + $0x254] sm:$0xf]
  %v3920 = vld [vmem:[%s47 + $0x258] sm:$0xf]
  %v3921 = vld [vmem:[%s47 + $0x25c] sm:$0xf]
  %v3922 = vld [vmem:[%s47 + $0x260] sm:$0xf]
  %v3923 = vld [vmem:[%s47 + $0x264] sm:$0xf]
  %v3924 = vld [vmem:[%s47 + $0x268] sm:$0xf]
  %v3925 = vld [vmem:[%s47 + $0x26c] sm:$0xf]
  %v3926 = vld [vmem:[%s47 + $0x270] sm:$0xf]
  %v3927 = vld [vmem:[%s47 + $0x274] sm:$0xf]
  %v3928 = vld [vmem:[%s47 + $0x278] sm:$0xf]
  %v3929 = vld [vmem:[%s47 + $0x27c] sm:$0xf]
  %v3930 = vld [vmem:[%s47 + $0x280] sm:$0xf]
  %v3931 = vld [vmem:[%s47 + $0x284] sm:$0xf]
  %v3932 = vld [vmem:[%s47 + $0x288] sm:$0xf]
  %v3933 = vld [vmem:[%s47 + $0x28c] sm:$0xf]
  %v3934 = vld [vmem:[%s47 + $0x290] sm:$0xf]
  %v3935 = vld [vmem:[%s47 + $0x294] sm:$0xf]
  %v3936 = vld [vmem:[%s47 + $0x298] sm:$0xf]
  %v3937 = vld [vmem:[%s47 + $0x29c] sm:$0xf]
  %v3938 = vld [vmem:[%s47 + $0x2a0] sm:$0xf]
  %v3939 = vld [vmem:[%s47 + $0x2a4] sm:$0xf]
  %v3940 = vld [vmem:[%s47 + $0x2a8] sm:$0xf]
  %v3941 = vld [vmem:[%s47 + $0x2ac] sm:$0xf]
  %v3942 = vld [vmem:[%s47 + $0x2b0] sm:$0xf]
  %v3943 = vld [vmem:[%s47 + $0x2b4] sm:$0xf]
  %v3944 = vld [vmem:[%s47 + $0x2b8] sm:$0xf]
  %v3945 = vld [vmem:[%s47 + $0x2bc] sm:$0xf]
  %v3946 = vld [vmem:[%s47 + $0x2c0] sm:$0xf]
  %v3947 = vld [vmem:[%s47 + $0x2c4] sm:$0xf]
  %v3948 = vld [vmem:[%s47 + $0x2c8] sm:$0xf]
  %v3949 = vld [vmem:[%s47 + $0x2cc] sm:$0xf]
  %v3950 = vld [vmem:[%s47 + $0x2d0] sm:$0xf]
  %v3951 = vld [vmem:[%s47 + $0x2d4] sm:$0xf]
  %v3952 = vld [vmem:[%s47 + $0x2d8] sm:$0xf]
  %v3953 = vld [vmem:[%s47 + $0x2dc] sm:$0xf]
  %v3954 = vld [vmem:[%s47 + $0x2e0] sm:$0xf]
  %v3955 = vld [vmem:[%s47 + $0x2e4] sm:$0xf]
  %v3956 = vld [vmem:[%s47 + $0x2e8] sm:$0xf]
  %v3957 = vld [vmem:[%s47 + $0x2ec] sm:$0xf]
  %v3958 = vld [vmem:[%s47 + $0x2f0] sm:$0xf]
  %v3959 = vld [vmem:[%s47 + $0x2f4] sm:$0xf]
  %v3960 = vld [vmem:[%s47 + $0x2f8] sm:$0xf]
  %v3961 = vld [vmem:[%s47 + $0x2fc] sm:$0xf]
  %v3962 = vld [vmem:[%s47 + $0x300] sm:$0xf]
  %v3963 = vld [vmem:[%s47 + $0x304] sm:$0xf]
  %v3964 = vld [vmem:[%s47 + $0x308] sm:$0xf]
  %v3965 = vld [vmem:[%s47 + $0x30c] sm:$0xf]
  %v3966 = vld [vmem:[%s47 + $0x310] sm:$0xf]
  %v3967 = vld [vmem:[%s47 + $0x314] sm:$0xf]
  %v3968 = vld [vmem:[%s47 + $0x318] sm:$0xf]
  %v3969 = vld [vmem:[%s47 + $0x31c] sm:$0xf]
  %v3970 = vld [vmem:[%s47 + $0x320] sm:$0xf]
  %v3971 = vld [vmem:[%s47 + $0x324] sm:$0xf]
  %v3972 = vld [vmem:[%s47 + $0x328] sm:$0xf]
  %v3973 = vld [vmem:[%s47 + $0x32c] sm:$0xf]
  %v3974 = vld [vmem:[%s47 + $0x330] sm:$0xf]
  %v3975 = vld [vmem:[%s47 + $0x334] sm:$0xf]
  %v3976 = vld [vmem:[%s47 + $0x338] sm:$0xf]
  %v3977 = vld [vmem:[%s47 + $0x33c] sm:$0xf]
  %v3978 = vld [vmem:[%s47 + $0x340] sm:$0xf]
  %v3979 = vld [vmem:[%s47 + $0x344] sm:$0xf]
  %v3980 = vld [vmem:[%s47 + $0x348] sm:$0xf]
  %v3981 = vld [vmem:[%s47 + $0x34c] sm:$0xf]
  %v3982 = vld [vmem:[%s47 + $0x350] sm:$0xf]
  %v3983 = vld [vmem:[%s47 + $0x354] sm:$0xf]
  %v3984 = vld [vmem:[%s47 + $0x358] sm:$0xf]
  %v3985 = vld [vmem:[%s47 + $0x35c] sm:$0xf]
  %v3986 = vld [vmem:[%s47 + $0x360] sm:$0xf]
  %v3987 = vld [vmem:[%s47 + $0x364] sm:$0xf]
  %v3988 = vld [vmem:[%s47 + $0x368] sm:$0xf]
  %v3989 = vld [vmem:[%s47 + $0x36c] sm:$0xf]
  %v3990 = vld [vmem:[%s47 + $0x370] sm:$0xf]
  %v3991 = vld [vmem:[%s47 + $0x374] sm:$0xf]
  %v3992 = vld [vmem:[%s47 + $0x378] sm:$0xf]
  %v3993 = vld [vmem:[%s47 + $0x37c] sm:$0xf]
  %v3994 = vld [vmem:[%s47 + $0x380] sm:$0xf]
  %v3995 = vld [vmem:[%s47 + $0x384] sm:$0xf]
  %v3996 = vld [vmem:[%s47 + $0x388] sm:$0xf]
  %v3997 = vld [vmem:[%s47 + $0x38c] sm:$0xf]
  %v3998 = vld [vmem:[%s47 + $0x390] sm:$0xf]
  %v3999 = vld [vmem:[%s47 + $0x394] sm:$0xf]
  %v4000 = vld [vmem:[%s47 + $0x398] sm:$0xf]
  %v4001 = vld [vmem:[%s47 + $0x39c] sm:$0xf]
  %v4002 = vld [vmem:[%s47 + $0x3a0] sm:$0xf]
  %v4003 = vld [vmem:[%s47 + $0x3a4] sm:$0xf]
  %v4004 = vld [vmem:[%s47 + $0x3a8] sm:$0xf]
  %v4005 = vld [vmem:[%s47 + $0x3ac] sm:$0xf]
  %v4006 = vld [vmem:[%s47 + $0x3b0] sm:$0xf]
  %v4007 = vld [vmem:[%s47 + $0x3b4] sm:$0xf]
  %v4008 = vld [vmem:[%s47 + $0x3b8] sm:$0xf]
  %v4009 = vld [vmem:[%s47 + $0x3bc] sm:$0xf]
  %v4010 = vld [vmem:[%s47 + $0x3c0] sm:$0xf]
  %v4011 = vld [vmem:[%s47 + $0x3c4] sm:$0xf]
  %v4012 = vld [vmem:[%s47 + $0x3c8] sm:$0xf]
  %v4013 = vld [vmem:[%s47 + $0x3cc] sm:$0xf]
  %v4014 = vld [vmem:[%s47 + $0x3d0] sm:$0xf]
  %v4015 = vld [vmem:[%s47 + $0x3d4] sm:$0xf]
  %v4016 = vld [vmem:[%s47 + $0x3d8] sm:$0xf]
  %v4017 = vld [vmem:[%s47 + $0x3dc] sm:$0xf]
  %v4018 = vld [vmem:[%s47 + $0x3e0] sm:$0xf]
  %v4019 = vld [vmem:[%s47 + $0x3e4] sm:$0xf]
  %v4020 = vld [vmem:[%s47 + $0x3e8] sm:$0xf]
  %v4021 = vld [vmem:[%s47 + $0x3ec] sm:$0xf]
  %v4022 = vld [vmem:[%s47 + $0x3f0] sm:$0xf]
  %v4023 = vld [vmem:[%s47 + $0x3f4] sm:$0xf]
  %v4024 = vld [vmem:[%s47 + $0x3f8] sm:$0xf]
  %v4025 = vld [vmem:[%s47 + $0x3fc] sm:$0xf]
  %v4026 = vpack.c.bf16 %v3754, %v3738
  %v4027 = vpack.c.bf16 %v3755, %v3739
  %v4028 = vpack.c.bf16 %v3756, %v3740
  %v4029 = vpack.c.bf16 %v3757, %v3741
  %v4030 = vpack.c.bf16 %v3758, %v3742
  %v4031 = vpack.c.bf16 %v3759, %v3743
  %v4032 = vpack.c.bf16 %v3760, %v3744
  %v4033 = vpack.c.bf16 %v3761, %v3745
  %v4034 = vpack.c.bf16 %v3762, %v3746
  %v4035 = vpack.c.bf16 %v3763, %v3747
  %v4036 = vpack.c.bf16 %v3764, %v3748
  %v4037 = vpack.c.bf16 %v3765, %v3749
  %v4038 = vpack.c.bf16 %v3766, %v3750
  %v4039 = vpack.c.bf16 %v3767, %v3751
  %v4040 = vpack.c.bf16 %v3768, %v3752
  %v4041 = vpack.c.bf16 %v3769, %v3753
  %v4042 = vld [vmem:[%s49] sm:$0x1]
  %v4044 = vperm.slane %v4042, 0
  %v4302 = vunpack.c.l.b16 %v3770
  %v4303 = vunpack.c.l.b16 %v3771
  %v4304 = vunpack.c.l.b16 %v3772
  %v4305 = vunpack.c.l.b16 %v3773
  %v4306 = vunpack.c.l.b16 %v3774
  %v4307 = vunpack.c.l.b16 %v3775
  %v4308 = vunpack.c.l.b16 %v3776
  %v4309 = vunpack.c.l.b16 %v3777
  %v4310 = vunpack.c.l.b16 %v3778
  %v4311 = vunpack.c.l.b16 %v3779
  %v4312 = vunpack.c.l.b16 %v3780
  %v4313 = vunpack.c.l.b16 %v3781
  %v4314 = vunpack.c.l.b16 %v3782
  %v4315 = vunpack.c.l.b16 %v3783
  %v4316 = vunpack.c.l.b16 %v3784
  %v4317 = vunpack.c.l.b16 %v3785
  %v4318 = vunpack.c.l.b16 %v3786
  %v4319 = vunpack.c.l.b16 %v3787
  %v4320 = vunpack.c.l.b16 %v3788
  %v4321 = vunpack.c.l.b16 %v3789
  %v4322 = vunpack.c.l.b16 %v3790
  %v4323 = vunpack.c.l.b16 %v3791
  %v4324 = vunpack.c.l.b16 %v3792
  %v4325 = vunpack.c.l.b16 %v3793
  %v4326 = vunpack.c.l.b16 %v3794
  %v4327 = vunpack.c.l.b16 %v3795
  %v4328 = vunpack.c.l.b16 %v3796
  %v4329 = vunpack.c.l.b16 %v3797
  %v4330 = vunpack.c.l.b16 %v3798
  %v4331 = vunpack.c.l.b16 %v3799
  %v4332 = vunpack.c.l.b16 %v3800
  %v4333 = vunpack.c.l.b16 %v3801
  %v4334 = vunpack.c.l.b16 %v3802
  %v4335 = vunpack.c.l.b16 %v3803
  %v4336 = vunpack.c.l.b16 %v3804
  %v4337 = vunpack.c.l.b16 %v3805
  %v4338 = vunpack.c.l.b16 %v3806
  %v4339 = vunpack.c.l.b16 %v3807
  %v4340 = vunpack.c.l.b16 %v3808
  %v4341 = vunpack.c.l.b16 %v3809
  %v4342 = vunpack.c.l.b16 %v3810
  %v4343 = vunpack.c.l.b16 %v3811
  %v4344 = vunpack.c.l.b16 %v3812
  %v4345 = vunpack.c.l.b16 %v3813
  %v4346 = vunpack.c.l.b16 %v3814
  %v4347 = vunpack.c.l.b16 %v3815
  %v4348 = vunpack.c.l.b16 %v3816
  %v4349 = vunpack.c.l.b16 %v3817
  %v4350 = vunpack.c.l.b16 %v3818
  %v4351 = vunpack.c.l.b16 %v3819
  %v4352 = vunpack.c.l.b16 %v3820
  %v4353 = vunpack.c.l.b16 %v3821
  %v4354 = vunpack.c.l.b16 %v3822
  %v4355 = vunpack.c.l.b16 %v3823
  %v4356 = vunpack.c.l.b16 %v3824
  %v4357 = vunpack.c.l.b16 %v3825
  %v4358 = vunpack.c.l.b16 %v3826
  %v4359 = vunpack.c.l.b16 %v3827
  %v4360 = vunpack.c.l.b16 %v3828
  %v4361 = vunpack.c.l.b16 %v3829
  %v4362 = vunpack.c.l.b16 %v3830
  %v4363 = vunpack.c.l.b16 %v3831
  %v4364 = vunpack.c.l.b16 %v3832
  %v4365 = vunpack.c.l.b16 %v3833
  %v4366 = vunpack.c.l.b16 %v3834
  %v4367 = vunpack.c.l.b16 %v3835
  %v4368 = vunpack.c.l.b16 %v3836
  %v4369 = vunpack.c.l.b16 %v3837
  %v4370 = vunpack.c.l.b16 %v3838
  %v4371 = vunpack.c.l.b16 %v3839
  %v4372 = vunpack.c.l.b16 %v3840
  %v4373 = vunpack.c.l.b16 %v3841
  %v4374 = vunpack.c.l.b16 %v3842
  %v4375 = vunpack.c.l.b16 %v3843
  %v4376 = vunpack.c.l.b16 %v3844
  %v4377 = vunpack.c.l.b16 %v3845
  %v4378 = vunpack.c.l.b16 %v3846
  %v4379 = vunpack.c.l.b16 %v3847
  %v4380 = vunpack.c.l.b16 %v3848
  %v4381 = vunpack.c.l.b16 %v3849
  %v4382 = vunpack.c.l.b16 %v3850
  %v4383 = vunpack.c.l.b16 %v3851
  %v4384 = vunpack.c.l.b16 %v3852
  %v4385 = vunpack.c.l.b16 %v3853
  %v4386 = vunpack.c.l.b16 %v3854
  %v4387 = vunpack.c.l.b16 %v3855
  %v4388 = vunpack.c.l.b16 %v3856
  %v4389 = vunpack.c.l.b16 %v3857
  %v4390 = vunpack.c.l.b16 %v3858
  %v4391 = vunpack.c.l.b16 %v3859
  %v4392 = vunpack.c.l.b16 %v3860
  %v4393 = vunpack.c.l.b16 %v3861
  %v4394 = vunpack.c.l.b16 %v3862
  %v4395 = vunpack.c.l.b16 %v3863
  %v4396 = vunpack.c.l.b16 %v3864
  %v4397 = vunpack.c.l.b16 %v3865
  %v4398 = vunpack.c.l.b16 %v3866
  %v4399 = vunpack.c.l.b16 %v3867
  %v4400 = vunpack.c.l.b16 %v3868
  %v4401 = vunpack.c.l.b16 %v3869
  %v4402 = vunpack.c.l.b16 %v3870
  %v4403 = vunpack.c.l.b16 %v3871
  %v4404 = vunpack.c.l.b16 %v3872
  %v4405 = vunpack.c.l.b16 %v3873
  %v4406 = vunpack.c.l.b16 %v3874
  %v4407 = vunpack.c.l.b16 %v3875
  %v4408 = vunpack.c.l.b16 %v3876
  %v4409 = vunpack.c.l.b16 %v3877
  %v4410 = vunpack.c.l.b16 %v3878
  %v4411 = vunpack.c.l.b16 %v3879
  %v4412 = vunpack.c.l.b16 %v3880
  %v4413 = vunpack.c.l.b16 %v3881
  %v4414 = vunpack.c.l.b16 %v3882
  %v4415 = vunpack.c.l.b16 %v3883
  %v4416 = vunpack.c.l.b16 %v3884
  %v4417 = vunpack.c.l.b16 %v3885
  %v4418 = vunpack.c.l.b16 %v3886
  %v4419 = vunpack.c.l.b16 %v3887
  %v4420 = vunpack.c.l.b16 %v3888
  %v4421 = vunpack.c.l.b16 %v3889
  %v4422 = vunpack.c.l.b16 %v3890
  %v4423 = vunpack.c.l.b16 %v3891
  %v4424 = vunpack.c.l.b16 %v3892
  %v4425 = vunpack.c.l.b16 %v3893
  %v4426 = vunpack.c.l.b16 %v3894
  %v4427 = vunpack.c.l.b16 %v3895
  %v4428 = vunpack.c.l.b16 %v3896
  %v4429 = vunpack.c.l.b16 %v3897
  %v4430 = vunpack.c.l.b16 %v3898
  %v4431 = vunpack.c.l.b16 %v3899
  %v4432 = vunpack.c.l.b16 %v3900
  %v4433 = vunpack.c.l.b16 %v3901
  %v4434 = vunpack.c.l.b16 %v3902
  %v4435 = vunpack.c.l.b16 %v3903
  %v4436 = vunpack.c.l.b16 %v3904
  %v4437 = vunpack.c.l.b16 %v3905
  %v4438 = vunpack.c.l.b16 %v3906
  %v4439 = vunpack.c.l.b16 %v3907
  %v4440 = vunpack.c.l.b16 %v3908
  %v4441 = vunpack.c.l.b16 %v3909
  %v4442 = vunpack.c.l.b16 %v3910
  %v4443 = vunpack.c.l.b16 %v3911
  %v4444 = vunpack.c.l.b16 %v3912
  %v4445 = vunpack.c.l.b16 %v3913
  %v4446 = vunpack.c.l.b16 %v3914
  %v4447 = vunpack.c.l.b16 %v3915
  %v4448 = vunpack.c.l.b16 %v3916
  %v4449 = vunpack.c.l.b16 %v3917
  %v4450 = vunpack.c.l.b16 %v3918
  %v4451 = vunpack.c.l.b16 %v3919
  %v4452 = vunpack.c.l.b16 %v3920
  %v4453 = vunpack.c.l.b16 %v3921
  %v4454 = vunpack.c.l.b16 %v3922
  %v4455 = vunpack.c.l.b16 %v3923
  %v4456 = vunpack.c.l.b16 %v3924
  %v4457 = vunpack.c.l.b16 %v3925
  %v4458 = vunpack.c.l.b16 %v3926
  %v4459 = vunpack.c.l.b16 %v3927
  %v4460 = vunpack.c.l.b16 %v3928
  %v4461 = vunpack.c.l.b16 %v3929
  %v4462 = vunpack.c.l.b16 %v3930
  %v4463 = vunpack.c.l.b16 %v3931
  %v4464 = vunpack.c.l.b16 %v3932
  %v4465 = vunpack.c.l.b16 %v3933
  %v4466 = vunpack.c.l.b16 %v3934
  %v4467 = vunpack.c.l.b16 %v3935
  %v4468 = vunpack.c.l.b16 %v3936
  %v4469 = vunpack.c.l.b16 %v3937
  %v4470 = vunpack.c.l.b16 %v3938
  %v4471 = vunpack.c.l.b16 %v3939
  %v4472 = vunpack.c.l.b16 %v3940
  %v4473 = vunpack.c.l.b16 %v3941
  %v4474 = vunpack.c.l.b16 %v3942
  %v4475 = vunpack.c.l.b16 %v3943
  %v4476 = vunpack.c.l.b16 %v3944
  %v4477 = vunpack.c.l.b16 %v3945
  %v4478 = vunpack.c.l.b16 %v3946
  %v4479 = vunpack.c.l.b16 %v3947
  %v4480 = vunpack.c.l.b16 %v3948
  %v4481 = vunpack.c.l.b16 %v3949
  %v4482 = vunpack.c.l.b16 %v3950
  %v4483 = vunpack.c.l.b16 %v3951
  %v4484 = vunpack.c.l.b16 %v3952
  %v4485 = vunpack.c.l.b16 %v3953
  %v4486 = vunpack.c.l.b16 %v3954
  %v4487 = vunpack.c.l.b16 %v3955
  %v4488 = vunpack.c.l.b16 %v3956
  %v4489 = vunpack.c.l.b16 %v3957
  %v4490 = vunpack.c.l.b16 %v3958
  %v4491 = vunpack.c.l.b16 %v3959
  %v4492 = vunpack.c.l.b16 %v3960
  %v4493 = vunpack.c.l.b16 %v3961
  %v4494 = vunpack.c.l.b16 %v3962
  %v4495 = vunpack.c.l.b16 %v3963
  %v4496 = vunpack.c.l.b16 %v3964
  %v4497 = vunpack.c.l.b16 %v3965
  %v4498 = vunpack.c.l.b16 %v3966
  %v4499 = vunpack.c.l.b16 %v3967
  %v4500 = vunpack.c.l.b16 %v3968
  %v4501 = vunpack.c.l.b16 %v3969
  %v4502 = vunpack.c.l.b16 %v3970
  %v4503 = vunpack.c.l.b16 %v3971
  %v4504 = vunpack.c.l.b16 %v3972
  %v4505 = vunpack.c.l.b16 %v3973
  %v4506 = vunpack.c.l.b16 %v3974
  %v4507 = vunpack.c.l.b16 %v3975
  %v4508 = vunpack.c.l.b16 %v3976
  %v4509 = vunpack.c.l.b16 %v3977
  %v4510 = vunpack.c.l.b16 %v3978
  %v4511 = vunpack.c.l.b16 %v3979
  %v4512 = vunpack.c.l.b16 %v3980
  %v4513 = vunpack.c.l.b16 %v3981
  %v4514 = vunpack.c.l.b16 %v3982
  %v4515 = vunpack.c.l.b16 %v3983
  %v4516 = vunpack.c.l.b16 %v3984
  %v4517 = vunpack.c.l.b16 %v3985
  %v4518 = vunpack.c.l.b16 %v3986
  %v4519 = vunpack.c.l.b16 %v3987
  %v4520 = vunpack.c.l.b16 %v3988
  %v4521 = vunpack.c.l.b16 %v3989
  %v4522 = vunpack.c.l.b16 %v3990
  %v4523 = vunpack.c.l.b16 %v3991
  %v4524 = vunpack.c.l.b16 %v3992
  %v4525 = vunpack.c.l.b16 %v3993
  %v4526 = vunpack.c.l.b16 %v3994
  %v4527 = vunpack.c.l.b16 %v3995
  %v4528 = vunpack.c.l.b16 %v3996
  %v4529 = vunpack.c.l.b16 %v3997
  %v4530 = vunpack.c.l.b16 %v3998
  %v4531 = vunpack.c.l.b16 %v3999
  %v4532 = vunpack.c.l.b16 %v4000
  %v4533 = vunpack.c.l.b16 %v4001
  %v4534 = vunpack.c.l.b16 %v4002
  %v4535 = vunpack.c.l.b16 %v4003
  %v4536 = vunpack.c.l.b16 %v4004
  %v4537 = vunpack.c.l.b16 %v4005
  %v4538 = vunpack.c.l.b16 %v4006
  %v4539 = vunpack.c.l.b16 %v4007
  %v4540 = vunpack.c.l.b16 %v4008
  %v4541 = vunpack.c.l.b16 %v4009
  %v4542 = vunpack.c.l.b16 %v4010
  %v4543 = vunpack.c.l.b16 %v4011
  %v4544 = vunpack.c.l.b16 %v4012
  %v4545 = vunpack.c.l.b16 %v4013
  %v4546 = vunpack.c.l.b16 %v4014
  %v4547 = vunpack.c.l.b16 %v4015
  %v4548 = vunpack.c.l.b16 %v4016
  %v4549 = vunpack.c.l.b16 %v4017
  %v4550 = vunpack.c.l.b16 %v4018
  %v4551 = vunpack.c.l.b16 %v4019
  %v4552 = vunpack.c.l.b16 %v4020
  %v4553 = vunpack.c.l.b16 %v4021
  %v4554 = vunpack.c.l.b16 %v4022
  %v4555 = vunpack.c.l.b16 %v4023
  %v4556 = vunpack.c.l.b16 %v4024
  %v4557 = vunpack.c.l.b16 %v4025
  %v4558 = vpack.c.b16 %v4303, %v4302
  %v4559 = vpack.c.b16 %v4305, %v4304
  %v4560 = vpack.c.b16 %v4307, %v4306
  %v4561 = vpack.c.b16 %v4309, %v4308
  %v4562 = vpack.c.b16 %v4311, %v4310
  %v4563 = vpack.c.b16 %v4313, %v4312
  %v4564 = vpack.c.b16 %v4315, %v4314
  %v4565 = vpack.c.b16 %v4317, %v4316
  %v4566 = vpack.c.b16 %v4319, %v4318
  %v4567 = vpack.c.b16 %v4321, %v4320
  %v4568 = vpack.c.b16 %v4323, %v4322
  %v4569 = vpack.c.b16 %v4325, %v4324
  %v4570 = vpack.c.b16 %v4327, %v4326
  %v4571 = vpack.c.b16 %v4329, %v4328
  %v4572 = vpack.c.b16 %v4331, %v4330
  %v4573 = vpack.c.b16 %v4333, %v4332
  %v4574 = vpack.c.b16 %v4335, %v4334
  %v4575 = vpack.c.b16 %v4337, %v4336
  %v4576 = vpack.c.b16 %v4339, %v4338
  %v4577 = vpack.c.b16 %v4341, %v4340
  %v4578 = vpack.c.b16 %v4343, %v4342
  %v4579 = vpack.c.b16 %v4345, %v4344
  %v4580 = vpack.c.b16 %v4347, %v4346
  %v4581 = vpack.c.b16 %v4349, %v4348
  %v4582 = vpack.c.b16 %v4351, %v4350
  %v4583 = vpack.c.b16 %v4353, %v4352
  %v4584 = vpack.c.b16 %v4355, %v4354
  %v4585 = vpack.c.b16 %v4357, %v4356
  %v4586 = vpack.c.b16 %v4359, %v4358
  %v4587 = vpack.c.b16 %v4361, %v4360
  %v4588 = vpack.c.b16 %v4363, %v4362
  %v4589 = vpack.c.b16 %v4365, %v4364
  %v4590 = vpack.c.b16 %v4367, %v4366
  %v4591 = vpack.c.b16 %v4369, %v4368
  %v4592 = vpack.c.b16 %v4371, %v4370
  %v4593 = vpack.c.b16 %v4373, %v4372
  %v4594 = vpack.c.b16 %v4375, %v4374
  %v4595 = vpack.c.b16 %v4377, %v4376
  %v4596 = vpack.c.b16 %v4379, %v4378
  %v4597 = vpack.c.b16 %v4381, %v4380
  %v4598 = vpack.c.b16 %v4383, %v4382
  %v4599 = vpack.c.b16 %v4385, %v4384
  %v4600 = vpack.c.b16 %v4387, %v4386
  %v4601 = vpack.c.b16 %v4389, %v4388
  %v4602 = vpack.c.b16 %v4391, %v4390
  %v4603 = vpack.c.b16 %v4393, %v4392
  %v4604 = vpack.c.b16 %v4395, %v4394
  %v4605 = vpack.c.b16 %v4397, %v4396
  %v4606 = vpack.c.b16 %v4399, %v4398
  %v4607 = vpack.c.b16 %v4401, %v4400
  %v4608 = vpack.c.b16 %v4403, %v4402
  %v4609 = vpack.c.b16 %v4405, %v4404
  %v4610 = vpack.c.b16 %v4407, %v4406
  %v4611 = vpack.c.b16 %v4409, %v4408
  %v4612 = vpack.c.b16 %v4411, %v4410
  %v4613 = vpack.c.b16 %v4413, %v4412
  %v4614 = vpack.c.b16 %v4415, %v4414
  %v4615 = vpack.c.b16 %v4417, %v4416
  %v4616 = vpack.c.b16 %v4419, %v4418
  %v4617 = vpack.c.b16 %v4421, %v4420
  %v4618 = vpack.c.b16 %v4423, %v4422
  %v4619 = vpack.c.b16 %v4425, %v4424
  %v4620 = vpack.c.b16 %v4427, %v4426
  %v4621 = vpack.c.b16 %v4429, %v4428
  %v4622 = vpack.c.b16 %v4431, %v4430
  %v4623 = vpack.c.b16 %v4433, %v4432
  %v4624 = vpack.c.b16 %v4435, %v4434
  %v4625 = vpack.c.b16 %v4437, %v4436
  %v4626 = vpack.c.b16 %v4439, %v4438
  %v4627 = vpack.c.b16 %v4441, %v4440
  %v4628 = vpack.c.b16 %v4443, %v4442
  %v4629 = vpack.c.b16 %v4445, %v4444
  %v4630 = vpack.c.b16 %v4447, %v4446
  %v4631 = vpack.c.b16 %v4449, %v4448
  %v4632 = vpack.c.b16 %v4451, %v4450
  %v4633 = vpack.c.b16 %v4453, %v4452
  %v4634 = vpack.c.b16 %v4455, %v4454
  %v4635 = vpack.c.b16 %v4457, %v4456
  %v4636 = vpack.c.b16 %v4459, %v4458
  %v4637 = vpack.c.b16 %v4461, %v4460
  %v4638 = vpack.c.b16 %v4463, %v4462
  %v4639 = vpack.c.b16 %v4465, %v4464
  %v4640 = vpack.c.b16 %v4467, %v4466
  %v4641 = vpack.c.b16 %v4469, %v4468
  %v4642 = vpack.c.b16 %v4471, %v4470
  %v4643 = vpack.c.b16 %v4473, %v4472
  %v4644 = vpack.c.b16 %v4475, %v4474
  %v4645 = vpack.c.b16 %v4477, %v4476
  %v4646 = vpack.c.b16 %v4479, %v4478
  %v4647 = vpack.c.b16 %v4481, %v4480
  %v4648 = vpack.c.b16 %v4483, %v4482
  %v4649 = vpack.c.b16 %v4485, %v4484
  %v4650 = vpack.c.b16 %v4487, %v4486
  %v4651 = vpack.c.b16 %v4489, %v4488
  %v4652 = vpack.c.b16 %v4491, %v4490
  %v4653 = vpack.c.b16 %v4493, %v4492
  %v4654 = vpack.c.b16 %v4495, %v4494
  %v4655 = vpack.c.b16 %v4497, %v4496
  %v4656 = vpack.c.b16 %v4499, %v4498
  %v4657 = vpack.c.b16 %v4501, %v4500
  %v4658 = vpack.c.b16 %v4503, %v4502
  %v4659 = vpack.c.b16 %v4505, %v4504
  %v4660 = vpack.c.b16 %v4507, %v4506
  %v4661 = vpack.c.b16 %v4509, %v4508
  %v4662 = vpack.c.b16 %v4511, %v4510
  %v4663 = vpack.c.b16 %v4513, %v4512
  %v4664 = vpack.c.b16 %v4515, %v4514
  %v4665 = vpack.c.b16 %v4517, %v4516
  %v4666 = vpack.c.b16 %v4519, %v4518
  %v4667 = vpack.c.b16 %v4521, %v4520
  %v4668 = vpack.c.b16 %v4523, %v4522
  %v4669 = vpack.c.b16 %v4525, %v4524
  %v4670 = vpack.c.b16 %v4527, %v4526
  %v4671 = vpack.c.b16 %v4529, %v4528
  %v4672 = vpack.c.b16 %v4531, %v4530
  %v4673 = vpack.c.b16 %v4533, %v4532
  %v4674 = vpack.c.b16 %v4535, %v4534
  %v4675 = vpack.c.b16 %v4537, %v4536
  %v4676 = vpack.c.b16 %v4539, %v4538
  %v4677 = vpack.c.b16 %v4541, %v4540
  %v4678 = vpack.c.b16 %v4543, %v4542
  %v4679 = vpack.c.b16 %v4545, %v4544
  %v4680 = vpack.c.b16 %v4547, %v4546
  %v4681 = vpack.c.b16 %v4549, %v4548
  %v4682 = vpack.c.b16 %v4551, %v4550
  %v4683 = vpack.c.b16 %v4553, %v4552
  %v4684 = vpack.c.b16 %v4555, %v4554
  %v4685 = vpack.c.b16 %v4557, %v4556
  %4814 = vmatpush.bf16.msra.mxu0 %v4565
  %4815 = vmatpush.bf16.msra.mxu0 %v4564
  %4816 = vmatpush.bf16.msra.mxu0 %v4563
  %4817 = vmatpush.bf16.msra.mxu0 %v4562
  %4818 = vmatpush.bf16.msra.mxu0 %v4561
  %4819 = vmatpush.bf16.msra.mxu0 %v4560
  %4820 = vmatpush.bf16.msra.mxu0 %v4559
  %4821 = vmatpush.bf16.msra.mxu0 %v4558
  %4822 = vmatmul.bf16.gmra.mxu0 %v4026
  %v4823 = vpop.f32.mrf.mxu0
  %v4824 = vadd.f32 %v4044, %v4823
  %v4825 = vpop.f32.mrf.mxu0
  %v4826 = vadd.f32 %v4044, %v4825
  %4827 = vdwg.mxu0
  %4828 = vmatpush.bf16.msra.mxu0 %v4573
  %4829 = vmatpush.bf16.msra.mxu0 %v4572
  %4830 = vmatpush.bf16.msra.mxu0 %v4571
  %4831 = vmatpush.bf16.msra.mxu0 %v4570
  %4832 = vmatpush.bf16.msra.mxu0 %v4569
  %4833 = vmatpush.bf16.msra.mxu0 %v4568
  %4834 = vmatpush.bf16.msra.mxu0 %v4567
  %4835 = vmatpush.bf16.msra.mxu0 %v4566
  %4836 = vmatmul.bf16.gmra.mxu0 %v4027
  %v4837 = vpop.f32.mrf.mxu0
  %v4838 = vadd.f32 %v4824, %v4837
  %v4839 = vpop.f32.mrf.mxu0
  %v4840 = vadd.f32 %v4826, %v4839
  %4841 = vdwg.mxu0
  %4842 = vmatpush.bf16.msra.mxu0 %v4581
  %4843 = vmatpush.bf16.msra.mxu0 %v4580
  %4844 = vmatpush.bf16.msra.mxu0 %v4579
  %4845 = vmatpush.bf16.msra.mxu0 %v4578
  %4846 = vmatpush.bf16.msra.mxu0 %v4577
  %4847 = vmatpush.bf16.msra.mxu0 %v4576
  %4848 = vmatpush.bf16.msra.mxu0 %v4575
  %4849 = vmatpush.bf16.msra.mxu0 %v4574
  %4850 = vmatmul.bf16.gmra.mxu0 %v4028
  %v4851 = vpop.f32.mrf.mxu0
  %v4852 = vadd.f32 %v4838, %v4851
  %v4853 = vpop.f32.mrf.mxu0
  %v4854 = vadd.f32 %v4840, %v4853
  %4855 = vdwg.mxu0
  %4856 = vmatpush.bf16.msra.mxu0 %v4589
  %4857 = vmatpush.bf16.msra.mxu0 %v4588
  %4858 = vmatpush.bf16.msra.mxu0 %v4587
  %4859 = vmatpush.bf16.msra.mxu0 %v4586
  %4860 = vmatpush.bf16.msra.mxu0 %v4585
  %4861 = vmatpush.bf16.msra.mxu0 %v4584
  %4862 = vmatpush.bf16.msra.mxu0 %v4583
  %4863 = vmatpush.bf16.msra.mxu0 %v4582
  %4864 = vmatmul.bf16.gmra.mxu0 %v4029
  %v4865 = vpop.f32.mrf.mxu0
  %v4866 = vadd.f32 %v4852, %v4865
  %v4867 = vpop.f32.mrf.mxu0
  %v4868 = vadd.f32 %v4854, %v4867
  %4869 = vdwg.mxu0
  %4870 = vmatpush.bf16.msra.mxu0 %v4597
  %4871 = vmatpush.bf16.msra.mxu0 %v4596
  %4872 = vmatpush.bf16.msra.mxu0 %v4595
  %4873 = vmatpush.bf16.msra.mxu0 %v4594
  %4874 = vmatpush.bf16.msra.mxu0 %v4593
  %4875 = vmatpush.bf16.msra.mxu0 %v4592
  %4876 = vmatpush.bf16.msra.mxu0 %v4591
  %4877 = vmatpush.bf16.msra.mxu0 %v4590
  %4878 = vmatmul.bf16.gmra.mxu0 %v4030
  %v4879 = vpop.f32.mrf.mxu0
  %v4880 = vadd.f32 %v4866, %v4879
  %v4881 = vpop.f32.mrf.mxu0
  %v4882 = vadd.f32 %v4868, %v4881
  %4883 = vdwg.mxu0
  %4884 = vmatpush.bf16.msra.mxu0 %v4605
  %4885 = vmatpush.bf16.msra.mxu0 %v4604
  %4886 = vmatpush.bf16.msra.mxu0 %v4603
  %4887 = vmatpush.bf16.msra.mxu0 %v4602
  %4888 = vmatpush.bf16.msra.mxu0 %v4601
  %4889 = vmatpush.bf16.msra.mxu0 %v4600
  %4890 = vmatpush.bf16.msra.mxu0 %v4599
  %4891 = vmatpush.bf16.msra.mxu0 %v4598
  %4892 = vmatmul.bf16.gmra.mxu0 %v4031
  %v4893 = vpop.f32.mrf.mxu0
  %v4894 = vadd.f32 %v4880, %v4893
  %v4895 = vpop.f32.mrf.mxu0
  %v4896 = vadd.f32 %v4882, %v4895
  %4897 = vdwg.mxu0
  %4898 = vmatpush.bf16.msra.mxu0 %v4613
  %4899 = vmatpush.bf16.msra.mxu0 %v4612
  %4900 = vmatpush.bf16.msra.mxu0 %v4611
  %4901 = vmatpush.bf16.msra.mxu0 %v4610
  %4902 = vmatpush.bf16.msra.mxu0 %v4609
  %4903 = vmatpush.bf16.msra.mxu0 %v4608
  %4904 = vmatpush.bf16.msra.mxu0 %v4607
  %4905 = vmatpush.bf16.msra.mxu0 %v4606
  %4906 = vmatmul.bf16.gmra.mxu0 %v4032
  %v4907 = vpop.f32.mrf.mxu0
  %v4908 = vadd.f32 %v4894, %v4907
  %v4909 = vpop.f32.mrf.mxu0
  %v4910 = vadd.f32 %v4896, %v4909
  %4911 = vdwg.mxu0
  %4912 = vmatpush.bf16.msra.mxu0 %v4621
  %4913 = vmatpush.bf16.msra.mxu0 %v4620
  %4914 = vmatpush.bf16.msra.mxu0 %v4619
  %4915 = vmatpush.bf16.msra.mxu0 %v4618
  %4916 = vmatpush.bf16.msra.mxu0 %v4617
  %4917 = vmatpush.bf16.msra.mxu0 %v4616
  %4918 = vmatpush.bf16.msra.mxu0 %v4615
  %4919 = vmatpush.bf16.msra.mxu0 %v4614
  %4920 = vmatmul.bf16.gmra.mxu0 %v4033
  %v4921 = vpop.f32.mrf.mxu0
  %v4922 = vadd.f32 %v4908, %v4921
  %v4923 = vpop.f32.mrf.mxu0
  %v4924 = vadd.f32 %v4910, %v4923
  %4925 = vdwg.mxu0
  %4926 = vmatpush.bf16.msra.mxu0 %v4629
  %4927 = vmatpush.bf16.msra.mxu0 %v4628
  %4928 = vmatpush.bf16.msra.mxu0 %v4627
  %4929 = vmatpush.bf16.msra.mxu0 %v4626
  %4930 = vmatpush.bf16.msra.mxu0 %v4625
  %4931 = vmatpush.bf16.msra.mxu0 %v4624
  %4932 = vmatpush.bf16.msra.mxu0 %v4623
  %4933 = vmatpush.bf16.msra.mxu0 %v4622
  %4934 = vmatmul.bf16.gmra.mxu0 %v4034
  %v4935 = vpop.f32.mrf.mxu0
  %v4936 = vadd.f32 %v4922, %v4935
  %v4937 = vpop.f32.mrf.mxu0
  %v4938 = vadd.f32 %v4924, %v4937
  %4939 = vdwg.mxu0
  %4940 = vmatpush.bf16.msra.mxu0 %v4637
  %4941 = vmatpush.bf16.msra.mxu0 %v4636
  %4942 = vmatpush.bf16.msra.mxu0 %v4635
  %4943 = vmatpush.bf16.msra.mxu0 %v4634
  %4944 = vmatpush.bf16.msra.mxu0 %v4633
  %4945 = vmatpush.bf16.msra.mxu0 %v4632
  %4946 = vmatpush.bf16.msra.mxu0 %v4631
  %4947 = vmatpush.bf16.msra.mxu0 %v4630
  %4948 = vmatmul.bf16.gmra.mxu0 %v4035
  %v4949 = vpop.f32.mrf.mxu0
  %v4950 = vadd.f32 %v4936, %v4949
  %v4951 = vpop.f32.mrf.mxu0
  %v4952 = vadd.f32 %v4938, %v4951
  %4953 = vdwg.mxu0
  %4954 = vmatpush.bf16.msra.mxu0 %v4645
  %4955 = vmatpush.bf16.msra.mxu0 %v4644
  %4956 = vmatpush.bf16.msra.mxu0 %v4643
  %4957 = vmatpush.bf16.msra.mxu0 %v4642
  %4958 = vmatpush.bf16.msra.mxu0 %v4641
  %4959 = vmatpush.bf16.msra.mxu0 %v4640
  %4960 = vmatpush.bf16.msra.mxu0 %v4639
  %4961 = vmatpush.bf16.msra.mxu0 %v4638
  %4962 = vmatmul.bf16.gmra.mxu0 %v4036
  %v4963 = vpop.f32.mrf.mxu0
  %v4964 = vadd.f32 %v4950, %v4963
  %v4965 = vpop.f32.mrf.mxu0
  %v4966 = vadd.f32 %v4952, %v4965
  %4967 = vdwg.mxu0
  %4968 = vmatpush.bf16.msra.mxu0 %v4653
  %4969 = vmatpush.bf16.msra.mxu0 %v4652
  %4970 = vmatpush.bf16.msra.mxu0 %v4651
  %4971 = vmatpush.bf16.msra.mxu0 %v4650
  %4972 = vmatpush.bf16.msra.mxu0 %v4649
  %4973 = vmatpush.bf16.msra.mxu0 %v4648
  %4974 = vmatpush.bf16.msra.mxu0 %v4647
  %4975 = vmatpush.bf16.msra.mxu0 %v4646
  %4976 = vmatmul.bf16.gmra.mxu0 %v4037
  %v4977 = vpop.f32.mrf.mxu0
  %v4978 = vadd.f32 %v4964, %v4977
  %v4979 = vpop.f32.mrf.mxu0
  %v4980 = vadd.f32 %v4966, %v4979
  %4981 = vdwg.mxu0
  %4982 = vmatpush.bf16.msra.mxu0 %v4661
  %4983 = vmatpush.bf16.msra.mxu0 %v4660
  %4984 = vmatpush.bf16.msra.mxu0 %v4659
  %4985 = vmatpush.bf16.msra.mxu0 %v4658
  %4986 = vmatpush.bf16.msra.mxu0 %v4657
  %4987 = vmatpush.bf16.msra.mxu0 %v4656
  %4988 = vmatpush.bf16.msra.mxu0 %v4655
  %4989 = vmatpush.bf16.msra.mxu0 %v4654
  %4990 = vmatmul.bf16.gmra.mxu0 %v4038
  %v4991 = vpop.f32.mrf.mxu0
  %v4992 = vadd.f32 %v4978, %v4991
  %v4993 = vpop.f32.mrf.mxu0
  %v4994 = vadd.f32 %v4980, %v4993
  %4995 = vdwg.mxu0
  %4996 = vmatpush.bf16.msra.mxu0 %v4669
  %4997 = vmatpush.bf16.msra.mxu0 %v4668
  %4998 = vmatpush.bf16.msra.mxu0 %v4667
  %4999 = vmatpush.bf16.msra.mxu0 %v4666
  %5000 = vmatpush.bf16.msra.mxu0 %v4665
  %5001 = vmatpush.bf16.msra.mxu0 %v4664
  %5002 = vmatpush.bf16.msra.mxu0 %v4663
  %5003 = vmatpush.bf16.msra.mxu0 %v4662
  %5004 = vmatmul.bf16.gmra.mxu0 %v4039
  %v5005 = vpop.f32.mrf.mxu0
  %v5006 = vadd.f32 %v4992, %v5005
  %v5007 = vpop.f32.mrf.mxu0
  %v5008 = vadd.f32 %v4994, %v5007
  %5009 = vdwg.mxu0
  %5010 = vmatpush.bf16.msra.mxu0 %v4677
  %5011 = vmatpush.bf16.msra.mxu0 %v4676
  %5012 = vmatpush.bf16.msra.mxu0 %v4675
  %5013 = vmatpush.bf16.msra.mxu0 %v4674
  %5014 = vmatpush.bf16.msra.mxu0 %v4673
  %5015 = vmatpush.bf16.msra.mxu0 %v4672
  %5016 = vmatpush.bf16.msra.mxu0 %v4671
  %5017 = vmatpush.bf16.msra.mxu0 %v4670
  %5018 = vmatmul.bf16.gmra.mxu0 %v4040
  %v5019 = vpop.f32.mrf.mxu0
  %v5020 = vadd.f32 %v5006, %v5019
  %v5021 = vpop.f32.mrf.mxu0
  %v5022 = vadd.f32 %v5008, %v5021
  %5023 = vdwg.mxu0
  %5024 = vmatpush.bf16.msra.mxu0 %v4685
  %5025 = vmatpush.bf16.msra.mxu0 %v4684
  %5026 = vmatpush.bf16.msra.mxu0 %v4683
  %5027 = vmatpush.bf16.msra.mxu0 %v4682
  %5028 = vmatpush.bf16.msra.mxu0 %v4681
  %5029 = vmatpush.bf16.msra.mxu0 %v4680
  %5030 = vmatpush.bf16.msra.mxu0 %v4679
  %5031 = vmatpush.bf16.msra.mxu0 %v4678
  %5032 = vmatmul.bf16.gmra.mxu0 %v4041
  %v5033 = vpop.f32.mrf.mxu0
  %v5034 = vadd.f32 %v5020, %v5033
  %v5035 = vpop.f32.mrf.mxu0
  %v5036 = vadd.f32 %v5022, %v5035
  %5037 = vdwg.mxu0
  %v5038 = vadd.f32 %v3280, %v5034
  %v5039 = vadd.f32 %v3281, %v5036
  %v5040 = vsel %vm179, %v5038, 0.0
  %5041 = vadd.xlane.f32.xlu0 %v5040
  %v5042 = vpop.xlane.xlu0 %5041
  %v5043 = vsel %vm179, %v5039, 0.0
  %5044 = vadd.xlane.f32.xlu0 %v5043
  %v5045 = vpop.xlane.xlu0 %5044
  %v5046 = vmul.f32 %v5042, %v767
  %v5047 = vmul.f32 %v5045, %v767
  %v5048 = vsub.f32 %v5038, %v5046
  %v5049 = vsub.f32 %v5039, %v5047
  %v5050 = vmul.f32 %v5048, %v5048
  %v5051 = vmul.f32 %v5049, %v5049
  %v5052 = vsel %vm179, %v5050, 0.0
  %5053 = vadd.xlane.f32.xlu0 %v5052
  %v5054 = vpop.xlane.xlu0 %5053
  %v5055 = vsel %vm179, %v5051, 0.0
  %5056 = vadd.xlane.f32.xlu0 %v5055
  %v5057 = vpop.xlane.xlu0 %5056
  %v5058 = vmul.f32 %v5054, %v767
  %v5059 = vmul.f32 %v5057, %v767
  %v5060 = vadd.f32 %v5058, 1e-05
  %v5061 = vadd.f32 %v5059, 1e-05
  %v5062 = vrsqrt.pop %v5060
  %v5063 = vmul.f32 %v5062, %v5060
  %v5064 = vmul.f32 %v5063, %v5062
  %v5065 = vmul.f32 0.5, %v5064
  %v5066 = vsub.f32 1.5, %v5065
  %v5067 = vmul.f32 %v5062, %v5066
  %vm5068 = vweird.f32 %v5060
  %vm5069 = vweird.f32 %v5062
  %vm5070 = vmor %vm5068, %vm5069
  %v5071 = vsel %vm5070, %v5062, %v5067
  %v5072 = vrsqrt.pop %v5061
  %v5073 = vmul.f32 %v5072, %v5061
  %v5074 = vmul.f32 %v5073, %v5072
  %v5075 = vmul.f32 0.5, %v5074
  %v5076 = vsub.f32 1.5, %v5075
  %v5077 = vmul.f32 %v5072, %v5076
  %vm5078 = vweird.f32 %v5061
  %vm5079 = vweird.f32 %v5072
  %vm5080 = vmor %vm5078, %vm5079
  %v5081 = vsel %vm5080, %v5072, %v5077
  %v5082 = vmul.f32 %v5048, %v5071
  %v5083 = vmul.f32 %v5049, %v5081
  %v5084 = vld [vmem:[%s55] sm:$0x1]
  %v5086 = vperm.slane %v5084, 0
  %v5088 = vmul.f32 %v5082, %v5086
  %v5089 = vmul.f32 %v5083, %v5086
  %v5090 = vld [vmem:[%s57] sm:$0x1]
  %v5092 = vperm.slane %v5090, 0
  %v5094 = vadd.f32 %v5088, %v5092
  %v5095 = vadd.f32 %v5089, %v5092
  %v5096 = vsel %vm179, %v5094, 0.0
  %v5097 = vrot.slane %v5096, 4
  %v5098 = vadd.f32 %v5096, %v5097
  %v5099 = vrot.slane %v5098, 2
  %v5100 = vadd.f32 %v5098, %v5099
  %v5101 = vrot.slane %v5100, 1
  %v5102 = vadd.f32 %v5100, %v5101
  %v5103 = vrcp.pop 8.0
  %v5104 = vmul.f32 8.0, %v5103
  %v5105 = vsub.f32 1.0, %v5104
  %v5106 = vmul.f32 %v5103, %v5105
  %v5107 = vadd.f32 %v5103, %v5106
  %vm5108 = vweird.f32 %v5103
  %v5109 = vsel %vm5108, %v5103, %v5107
  %v5110 = vmul.f32 %v5102, %v5109
  %v5111 = vsel %vm179, %v5095, 0.0
  %v5112 = vrot.slane %v5111, 4
  %v5113 = vadd.f32 %v5111, %v5112
  %v5114 = vrot.slane %v5113, 2
  %v5115 = vadd.f32 %v5113, %v5114
  %v5116 = vrot.slane %v5115, 1
  %v5117 = vadd.f32 %v5115, %v5116
  %v5118 = vmul.f32 %v5117, %v5109
  %vm5119 = vcmask 1040384
  %v5120 = vsel %vm5119, %v5110, %v5118
  %v5121 = vld [vmem:[%s7] sm:$0xf]
  %v5122 = vld [vmem:[%s7 + $0x4] sm:$0xf]
  %v5123 = vld [vmem:[%s7 + $0x8] sm:$0xf]
  %v5124 = vld [vmem:[%s7 + $0xc] sm:$0xf]
  %v5125 = vpack.c.bf16 %v5120, %v5120
  %v5126 = vld [vmem:[#allocation2] sm:$0x1]
  %v5128 = vperm.slane %v5126, 0
  %v5134 = vunpack.c.l.b16 %v5121
  %v5135 = vunpack.c.l.b16 %v5122
  %v5136 = vunpack.c.l.b16 %v5123
  %v5137 = vunpack.c.l.b16 %v5124
  %v5138 = vpack.c.b16 %v5135, %v5134
  %v5139 = vpack.c.b16 %v5137, %v5136
  %v5143 = vsel %vm179, %v5125, 0
  %5145 = vmatpush.bf16.msra.mxu0 0
  %5146 = vmatpush.bf16.msra.mxu0 0
  %5147 = vmatpush.bf16.msra.mxu0 0
  %5148 = vmatpush.bf16.msra.mxu0 0
  %5149 = vmatpush.bf16.msra.mxu0 0
  %5150 = vmatpush.bf16.msra.mxu0 0
  %5151 = vmatpush.bf16.msra.mxu0 %v5139
  %5152 = vmatpush.bf16.msra.mxu0 %v5138
  %5153 = vmatmul.bf16.gmra.mxu0 %v5143
  %v5154 = vpop.f32.mrf.mxu0
  %v5155 = vadd.f32 %v5128, %v5154
  %v5156 = vpop.f32.mrf.mxu0
  %5157 = vdwg.mxu0
  %vm5158 = vcmask 1024
  %5159 = vst.msk [vmem:[%s59] sm:$0x3] %vm5158, %v5155
  // Predicated region
  $region118: #{transformer_predictor_forward.1} parent=0 // pred_check
    _
  $region119: #{transformer_predictor_forward.1} parent=0 // pred_check_branch
    %5161 = sbr.rel (0) target = $region121
  $region120: #{transformer_predictor_forward.1} parent=0 // pred_region
    _
  $region121: #{transformer_predictor_forward.1} parent=0 // pred_fallthru
    _
  // Predicated region
  $region122: #{transformer_predictor_forward.1} parent=0 // pred_check
    _
  $region123: #{transformer_predictor_forward.1} parent=0 // pred_check_branch
    %5163 = sbr.rel (0) target = $region125
  $region124: #{transformer_predictor_forward.1} parent=0 // pred_region
    _
  $region125: #{transformer_predictor_forward.1} parent=0 // pred_fallthru
    _

</llo_original>
